<compile_context>
chip_gen: v5e
topology: v5e:2x2
jax: 0.10.0
libtpu: 0.0.40
codegen_flags: <defaults>
</compile_context>

<pallas_src>
import functools

import numpy as np
import jax
import jax.numpy as jnp
from jax.experimental import pallas as pl
from jax.experimental.pallas import tpu as pltpu

NEMB = 256   # hard-coded in the module (nodelayer1/2 are Linear(256, 256))
LANE = 128
SUB = 16     # bf16 sublane packing; over-aligned (harmless) for f32
F32 = jnp.float32

ON_TPU = jax.default_backend() == "tpu"
# bf16 storage + f32 accumulation on TPU; f32 elsewhere (XLA:CPU's DotThunk does not
# implement BF16 x BF16 = F32, which is what broke the previous run).
ACT = jnp.bfloat16 if ON_TPU else jnp.float32
ACT_BYTES = jnp.dtype(ACT).itemsize


def _vmem_limit_bytes():
    try:
        cap = int(pltpu.get_tpu_info().vmem_capacity_bytes)
        # ~96 MiB on v5e/v6e (128 MiB physical), ~48 MiB on v7x (64 MiB per TC)
        return min(100 * 1024 * 1024, (cap * 3) // 4)
    except Exception:
        return 48 * 1024 * 1024


VMEM_LIMIT = _vmem_limit_bytes()


def _round_up(x, m):
    return ((x + m - 1) // m) * m


def _pick_tile(total, cap):
    """Largest multiple-of-128 tile <= cap dividing `total` (total % 128 == 0)."""
    t = min(cap, total)
    t -= t % LANE
    t = max(t, LANE)
    while total % t:
        t -= LANE
    return t


def _row_tile(n_pad):
    # Big tiles amortize the ~0.35us per-grid-step overhead, but keep >=2 row tiles
    # when the graph is big enough so both v7x TensorCores stay busy.
    cap = 512 if n_pad >= 1024 else max(LANE, n_pad // 2)
    return _pick_tile(n_pad, cap)


def _resident(block_shape, index_map):
    """Constant-index block: single-buffer it when the runtime supports pl.Buffered."""
    if hasattr(pl, "Buffered"):
        try:
            return pl.BlockSpec(block_shape, index_map, pipeline_mode=pl.Buffered(1))
        except TypeError:
            pass
    return pl.BlockSpec(block_shape, index_map)


def _lrelu(v):
    # leaky_relu, default 0.01 slope (maximum avoids a compare+select pair)
    return jnp.maximum(v, 0.01 * v)


# --------------------------------- kernels ---------------------------------

def _node_mlp_kernel(x_ref, wb1_ref, bb1_ref, wb2_ref, bb2_ref, wn1_ref, bn1_ref,
                     out_ref, z_ref):
    x = x_ref[...]                                                     # [tm, 256]
    h = _lrelu(jnp.dot(x, wb1_ref[...], preferred_element_type=F32) + bb1_ref[...])
    out = jnp.dot(h.astype(x.dtype), wb2_ref[...], preferred_element_type=F32) + bb2_ref[...]
    z = _lrelu(jnp.dot(out.astype(x.dtype), wn1_ref[...], preferred_element_type=F32)
               + bn1_ref[...])
    out_ref[...] = out.astype(out_ref.dtype)                           # block2emb output
    z_ref[...] = z.astype(z_ref.dtype)                                 # lrelu(nodelayer1)


def _message_kernel(struct_ref, feat_ref, h0_ref, invd_ref, wn2_ref, bn2_ref,
                    out2_ref, acc_ref):
    # struct = [adj | a_all] row tile, feat = [z ; eattr] column chunk (K-tiled).
    k = pl.program_id(1)

    @pl.when(k == 0)
    def _():
        acc_ref[...] = jnp.zeros_like(acc_ref)

    acc_ref[...] += jnp.dot(struct_ref[...], feat_ref[...], preferred_element_type=F32)

    @pl.when(k == pl.num_programs(1) - 1)
    def _():
        neigh = acc_ref[...] * invd_ref[...]               # 1/max(deg,1), applied in f32
        new_sum = neigh + h0_ref[...].astype(F32)
        out2 = _lrelu(jnp.dot(new_sum.astype(wn2_ref.dtype), wn2_ref[...],
                              preferred_element_type=F32) + bn2_ref[...])
        out2_ref[...] = out2.astype(out2_ref.dtype)


def _stem_head_kernel(cat_ref, ws1_ref, bs1_ref, ws2_ref, bs2_ref, ws3_ref, bs3_ref,
                      so_ref):
    cat = cat_ref[...]                                                 # [ts, 512]
    s1 = _lrelu(jnp.dot(cat, ws1_ref[...], preferred_element_type=F32) + bs1_ref[...])
    s2 = _lrelu(jnp.dot(s1.astype(cat.dtype), ws2_ref[...], preferred_element_type=F32)
                + bs2_ref[...])
    so_ref[...] = (jnp.dot(s2.astype(cat.dtype), ws3_ref[...], preferred_element_type=F32)
                   + bs3_ref[...])


def _mol_head_kernel(pool_ref, out2_ref, invc_ref, wg1_ref, bg1_ref, wg2_ref, bg2_ref,
                     mo_ref, acc_ref):
    # mean-pool accumulated over node chunks (reduction grid axis), head at last step.
    k = pl.program_id(0)

    @pl.when(k == 0)
    def _():
        acc_ref[...] = jnp.zeros_like(acc_ref)

    acc_ref[...] += jnp.dot(pool_ref[...], out2_ref[...], preferred_element_type=F32)

    @pl.when(k == pl.num_programs(0) - 1)
    def _():
        pooled = acc_ref[...] * invc_ref[...]              # 1/count, applied in f32
        g1 = _lrelu(jnp.dot(pooled.astype(wg1_ref.dtype), wg1_ref[...],
                            preferred_element_type=F32) + bg1_ref[...])
        mo_ref[...] = (jnp.dot(g1.astype(wg2_ref.dtype), wg2_ref[...],
                               preferred_element_type=F32) + bg2_ref[...])


# ------------------------- structure (host / XLA side) -------------------------

def build_structure(edges, batch, n_pad, e_pad, b_pad):
    """Adjacency / incidence matrices with the reference's `if src==i / elif dst==i`
    semantics (entries are exact small integers), plus f32 1/deg, pool matrix, 1/count."""
    # TODO(synk): adj/a_all are block-diagonal per graph; a PrefetchScalarGridSpec with
    # slices_x-driven per-graph column blocks (or CSR gather) would cut the O(N^2) dense
    # matmul to O(N * max_nodes_per_graph); kept dense here for clarity at small N.
    E = edges.shape[0]
    N = batch.shape[0]
    src, dst = edges[:, 0], edges[:, 1]
    not_self = (src != dst).astype(F32)
    e_ids = jnp.arange(E)

    # incidence [n_pad, e_pad]: src branch always, dst branch only if src != dst
    a_all = jnp.zeros((n_pad, e_pad), F32)
    a_all = a_all.at[src, e_ids].add(1.0)
    a_all = a_all.at[dst, e_ids].add(not_self)

    # neighbour adjacency [n_pad, n_pad] (self-loop lands on adj[i, i])
    adj = jnp.zeros((n_pad, n_pad), F32)
    adj = adj.at[src, dst].add(1.0)
    adj = adj.at[dst, src].add(not_self)

    deg = a_all.sum(axis=1, keepdims=True)
    inv_deg = 1.0 / jnp.maximum(deg, 1.0)                              # [n_pad, 1] f32

    onehot_b = jax.nn.one_hot(batch, b_pad, dtype=F32)                 # [N, b_pad]
    counts = onehot_b.sum(axis=0)
    inv_cnt = (1.0 / jnp.maximum(counts, 1.0))[:, None]                # [b_pad, 1] f32
    pool = jnp.zeros((b_pad, n_pad), F32).at[:, :N].set(onehot_b.T)    # 0/1 entries
    return adj, a_all, inv_deg, pool, inv_cnt


# ------------------------------- forward wrapper -------------------------------

@functools.partial(jax.jit, static_argnames=("out_per_stem", "out_per_mol", "n_graphs"))
def graph_agent_forward(x_emb, stem_emb, eattr, edges, batch, slices_x, stems, stems_batch,
                        params, *, out_per_stem, out_per_mol, n_graphs):
    N, E, S, B = x_emb.shape[0], eattr.shape[0], stem_emb.shape[0], n_graphs

    n_pad = _round_up(N, LANE)            # contraction dim of adj -> 128-aligned
    e_pad = _round_up(E, LANE)            # contraction dim of a_all -> 128-aligned
    k_tot = n_pad + e_pad
    tm = _row_tile(n_pad)
    tk = _pick_tile(k_tot, 512)           # K-tile of the fused structure matmul
    tkn = _pick_tile(n_pad, 512)          # K-tile of the mean-pool reduction
    ts = min(512, _round_up(S, SUB))
    s_pad = _round_up(S, ts)
    b_pad = _round_up(B, SUB)
    ostem_pad = _round_up(out_per_stem, LANE)
    omol_pad = _round_up(out_per_mol, LANE)

    adj, a_all, inv_deg, pool, inv_cnt = build_structure(edges, batch, n_pad, e_pad, b_pad)

    xp = jnp.pad(x_emb, ((0, n_pad - N), (0, 0))).astype(ACT)
    ep = jnp.pad(eattr, ((0, e_pad - E), (0, 0))).astype(ACT)
    stp = jnp.pad(stem_emb, ((0, s_pad - S), (0, 0))).astype(ACT)
    struct = jnp.concatenate([adj, a_all], axis=1).astype(ACT)          # [n_pad, k_tot]
    pool_a = pool.astype(ACT)

    w = {k: params[k].astype(ACT) for k in ("wb1", "wb2", "wn1", "wn2", "ws2", "wg1")}
    b = {k: params[k].astype(F32) for k in
         ("bb1", "bb2", "bn1", "bn2", "bs1", "bs2", "bs3", "bg1", "bg2")}
    ws1 = jnp.concatenate([params["ws1a"], params["ws1b"]], axis=0).astype(ACT)  # [512,256]
    # lane-pad the head output layers so stores are dense (multiple of 128 lanes)
    ws3 = jnp.pad(params["ws3"], ((0, 0), (0, ostem_pad - out_per_stem))).astype(ACT)
    bs3 = jnp.pad(b["bs3"], ((0, 0), (0, ostem_pad - out_per_stem)))
    wg2 = jnp.pad(params["wg2"], ((0, 0), (0, omol_pad - out_per_mol))).astype(ACT)
    bg2 = jnp.pad(b["bg2"], ((0, 0), (0, omol_pad - out_per_mol)))

    # ---- kernel A: block2emb + lrelu(nodelayer1), row-parallel over N tiles ----
    n_tiles = n_pad // tm
    fa = 2 * n_pad * NEMB * NEMB * 3
    ba = ACT_BYTES * (3 * n_pad * NEMB + 3 * NEMB * NEMB) + 4 * 3 * NEMB
    out0, z = pl.pallas_call(
        _node_mlp_kernel,
        grid=(n_tiles,),
        in_specs=[pl.BlockSpec((tm, NEMB), lambda i: (i, 0)),
                  _resident((NEMB, NEMB), lambda i: (0, 0)),
                  _resident((1, NEMB), lambda i: (0, 0)),
                  _resident((NEMB, NEMB), lambda i: (0, 0)),
                  _resident((1, NEMB), lambda i: (0, 0)),
                  _resident((NEMB, NEMB), lambda i: (0, 0)),
                  _resident((1, NEMB), lambda i: (0, 0))],
        out_specs=(pl.BlockSpec((tm, NEMB), lambda i: (i, 0)),
                   pl.BlockSpec((tm, NEMB), lambda i: (i, 0))),
        out_shape=(jax.ShapeDtypeStruct((n_pad, NEMB), ACT),
                   jax.ShapeDtypeStruct((n_pad, NEMB), ACT)),
        compiler_params=pltpu.CompilerParams(
            dimension_semantics=("parallel",), vmem_limit_bytes=VMEM_LIMIT),
        cost_estimate=pl.CostEstimate(flops=fa, transcendentals=0, bytes_accessed=ba),
    )(xp, w["wb1"], b["bb1"], w["wb2"], b["bb2"], w["wn1"], b["bn1"])

    # ---- kernel B: fused neighbour aggregation + nodelayer2, (rows x K-chunks) ----
    feat = jnp.concatenate([z, ep], axis=0)                            # [k_tot, 256]
    k_tiles = k_tot // tk
    fb = 2 * n_pad * NEMB * (k_tot + NEMB)
    bb = ACT_BYTES * (n_pad * k_tot + k_tot * NEMB + 2 * n_pad * NEMB + NEMB * NEMB) \
        + 4 * (n_pad + NEMB)
    out2 = pl.pallas_call(
        _message_kernel,
        grid=(n_tiles, k_tiles),
        in_specs=[pl.BlockSpec((tm, tk), lambda i, k: (i, k)),
                  pl.BlockSpec((tk, NEMB), lambda i, k: (k, 0)),
                  pl.BlockSpec((tm, NEMB), lambda i, k: (i, 0)),
                  pl.BlockSpec((tm, 1), lambda i, k: (i, 0)),
                  _resident((NEMB, NEMB), lambda i, k: (0, 0)),
                  _resident((1, NEMB), lambda i, k: (0, 0))],
        out_specs=pl.BlockSpec((tm, NEMB), lambda i, k: (i, 0)),
        out_shape=jax.ShapeDtypeStruct((n_pad, NEMB), ACT),
        scratch_shapes=[pltpu.VMEM((tm, NEMB), F32)],
        compiler_params=pltpu.CompilerParams(
            dimension_semantics=("parallel", "arbitrary"), vmem_limit_bytes=VMEM_LIMIT),
        cost_estimate=pl.CostEstimate(flops=fb, transcendentals=0, bytes_accessed=bb),
    )(struct, feat, out0, inv_deg, w["wn2"], b["bn2"])

    # stem row gather + concat with stemtypes done as cheap XLA ops between calls
    stem_idx = slices_x[stems_batch] + stems[:, 0]
    stem_idx_p = jnp.pad(stem_idx, (0, s_pad - S))
    stem_nodes = jnp.take(out2, stem_idx_p, axis=0)                    # [s_pad, 256]
    stem_cat = jnp.concatenate([stem_nodes, stp], axis=1)              # [s_pad, 512]

    # ---- kernel C: stem2pred head (fused K=512 first layer), row-parallel over S ----
    s_tiles = s_pad // ts
    fc = 2 * s_pad * NEMB * (2 * NEMB + NEMB + ostem_pad)
    bc = ACT_BYTES * (2 * s_pad * NEMB + 3 * NEMB * NEMB + NEMB * ostem_pad) \
        + 4 * (s_pad * ostem_pad + 2 * NEMB + ostem_pad)
    stem_out = pl.pallas_call(
        _stem_head_kernel,
        grid=(s_tiles,),
        in_specs=[pl.BlockSpec((ts, 2 * NEMB), lambda j: (j, 0)),
                  _resident((2 * NEMB, NEMB), lambda j: (0, 0)),
                  _resident((1, NEMB), lambda j: (0, 0)),
                  _resident((NEMB, NEMB), lambda j: (0, 0)),
                  _resident((1, NEMB), lambda j: (0, 0)),
                  _resident((NEMB, ostem_pad), lambda j: (0, 0)),
                  _resident((1, ostem_pad), lambda j: (0, 0))],
        out_specs=pl.BlockSpec((ts, ostem_pad), lambda j: (j, 0)),
        out_shape=jax.ShapeDtypeStruct((s_pad, ostem_pad), F32),
        compiler_params=pltpu.CompilerParams(
            dimension_semantics=("parallel",), vmem_limit_bytes=VMEM_LIMIT),
        cost_estimate=pl.CostEstimate(flops=fc, transcendentals=0, bytes_accessed=bc),
    )(stem_cat, ws1, b["bs1"], w["ws2"], b["bs2"], ws3, bs3)

    # ---- kernel D: global mean pool (reduction over node chunks) + global2pred ----
    nk_tiles = n_pad // tkn
    fd = 2 * b_pad * NEMB * (n_pad + NEMB + omol_pad)
    bd = ACT_BYTES * (b_pad * n_pad + n_pad * NEMB + NEMB * NEMB + NEMB * omol_pad) \
        + 4 * (b_pad + NEMB + omol_pad + b_pad * omol_pad)
    mol_out = pl.pallas_call(
        _mol_head_kernel,
        grid=(nk_tiles,),
        in_specs=[pl.BlockSpec((b_pad, tkn), lambda k: (0, k)),
                  pl.BlockSpec((tkn, NEMB), lambda k: (k, 0)),
                  _resident((b_pad, 1), lambda k: (0, 0)),
                  _resident((NEMB, NEMB), lambda k: (0, 0)),
                  _resident((1, NEMB), lambda k: (0, 0)),
                  _resident((NEMB, omol_pad), lambda k: (0, 0)),
                  _resident((1, omol_pad), lambda k: (0, 0))],
        out_specs=pl.BlockSpec((b_pad, omol_pad), lambda k: (0, 0)),
        out_shape=jax.ShapeDtypeStruct((b_pad, omol_pad), F32),
        scratch_shapes=[pltpu.VMEM((b_pad, NEMB), F32)],
        compiler_params=pltpu.CompilerParams(
            dimension_semantics=("arbitrary",), vmem_limit_bytes=VMEM_LIMIT),
        cost_estimate=pl.CostEstimate(flops=fd, transcendentals=0, bytes_accessed=bd),
    )(pool_a, out2, inv_cnt, w["wg1"], b["bg1"], wg2, bg2)

    stem_preds = stem_out[:S, :out_per_stem]
    mol_preds = mol_out[:B, :out_per_mol]
    return stem_preds, mol_preds


# -------------------- glue: parameter init + numpy reference --------------------

def init_params(key, nemb, out_per_stem, out_per_mol, num_true_blocks, num_stem_types):
    keys = jax.random.split(key, 16)

    def lin(k, din, dout):
        kw, kb = jax.random.split(k)
        w = jax.random.normal(kw, (din, dout), jnp.float32) / jnp.sqrt(float(din))
        b = 0.01 * jax.random.normal(kb, (1, dout), jnp.float32)
        return w, b

    p = {}
    p["blockemb"] = 0.1 * jax.random.normal(keys[0], (num_true_blocks + 1, nemb), jnp.float32)
    p["stememb"] = 0.1 * jax.random.normal(keys[1], (num_stem_types + 1, nemb), jnp.float32)
    p["bondemb"] = 0.1 * jax.random.normal(keys[2], (num_stem_types, nemb), jnp.float32)
    p["wb1"], p["bb1"] = lin(keys[3], nemb, nemb)
    p["wb2"], p["bb2"] = lin(keys[4], nemb, nemb)
    p["wn1"], p["bn1"] = lin(keys[5], nemb, nemb)
    p["wn2"], p["bn2"] = lin(keys[6], nemb, nemb)
    ws1, p["bs1"] = lin(keys[7], 2 * nemb, nemb)
    p["ws1a"], p["ws1b"] = ws1[:nemb], ws1[nemb:]
    p["ws2"], p["bs2"] = lin(keys[8], nemb, nemb)
    p["ws3"], p["bs3"] = lin(keys[9], nemb, out_per_stem)
    p["wg1"], p["bg1"] = lin(keys[10], nemb, nemb)
    p["wg2"], p["bg2"] = lin(keys[11], nemb, out_per_mol)
    return p


def reference_forward(np_in, p):
    """Pure numpy mirror of the PyTorch forward() loop (fp64)."""
    lrelu = lambda v: np.where(v > 0, v, 0.01 * v)
    x_emb, stem_emb, eattr = np_in["x_emb"], np_in["stem_emb"], np_in["eattr"]
    edges, batch = np_in["edges"], np_in["batch"]
    slices_x, stems, stems_batch = np_in["slices_x"], np_in["stems"], np_in["stems_batch"]

    out = lrelu(x_emb @ np.asarray(p["wb1"]) + np.asarray(p["bb1"]))
    out = out @ np.asarray(p["wb2"]) + np.asarray(p["bb2"])
    z = lrelu(out @ np.asarray(p["wn1"]) + np.asarray(p["bn1"]))

    N, E = x_emb.shape[0], edges.shape[0]
    rows = []
    for i in range(N):
        neigh = np.zeros(NEMB, np.float64)
        inc = []
        for e in range(E):
            if edges[e, 0] == i:
                inc.append((e, False))
            elif edges[e, 1] == i:
                inc.append((e, True))
        for e, flipped in inc:
            to = edges[e, 0 if flipped else 1]
            neigh = neigh + eattr[e] + z[to]
        neigh = neigh / (len(inc) if len(inc) else 1)
        rows.append(lrelu((neigh + out[i]) @ np.asarray(p["wn2"]) + np.asarray(p["bn2"])[0]))
    out2 = np.stack(rows)

    stem_idx = np.asarray(slices_x)[stems_batch] + stems[:, 0]
    cat = np.concatenate([out2[stem_idx], stem_emb], axis=1)
    ws1 = np.concatenate([np.asarray(p["ws1a"]), np.asarray(p["ws1b"])], axis=0)
    s = lrelu(cat @ ws1 + np.asarray(p["bs1"]))
    s = lrelu(s @ np.asarray(p["ws2"]) + np.asarray(p["bs2"]))
    stem_preds = s @ np.asarray(p["ws3"]) + np.asarray(p["bs3"])

    B = int(batch.max()) + 1
    pooled = np.stack([out2[batch == b].mean(axis=0) for b in range(B)])
    g = lrelu(pooled @ np.asarray(p["wg1"]) + np.asarray(p["bg1"]))
    mol_preds = g @ np.asarray(p["wg2"]) + np.asarray(p["bg2"])
    return stem_preds, mol_preds


if __name__ == "__main__":
    # synthetic GraphAgent config (nemb fixed at 256 by the module's nodelayers)
    num_true_blocks = 8
    num_stem_types = 6
    out_per_stem = 8        # mdp.num_blocks
    out_per_mol = 1
    B, nodes_per_graph = 2, 4
    N = B * nodes_per_graph  # 8 nodes total
    E, S = 8, 8              # 8 edges, 8 stems

    key = jax.random.PRNGKey(0)
    kp, kx, kst, kbd = jax.random.split(key, 4)
    params = init_params(kp, NEMB, out_per_stem, out_per_mol, num_true_blocks, num_stem_types)

    # synthetic graph batch: 2 graphs of 4 nodes each
    x_idx = jax.random.randint(kx, (N,), 0, num_true_blocks + 1)
    edges = jnp.array([[0, 1], [1, 2], [2, 3], [0, 3],
                       [4, 5], [5, 6], [6, 7], [4, 6]], jnp.int32)          # global node ids
    edge_attr_idx = jax.random.randint(kbd, (E, 2), 0, num_stem_types)
    batch = jnp.array([0, 0, 0, 0, 1, 1, 1, 1], jnp.int32)
    slices_x = jnp.array([0, 4, 8], jnp.int32)                              # __slices__['x']
    stems = jnp.stack([jnp.array([0, 1, 2, 3, 0, 1, 2, 3], jnp.int32),
                       jnp.zeros((S,), jnp.int32)], axis=1)                 # local node idx
    stems_batch = jnp.array([0, 0, 0, 0, 1, 1, 1, 1], jnp.int32)
    stemtypes_idx = jax.random.randint(kst, (S,), 0, num_stem_types + 1)

    # TODO(synk): nn.Embedding lookups + the bond-embedding sum stay as XLA gathers in
    # the wrapper (no benefit from hand-writing them as Pallas kernels).
    x_emb = params["blockemb"][x_idx]
    stem_emb = params["stememb"][stemtypes_idx]
    bond = params["bondemb"][edge_attr_idx]            # [E, 2, 256]
    eattr = bond[:, 0] + bond[:, 1]                    # [E, 256]

    stem_preds, mol_preds = graph_agent_forward(
        x_emb, stem_emb, eattr, edges, batch, slices_x, stems, stems_batch, params,
        out_per_stem=out_per_stem, out_per_mol=out_per_mol, n_graphs=B)
    jax.block_until_ready((stem_preds, mol_preds))

    # numpy reference check (same semantics as the PyTorch forward loop); tolerance
    # sized for the bf16-storage / f32-accumulation path on TPU.
    np_in = dict(
        x_emb=np.asarray(x_emb, np.float64), stem_emb=np.asarray(stem_emb, np.float64),
        eattr=np.asarray(eattr, np.float64), edges=np.asarray(edges), batch=np.asarray(batch),
        slices_x=np.asarray(slices_x), stems=np.asarray(stems),
        stems_batch=np.asarray(stems_batch))
    ref_stem, ref_mol = reference_forward(np_in, params)
    np.testing.assert_allclose(np.asarray(stem_preds, np.float64), ref_stem,
                               rtol=5e-2, atol=5e-2)
    np.testing.assert_allclose(np.asarray(mol_preds, np.float64), ref_mol,
                               rtol=5e-2, atol=5e-2)

    print("KERNEL_OK")
</pallas_src>

<mosaic_0001>
module attributes {stable_mosaic.version = 11 : i64} {
  func.func @_node_mlp_kernel(%arg0: i32, %arg1: memref<128x256xf32, #tpu.memory_space<vmem>>, %arg2: memref<256x256xf32, #tpu.memory_space<vmem>>, %arg3: memref<1x256xf32, #tpu.memory_space<vmem>>, %arg4: memref<256x256xf32, #tpu.memory_space<vmem>>, %arg5: memref<1x256xf32, #tpu.memory_space<vmem>>, %arg6: memref<256x256xf32, #tpu.memory_space<vmem>>, %arg7: memref<1x256xf32, #tpu.memory_space<vmem>>, %arg8: memref<128x256xf32, #tpu.memory_space<vmem>>, %arg9: memref<128x256xf32, #tpu.memory_space<vmem>>) attributes {dimension_semantics = [#tpu.dimension_semantics<parallel>], iteration_bounds = array<i64: 1>, scalar_prefetch = 0 : i64, scratch_operands = 0 : i64, tpu.core_type = #tpu.core_type<tc>, window_params = [{transform_indices = @transform_0, window_bounds = array<i64: 128, 256>}, {pipeline_mode = #tpu.pipeline_mode<synchronous>, transform_indices = @transform_1, window_bounds = array<i64: 256, 256>}, {pipeline_mode = #tpu.pipeline_mode<synchronous>, transform_indices = @transform_2, window_bounds = array<i64: 1, 256>}, {pipeline_mode = #tpu.pipeline_mode<synchronous>, transform_indices = @transform_3, window_bounds = array<i64: 256, 256>}, {pipeline_mode = #tpu.pipeline_mode<synchronous>, transform_indices = @transform_4, window_bounds = array<i64: 1, 256>}, {pipeline_mode = #tpu.pipeline_mode<synchronous>, transform_indices = @transform_5, window_bounds = array<i64: 256, 256>}, {pipeline_mode = #tpu.pipeline_mode<synchronous>, transform_indices = @transform_6, window_bounds = array<i64: 1, 256>}, {transform_indices = @transform_7, window_bounds = array<i64: 128, 256>}, {transform_indices = @transform_8, window_bounds = array<i64: 128, 256>}]} {
    %c0 = arith.constant 0 : index
    %c0_0 = arith.constant 0 : index
    %0 = vector.load %arg1[%c0, %c0_0] : memref<128x256xf32, #tpu.memory_space<vmem>>, vector<128x256xf32>
    %c0_1 = arith.constant 0 : index
    %c0_2 = arith.constant 0 : index
    %1 = vector.load %arg2[%c0_1, %c0_2] : memref<256x256xf32, #tpu.memory_space<vmem>>, vector<256x256xf32>
    %cst = arith.constant dense<0.000000e+00> : vector<128x256xf32>
    %2 = tpu.matmul %0, %1, %cst {dimension_numbers = #tpu.dot_dimension_numbers<[1], [0], [0], [1], [0, 0, 1, 1], [], []>} : vector<128x256xf32>, vector<256x256xf32>, vector<128x256xf32> -> vector<128x256xf32>
    %c0_3 = arith.constant 0 : index
    %c0_4 = arith.constant 0 : index
    %3 = vector.load %arg3[%c0_3, %c0_4] : memref<1x256xf32, #tpu.memory_space<vmem>>, vector<1x256xf32>
    %4 = vector.broadcast %3 : vector<1x256xf32> to vector<128x256xf32>
    %5 = arith.addf %2, %4 : vector<128x256xf32>
    %cst_5 = arith.constant 0.00999999977 : f32
    %6 = vector.broadcast %cst_5 : f32 to vector<128x256xf32>
    %7 = arith.mulf %6, %5 : vector<128x256xf32>
    %8 = arith.maximumf %5, %7 : vector<128x256xf32>
    %c0_6 = arith.constant 0 : index
    %c0_7 = arith.constant 0 : index
    %9 = vector.load %arg4[%c0_6, %c0_7] : memref<256x256xf32, #tpu.memory_space<vmem>>, vector<256x256xf32>
    %cst_8 = arith.constant dense<0.000000e+00> : vector<128x256xf32>
    %10 = tpu.matmul %8, %9, %cst_8 {dimension_numbers = #tpu.dot_dimension_numbers<[1], [0], [0], [1], [0, 0, 1, 1], [], []>} : vector<128x256xf32>, vector<256x256xf32>, vector<128x256xf32> -> vector<128x256xf32>
    %c0_9 = arith.constant 0 : index
    %c0_10 = arith.constant 0 : index
    %11 = vector.load %arg5[%c0_9, %c0_10] : memref<1x256xf32, #tpu.memory_space<vmem>>, vector<1x256xf32>
    %12 = vector.broadcast %11 : vector<1x256xf32> to vector<128x256xf32>
    %13 = arith.addf %10, %12 : vector<128x256xf32>
    %c0_11 = arith.constant 0 : index
    %c0_12 = arith.constant 0 : index
    %14 = vector.load %arg6[%c0_11, %c0_12] : memref<256x256xf32, #tpu.memory_space<vmem>>, vector<256x256xf32>
    %cst_13 = arith.constant dense<0.000000e+00> : vector<128x256xf32>
    %15 = tpu.matmul %13, %14, %cst_13 {dimension_numbers = #tpu.dot_dimension_numbers<[1], [0], [0], [1], [0, 0, 1, 1], [], []>} : vector<128x256xf32>, vector<256x256xf32>, vector<128x256xf32> -> vector<128x256xf32>
    %c0_14 = arith.constant 0 : index
    %c0_15 = arith.constant 0 : index
    %16 = vector.load %arg7[%c0_14, %c0_15] : memref<1x256xf32, #tpu.memory_space<vmem>>, vector<1x256xf32>
    %17 = vector.broadcast %16 : vector<1x256xf32> to vector<128x256xf32>
    %18 = arith.addf %15, %17 : vector<128x256xf32>
    %cst_16 = arith.constant 0.00999999977 : f32
    %19 = vector.broadcast %cst_16 : f32 to vector<128x256xf32>
    %20 = arith.mulf %19, %18 : vector<128x256xf32>
    %21 = arith.maximumf %18, %20 : vector<128x256xf32>
    %c0_17 = arith.constant 0 : index
    %c0_18 = arith.constant 0 : index
    %22 = vector.load %arg8[%c0_17, %c0_18] : memref<128x256xf32, #tpu.memory_space<vmem>>, vector<128x256xf32>
    tpu.vector_store %arg8[%c0_17, %c0_18], %13 {strides = array<i32>} : memref<128x256xf32, #tpu.memory_space<vmem>>, vector<128x256xf32>,
    %c0_19 = arith.constant 0 : index
    %c0_20 = arith.constant 0 : index
    %23 = vector.load %arg9[%c0_19, %c0_20] : memref<128x256xf32, #tpu.memory_space<vmem>>, vector<128x256xf32>
    tpu.vector_store %arg9[%c0_19, %c0_20], %21 {strides = array<i32>} : memref<128x256xf32, #tpu.memory_space<vmem>>, vector<128x256xf32>,
    return
  }
  func.func @transform_0(%arg0: i32) -> (i32, i32) {
    %c0_i32 = arith.constant 0 : i32
    %c0_i32_0 = arith.constant 0 : i32
    return %arg0, %c0_i32 : i32, i32
  }
  func.func @transform_1(%arg0: i32) -> (i32, i32) {
    %c0_i32 = arith.constant 0 : i32
    %c0_i32_0 = arith.constant 0 : i32
    %c0_i32_1 = arith.constant 0 : i32
    return %c0_i32, %c0_i32_0 : i32, i32
  }
  func.func @transform_2(%arg0: i32) -> (i32, i32) {
    %c0_i32 = arith.constant 0 : i32
    %c0_i32_0 = arith.constant 0 : i32
    %c0_i32_1 = arith.constant 0 : i32
    return %c0_i32, %c0_i32_0 : i32, i32
  }
  func.func @transform_3(%arg0: i32) -> (i32, i32) {
    %c0_i32 = arith.constant 0 : i32
    %c0_i32_0 = arith.constant 0 : i32
    %c0_i32_1 = arith.constant 0 : i32
    return %c0_i32, %c0_i32_0 : i32, i32
  }
  func.func @transform_4(%arg0: i32) -> (i32, i32) {
    %c0_i32 = arith.constant 0 : i32
    %c0_i32_0 = arith.constant 0 : i32
    %c0_i32_1 = arith.constant 0 : i32
    return %c0_i32, %c0_i32_0 : i32, i32
  }
  func.func @transform_5(%arg0: i32) -> (i32, i32) {
    %c0_i32 = arith.constant 0 : i32
    %c0_i32_0 = arith.constant 0 : i32
    %c0_i32_1 = arith.constant 0 : i32
    return %c0_i32, %c0_i32_0 : i32, i32
  }
  func.func @transform_6(%arg0: i32) -> (i32, i32) {
    %c0_i32 = arith.constant 0 : i32
    %c0_i32_0 = arith.constant 0 : i32
    %c0_i32_1 = arith.constant 0 : i32
    return %c0_i32, %c0_i32_0 : i32, i32
  }
  func.func @transform_7(%arg0: i32) -> (i32, i32) {
    %c0_i32 = arith.constant 0 : i32
    %c0_i32_0 = arith.constant 0 : i32
    return %arg0, %c0_i32 : i32, i32
  }
  func.func @transform_8(%arg0: i32) -> (i32, i32) {
    %c0_i32 = arith.constant 0 : i32
    %c0_i32_0 = arith.constant 0 : i32
    return %arg0, %c0_i32 : i32, i32
  }
}

module attributes {stable_mosaic.version = 11 : i64} {
  func.func @_message_kernel(%arg0: i32, %arg1: i32, %arg2: memref<128x256xf32, #tpu.memory_space<vmem>>, %arg3: memref<256x256xf32, #tpu.memory_space<vmem>>, %arg4: memref<128x256xf32, #tpu.memory_space<vmem>>, %arg5: memref<128x1xf32, #tpu.memory_space<vmem>>, %arg6: memref<256x256xf32, #tpu.memory_space<vmem>>, %arg7: memref<1x256xf32, #tpu.memory_space<vmem>>, %arg8: memref<128x256xf32, #tpu.memory_space<vmem>>, %arg9: memref<128x256xf32, #tpu.memory_space<vmem>>) attributes {dimension_semantics = [#tpu.dimension_semantics<parallel>, #tpu.dimension_semantics<arbitrary>], iteration_bounds = array<i64: 1, 1>, scalar_prefetch = 0 : i64, scratch_operands = 1 : i64, tpu.core_type = #tpu.core_type<tc>, window_params = [{transform_indices = @transform_0, window_bounds = array<i64: 128, 256>}, {transform_indices = @transform_1, window_bounds = array<i64: 256, 256>}, {transform_indices = @transform_2, window_bounds = array<i64: 128, 256>}, {transform_indices = @transform_3, window_bounds = array<i64: 128, 1>}, {pipeline_mode = #tpu.pipeline_mode<synchronous>, transform_indices = @transform_4, window_bounds = array<i64: 256, 256>}, {pipeline_mode = #tpu.pipeline_mode<synchronous>, transform_indices = @transform_5, window_bounds = array<i64: 1, 256>}, {transform_indices = @transform_6, window_bounds = array<i64: 128, 256>}]} {
    %c0_i32 = arith.constant 0 : i32
    %0 = arith.cmpi eq, %arg1, %c0_i32 : i32
    %1 = arith.extui %0 : i1 to i32
    %c0_i32_0 = arith.constant 0 : i32
    %2 = arith.cmpi ne, %1, %c0_i32_0 : i32
    scf.if %2 {
      %cst_10 = arith.constant 0.000000e+00 : f32
      %12 = vector.broadcast %cst_10 : f32 to vector<128x256xf32>
      %c0_11 = arith.constant 0 : index
      %c0_12 = arith.constant 0 : index
      %13 = vector.load %arg9[%c0_11, %c0_12] : memref<128x256xf32, #tpu.memory_space<vmem>>, vector<128x256xf32>
      tpu.vector_store %arg9[%c0_11, %c0_12], %12 {strides = array<i32>} : memref<128x256xf32, #tpu.memory_space<vmem>>, vector<128x256xf32>,
    } else {
    }
    %c0 = arith.constant 0 : index
    %c0_1 = arith.constant 0 : index
    %3 = vector.load %arg9[%c0, %c0_1] : memref<128x256xf32, #tpu.memory_space<vmem>>, vector<128x256xf32>
    %c0_2 = arith.constant 0 : index
    %c0_3 = arith.constant 0 : index
    %4 = vector.load %arg2[%c0_2, %c0_3] : memref<128x256xf32, #tpu.memory_space<vmem>>, vector<128x256xf32>
    %c0_4 = arith.constant 0 : index
    %c0_5 = arith.constant 0 : index
    %5 = vector.load %arg3[%c0_4, %c0_5] : memref<256x256xf32, #tpu.memory_space<vmem>>, vector<256x256xf32>
    %cst = arith.constant dense<0.000000e+00> : vector<128x256xf32>
    %6 = tpu.matmul %4, %5, %cst {dimension_numbers = #tpu.dot_dimension_numbers<[1], [0], [0], [1], [0, 0, 1, 1], [], []>} : vector<128x256xf32>, vector<256x256xf32>, vector<128x256xf32> -> vector<128x256xf32>
    %7 = arith.addf %3, %6 : vector<128x256xf32>
    %c0_6 = arith.constant 0 : index
    %c0_7 = arith.constant 0 : index
    %8 = vector.load %arg9[%c0_6, %c0_7] : memref<128x256xf32, #tpu.memory_space<vmem>>, vector<128x256xf32>
    tpu.vector_store %arg9[%c0_6, %c0_7], %7 {strides = array<i32>} : memref<128x256xf32, #tpu.memory_space<vmem>>, vector<128x256xf32>,
    %c0_i32_8 = arith.constant 0 : i32
    %9 = arith.cmpi eq, %arg1, %c0_i32_8 : i32
    %10 = arith.extui %9 : i1 to i32
    %c0_i32_9 = arith.constant 0 : i32
    %11 = arith.cmpi ne, %10, %c0_i32_9 : i32
    scf.if %11 {
      %c0_10 = arith.constant 0 : index
      %c0_11 = arith.constant 0 : index
      %12 = vector.load %arg9[%c0_10, %c0_11] : memref<128x256xf32, #tpu.memory_space<vmem>>, vector<128x256xf32>
      %c0_12 = arith.constant 0 : index
      %c0_13 = arith.constant 0 : index
      %13 = vector.load %arg5[%c0_12, %c0_13] : memref<128x1xf32, #tpu.memory_space<vmem>>, vector<128x1xf32>
      %14 = vector.broadcast %13 : vector<128x1xf32> to vector<128x256xf32>
      %15 = arith.mulf %12, %14 : vector<128x256xf32>
      %c0_14 = arith.constant 0 : index
      %c0_15 = arith.constant 0 : index
      %16 = vector.load %arg4[%c0_14, %c0_15] : memref<128x256xf32, #tpu.memory_space<vmem>>, vector<128x256xf32>
      %17 = arith.addf %15, %16 : vector<128x256xf32>
      %c0_16 = arith.constant 0 : index
      %c0_17 = arith.constant 0 : index
      %18 = vector.load %arg6[%c0_16, %c0_17] : memref<256x256xf32, #tpu.memory_space<vmem>>, vector<256x256xf32>
      %cst_18 = arith.constant dense<0.000000e+00> : vector<128x256xf32>
      %19 = tpu.matmul %17, %18, %cst_18 {dimension_numbers = #tpu.dot_dimension_numbers<[1], [0], [0], [1], [0, 0, 1, 1], [], []>} : vector<128x256xf32>, vector<256x256xf32>, vector<128x256xf32> -> vector<128x256xf32>
      %c0_19 = arith.constant 0 : index
      %c0_20 = arith.constant 0 : index
      %20 = vector.load %arg7[%c0_19, %c0_20] : memref<1x256xf32, #tpu.memory_space<vmem>>, vector<1x256xf32>
      %21 = vector.broadcast %20 : vector<1x256xf32> to vector<128x256xf32>
      %22 = arith.addf %19, %21 : vector<128x256xf32>
      %cst_21 = arith.constant 0.00999999977 : f32
      %23 = vector.broadcast %cst_21 : f32 to vector<128x256xf32>
      %24 = arith.mulf %23, %22 : vector<128x256xf32>
      %25 = arith.maximumf %22, %24 : vector<128x256xf32>
      %c0_22 = arith.constant 0 : index
      %c0_23 = arith.constant 0 : index
      %26 = vector.load %arg8[%c0_22, %c0_23] : memref<128x256xf32, #tpu.memory_space<vmem>>, vector<128x256xf32>
      tpu.vector_store %arg8[%c0_22, %c0_23], %25 {strides = array<i32>} : memref<128x256xf32, #tpu.memory_space<vmem>>, vector<128x256xf32>,
    } else {
    }
    return
  }
  func.func @transform_0(%arg0: i32, %arg1: i32) -> (i32, i32) {
    %c0_i32 = arith.constant 0 : i32
    return %arg0, %arg1 : i32, i32
  }
  func.func @transform_1(%arg0: i32, %arg1: i32) -> (i32, i32) {
    %c0_i32 = arith.constant 0 : i32
    %c0_i32_0 = arith.constant 0 : i32
    return %arg1, %c0_i32 : i32, i32
  }
  func.func @transform_2(%arg0: i32, %arg1: i32) -> (i32, i32) {
    %c0_i32 = arith.constant 0 : i32
    %c0_i32_0 = arith.constant 0 : i32
    return %arg0, %c0_i32 : i32, i32
  }
  func.func @transform_3(%arg0: i32, %arg1: i32) -> (i32, i32) {
    %c0_i32 = arith.constant 0 : i32
    %c0_i32_0 = arith.constant 0 : i32
    return %arg0, %c0_i32 : i32, i32
  }
  func.func @transform_4(%arg0: i32, %arg1: i32) -> (i32, i32) {
    %c0_i32 = arith.constant 0 : i32
    %c0_i32_0 = arith.constant 0 : i32
    %c0_i32_1 = arith.constant 0 : i32
    return %c0_i32, %c0_i32_0 : i32, i32
  }
  func.func @transform_5(%arg0: i32, %arg1: i32) -> (i32, i32) {
    %c0_i32 = arith.constant 0 : i32
    %c0_i32_0 = arith.constant 0 : i32
    %c0_i32_1 = arith.constant 0 : i32
    return %c0_i32, %c0_i32_0 : i32, i32
  }
  func.func @transform_6(%arg0: i32, %arg1: i32) -> (i32, i32) {
    %c0_i32 = arith.constant 0 : i32
    %c0_i32_0 = arith.constant 0 : i32
    return %arg0, %c0_i32 : i32, i32
  }
}

module attributes {stable_mosaic.version = 11 : i64} {
  func.func @_stem_head_kernel(%arg0: i32, %arg1: memref<16x512xf32, #tpu.memory_space<vmem>>, %arg2: memref<512x256xf32, #tpu.memory_space<vmem>>, %arg3: memref<1x256xf32, #tpu.memory_space<vmem>>, %arg4: memref<256x256xf32, #tpu.memory_space<vmem>>, %arg5: memref<1x256xf32, #tpu.memory_space<vmem>>, %arg6: memref<256x128xf32, #tpu.memory_space<vmem>>, %arg7: memref<1x128xf32, #tpu.memory_space<vmem>>, %arg8: memref<16x128xf32, #tpu.memory_space<vmem>>) attributes {dimension_semantics = [#tpu.dimension_semantics<parallel>], iteration_bounds = array<i64: 1>, scalar_prefetch = 0 : i64, scratch_operands = 0 : i64, tpu.core_type = #tpu.core_type<tc>, window_params = [{transform_indices = @transform_0, window_bounds = array<i64: 16, 512>}, {pipeline_mode = #tpu.pipeline_mode<synchronous>, transform_indices = @transform_1, window_bounds = array<i64: 512, 256>}, {pipeline_mode = #tpu.pipeline_mode<synchronous>, transform_indices = @transform_2, window_bounds = array<i64: 1, 256>}, {pipeline_mode = #tpu.pipeline_mode<synchronous>, transform_indices = @transform_3, window_bounds = array<i64: 256, 256>}, {pipeline_mode = #tpu.pipeline_mode<synchronous>, transform_indices = @transform_4, window_bounds = array<i64: 1, 256>}, {pipeline_mode = #tpu.pipeline_mode<synchronous>, transform_indices = @transform_5, window_bounds = array<i64: 256, 128>}, {pipeline_mode = #tpu.pipeline_mode<synchronous>, transform_indices = @transform_6, window_bounds = array<i64: 1, 128>}, {transform_indices = @transform_7, window_bounds = array<i64: 16, 128>}]} {
    %c0 = arith.constant 0 : index
    %c0_0 = arith.constant 0 : index
    %0 = vector.load %arg1[%c0, %c0_0] : memref<16x512xf32, #tpu.memory_space<vmem>>, vector<16x512xf32>
    %c0_1 = arith.constant 0 : index
    %c0_2 = arith.constant 0 : index
    %1 = vector.load %arg2[%c0_1, %c0_2] : memref<512x256xf32, #tpu.memory_space<vmem>>, vector<512x256xf32>
    %cst = arith.constant dense<0.000000e+00> : vector<16x256xf32>
    %2 = tpu.matmul %0, %1, %cst {dimension_numbers = #tpu.dot_dimension_numbers<[1], [0], [0], [1], [0, 0, 1, 1], [], []>} : vector<16x512xf32>, vector<512x256xf32>, vector<16x256xf32> -> vector<16x256xf32>
    %c0_3 = arith.constant 0 : index
    %c0_4 = arith.constant 0 : index
    %3 = vector.load %arg3[%c0_3, %c0_4] : memref<1x256xf32, #tpu.memory_space<vmem>>, vector<1x256xf32>
    %4 = vector.broadcast %3 : vector<1x256xf32> to vector<16x256xf32>
    %5 = arith.addf %2, %4 : vector<16x256xf32>
    %cst_5 = arith.constant 0.00999999977 : f32
    %6 = vector.broadcast %cst_5 : f32 to vector<16x256xf32>
    %7 = arith.mulf %6, %5 : vector<16x256xf32>
    %8 = arith.maximumf %5, %7 : vector<16x256xf32>
    %c0_6 = arith.constant 0 : index
    %c0_7 = arith.constant 0 : index
    %9 = vector.load %arg4[%c0_6, %c0_7] : memref<256x256xf32, #tpu.memory_space<vmem>>, vector<256x256xf32>
    %cst_8 = arith.constant dense<0.000000e+00> : vector<16x256xf32>
    %10 = tpu.matmul %8, %9, %cst_8 {dimension_numbers = #tpu.dot_dimension_numbers<[1], [0], [0], [1], [0, 0, 1, 1], [], []>} : vector<16x256xf32>, vector<256x256xf32>, vector<16x256xf32> -> vector<16x256xf32>
    %c0_9 = arith.constant 0 : index
    %c0_10 = arith.constant 0 : index
    %11 = vector.load %arg5[%c0_9, %c0_10] : memref<1x256xf32, #tpu.memory_space<vmem>>, vector<1x256xf32>
    %12 = vector.broadcast %11 : vector<1x256xf32> to vector<16x256xf32>
    %13 = arith.addf %10, %12 : vector<16x256xf32>
    %cst_11 = arith.constant 0.00999999977 : f32
    %14 = vector.broadcast %cst_11 : f32 to vector<16x256xf32>
    %15 = arith.mulf %14, %13 : vector<16x256xf32>
    %16 = arith.maximumf %13, %15 : vector<16x256xf32>
    %c0_12 = arith.constant 0 : index
    %c0_13 = arith.constant 0 : index
    %17 = vector.load %arg6[%c0_12, %c0_13] : memref<256x128xf32, #tpu.memory_space<vmem>>, vector<256x128xf32>
    %cst_14 = arith.constant dense<0.000000e+00> : vector<16x128xf32>
    %18 = tpu.matmul %16, %17, %cst_14 {dimension_numbers = #tpu.dot_dimension_numbers<[1], [0], [0], [1], [0, 0, 1, 1], [], []>} : vector<16x256xf32>, vector<256x128xf32>, vector<16x128xf32> -> vector<16x128xf32>
    %c0_15 = arith.constant 0 : index
    %c0_16 = arith.constant 0 : index
    %19 = vector.load %arg7[%c0_15, %c0_16] : memref<1x128xf32, #tpu.memory_space<vmem>>, vector<1x128xf32>
    %20 = vector.broadcast %19 : vector<1x128xf32> to vector<16x128xf32>
    %21 = arith.addf %18, %20 : vector<16x128xf32>
    %c0_17 = arith.constant 0 : index
    %c0_18 = arith.constant 0 : index
    %22 = vector.load %arg8[%c0_17, %c0_18] : memref<16x128xf32, #tpu.memory_space<vmem>>, vector<16x128xf32>
    tpu.vector_store %arg8[%c0_17, %c0_18], %21 {strides = array<i32>} : memref<16x128xf32, #tpu.memory_space<vmem>>, vector<16x128xf32>,
    return
  }
  func.func @transform_0(%arg0: i32) -> (i32, i32) {
    %c0_i32 = arith.constant 0 : i32
    %c0_i32_0 = arith.constant 0 : i32
    return %arg0, %c0_i32 : i32, i32
  }
  func.func @transform_1(%arg0: i32) -> (i32, i32) {
    %c0_i32 = arith.constant 0 : i32
    %c0_i32_0 = arith.constant 0 : i32
    %c0_i32_1 = arith.constant 0 : i32
    return %c0_i32, %c0_i32_0 : i32, i32
  }
  func.func @transform_2(%arg0: i32) -> (i32, i32) {
    %c0_i32 = arith.constant 0 : i32
    %c0_i32_0 = arith.constant 0 : i32
    %c0_i32_1 = arith.constant 0 : i32
    return %c0_i32, %c0_i32_0 : i32, i32
  }
  func.func @transform_3(%arg0: i32) -> (i32, i32) {
    %c0_i32 = arith.constant 0 : i32
    %c0_i32_0 = arith.constant 0 : i32
    %c0_i32_1 = arith.constant 0 : i32
    return %c0_i32, %c0_i32_0 : i32, i32
  }
  func.func @transform_4(%arg0: i32) -> (i32, i32) {
    %c0_i32 = arith.constant 0 : i32
    %c0_i32_0 = arith.constant 0 : i32
    %c0_i32_1 = arith.constant 0 : i32
    return %c0_i32, %c0_i32_0 : i32, i32
  }
  func.func @transform_5(%arg0: i32) -> (i32, i32) {
    %c0_i32 = arith.constant 0 : i32
    %c0_i32_0 = arith.constant 0 : i32
    %c0_i32_1 = arith.constant 0 : i32
    return %c0_i32, %c0_i32_0 : i32, i32
  }
  func.func @transform_6(%arg0: i32) -> (i32, i32) {
    %c0_i32 = arith.constant 0 : i32
    %c0_i32_0 = arith.constant 0 : i32
    %c0_i32_1 = arith.constant 0 : i32
    return %c0_i32, %c0_i32_0 : i32, i32
  }
  func.func @transform_7(%arg0: i32) -> (i32, i32) {
    %c0_i32 = arith.constant 0 : i32
    %c0_i32_0 = arith.constant 0 : i32
    return %arg0, %c0_i32 : i32, i32
  }
}

module attributes {stable_mosaic.version = 11 : i64} {
  func.func @_mol_head_kernel(%arg0: i32, %arg1: memref<16x128xf32, #tpu.memory_space<vmem>>, %arg2: memref<128x256xf32, #tpu.memory_space<vmem>>, %arg3: memref<16x1xf32, #tpu.memory_space<vmem>>, %arg4: memref<256x256xf32, #tpu.memory_space<vmem>>, %arg5: memref<1x256xf32, #tpu.memory_space<vmem>>, %arg6: memref<256x128xf32, #tpu.memory_space<vmem>>, %arg7: memref<1x128xf32, #tpu.memory_space<vmem>>, %arg8: memref<16x128xf32, #tpu.memory_space<vmem>>, %arg9: memref<16x256xf32, #tpu.memory_space<vmem>>) attributes {dimension_semantics = [#tpu.dimension_semantics<arbitrary>], iteration_bounds = array<i64: 1>, scalar_prefetch = 0 : i64, scratch_operands = 1 : i64, tpu.core_type = #tpu.core_type<tc>, window_params = [{transform_indices = @transform_0, window_bounds = array<i64: 16, 128>}, {transform_indices = @transform_1, window_bounds = array<i64: 128, 256>}, {pipeline_mode = #tpu.pipeline_mode<synchronous>, transform_indices = @transform_2, window_bounds = array<i64: 16, 1>}, {pipeline_mode = #tpu.pipeline_mode<synchronous>, transform_indices = @transform_3, window_bounds = array<i64: 256, 256>}, {pipeline_mode = #tpu.pipeline_mode<synchronous>, transform_indices = @transform_4, window_bounds = array<i64: 1, 256>}, {pipeline_mode = #tpu.pipeline_mode<synchronous>, transform_indices = @transform_5, window_bounds = array<i64: 256, 128>}, {pipeline_mode = #tpu.pipeline_mode<synchronous>, transform_indices = @transform_6, window_bounds = array<i64: 1, 128>}, {pipeline_mode = #tpu.pipeline_mode<synchronous>, transform_indices = @transform_7, window_bounds = array<i64: 16, 128>}]} {
    %c0_i32 = arith.constant 0 : i32
    %0 = arith.cmpi eq, %arg0, %c0_i32 : i32
    %1 = arith.extui %0 : i1 to i32
    %c0_i32_0 = arith.constant 0 : i32
    %2 = arith.cmpi ne, %1, %c0_i32_0 : i32
    scf.if %2 {
      %cst_10 = arith.constant 0.000000e+00 : f32
      %12 = vector.broadcast %cst_10 : f32 to vector<16x256xf32>
      %c0_11 = arith.constant 0 : index
      %c0_12 = arith.constant 0 : index
      %13 = vector.load %arg9[%c0_11, %c0_12] : memref<16x256xf32, #tpu.memory_space<vmem>>, vector<16x256xf32>
      tpu.vector_store %arg9[%c0_11, %c0_12], %12 {strides = array<i32>} : memref<16x256xf32, #tpu.memory_space<vmem>>, vector<16x256xf32>,
    } else {
    }
    %c0 = arith.constant 0 : index
    %c0_1 = arith.constant 0 : index
    %3 = vector.load %arg9[%c0, %c0_1] : memref<16x256xf32, #tpu.memory_space<vmem>>, vector<16x256xf32>
    %c0_2 = arith.constant 0 : index
    %c0_3 = arith.constant 0 : index
    %4 = vector.load %arg1[%c0_2, %c0_3] : memref<16x128xf32, #tpu.memory_space<vmem>>, vector<16x128xf32>
    %c0_4 = arith.constant 0 : index
    %c0_5 = arith.constant 0 : index
    %5 = vector.load %arg2[%c0_4, %c0_5] : memref<128x256xf32, #tpu.memory_space<vmem>>, vector<128x256xf32>
    %cst = arith.constant dense<0.000000e+00> : vector<16x256xf32>
    %6 = tpu.matmul %4, %5, %cst {dimension_numbers = #tpu.dot_dimension_numbers<[1], [0], [0], [1], [0, 0, 1, 1], [], []>} : vector<16x128xf32>, vector<128x256xf32>, vector<16x256xf32> -> vector<16x256xf32>
    %7 = arith.addf %3, %6 : vector<16x256xf32>
    %c0_6 = arith.constant 0 : index
    %c0_7 = arith.constant 0 : index
    %8 = vector.load %arg9[%c0_6, %c0_7] : memref<16x256xf32, #tpu.memory_space<vmem>>, vector<16x256xf32>
    tpu.vector_store %arg9[%c0_6, %c0_7], %7 {strides = array<i32>} : memref<16x256xf32, #tpu.memory_space<vmem>>, vector<16x256xf32>,
    %c0_i32_8 = arith.constant 0 : i32
    %9 = arith.cmpi eq, %arg0, %c0_i32_8 : i32
    %10 = arith.extui %9 : i1 to i32
    %c0_i32_9 = arith.constant 0 : i32
    %11 = arith.cmpi ne, %10, %c0_i32_9 : i32
    scf.if %11 {
      %c0_10 = arith.constant 0 : index
      %c0_11 = arith.constant 0 : index
      %12 = vector.load %arg9[%c0_10, %c0_11] : memref<16x256xf32, #tpu.memory_space<vmem>>, vector<16x256xf32>
      %c0_12 = arith.constant 0 : index
      %c0_13 = arith.constant 0 : index
      %13 = vector.load %arg3[%c0_12, %c0_13] : memref<16x1xf32, #tpu.memory_space<vmem>>, vector<16x1xf32>
      %14 = vector.broadcast %13 : vector<16x1xf32> to vector<16x256xf32>
      %15 = arith.mulf %12, %14 : vector<16x256xf32>
      %c0_14 = arith.constant 0 : index
      %c0_15 = arith.constant 0 : index
      %16 = vector.load %arg4[%c0_14, %c0_15] : memref<256x256xf32, #tpu.memory_space<vmem>>, vector<256x256xf32>
      %cst_16 = arith.constant dense<0.000000e+00> : vector<16x256xf32>
      %17 = tpu.matmul %15, %16, %cst_16 {dimension_numbers = #tpu.dot_dimension_numbers<[1], [0], [0], [1], [0, 0, 1, 1], [], []>} : vector<16x256xf32>, vector<256x256xf32>, vector<16x256xf32> -> vector<16x256xf32>
      %c0_17 = arith.constant 0 : index
      %c0_18 = arith.constant 0 : index
      %18 = vector.load %arg5[%c0_17, %c0_18] : memref<1x256xf32, #tpu.memory_space<vmem>>, vector<1x256xf32>
      %19 = vector.broadcast %18 : vector<1x256xf32> to vector<16x256xf32>
      %20 = arith.addf %17, %19 : vector<16x256xf32>
      %cst_19 = arith.constant 0.00999999977 : f32
      %21 = vector.broadcast %cst_19 : f32 to vector<16x256xf32>
      %22 = arith.mulf %21, %20 : vector<16x256xf32>
      %23 = arith.maximumf %20, %22 : vector<16x256xf32>
      %c0_20 = arith.constant 0 : index
      %c0_21 = arith.constant 0 : index
      %24 = vector.load %arg6[%c0_20, %c0_21] : memref<256x128xf32, #tpu.memory_space<vmem>>, vector<256x128xf32>
      %cst_22 = arith.constant dense<0.000000e+00> : vector<16x128xf32>
      %25 = tpu.matmul %23, %24, %cst_22 {dimension_numbers = #tpu.dot_dimension_numbers<[1], [0], [0], [1], [0, 0, 1, 1], [], []>} : vector<16x256xf32>, vector<256x128xf32>, vector<16x128xf32> -> vector<16x128xf32>
      %c0_23 = arith.constant 0 : index
      %c0_24 = arith.constant 0 : index
      %26 = vector.load %arg7[%c0_23, %c0_24] : memref<1x128xf32, #tpu.memory_space<vmem>>, vector<1x128xf32>
      %27 = vector.broadcast %26 : vector<1x128xf32> to vector<16x128xf32>
      %28 = arith.addf %25, %27 : vector<16x128xf32>
      %c0_25 = arith.constant 0 : index
      %c0_26 = arith.constant 0 : index
      %29 = vector.load %arg8[%c0_25, %c0_26] : memref<16x128xf32, #tpu.memory_space<vmem>>, vector<16x128xf32>
      tpu.vector_store %arg8[%c0_25, %c0_26], %28 {strides = array<i32>} : memref<16x128xf32, #tpu.memory_space<vmem>>, vector<16x128xf32>,
    } else {
    }
    return
  }
  func.func @transform_0(%arg0: i32) -> (i32, i32) {
    %c0_i32 = arith.constant 0 : i32
    %c0_i32_0 = arith.constant 0 : i32
    return %c0_i32, %arg0 : i32, i32
  }
  func.func @transform_1(%arg0: i32) -> (i32, i32) {
    %c0_i32 = arith.constant 0 : i32
    %c0_i32_0 = arith.constant 0 : i32
    return %arg0, %c0_i32 : i32, i32
  }
  func.func @transform_2(%arg0: i32) -> (i32, i32) {
    %c0_i32 = arith.constant 0 : i32
    %c0_i32_0 = arith.constant 0 : i32
    %c0_i32_1 = arith.constant 0 : i32
    return %c0_i32, %c0_i32_0 : i32, i32
  }
  func.func @transform_3(%arg0: i32) -> (i32, i32) {
    %c0_i32 = arith.constant 0 : i32
    %c0_i32_0 = arith.constant 0 : i32
    %c0_i32_1 = arith.constant 0 : i32
    return %c0_i32, %c0_i32_0 : i32, i32
  }
  func.func @transform_4(%arg0: i32) -> (i32, i32) {
    %c0_i32 = arith.constant 0 : i32
    %c0_i32_0 = arith.constant 0 : i32
    %c0_i32_1 = arith.constant 0 : i32
    return %c0_i32, %c0_i32_0 : i32, i32
  }
  func.func @transform_5(%arg0: i32) -> (i32, i32) {
    %c0_i32 = arith.constant 0 : i32
    %c0_i32_0 = arith.constant 0 : i32
    %c0_i32_1 = arith.constant 0 : i32
    return %c0_i32, %c0_i32_0 : i32, i32
  }
  func.func @transform_6(%arg0: i32) -> (i32, i32) {
    %c0_i32 = arith.constant 0 : i32
    %c0_i32_0 = arith.constant 0 : i32
    %c0_i32_1 = arith.constant 0 : i32
    return %c0_i32, %c0_i32_0 : i32, i32
  }
  func.func @transform_7(%arg0: i32) -> (i32, i32) {
    %c0_i32 = arith.constant 0 : i32
    %c0_i32_0 = arith.constant 0 : i32
    %c0_i32_1 = arith.constant 0 : i32
    return %c0_i32, %c0_i32_0 : i32, i32
  }
}

</mosaic_0001>

<llo_original>
// kernel: graph_agent_forward.4
$region0: #{graph_agent_forward.4}
  #allocation0 [shape = 'u32[]', space=smem, size = 0x4, offset = 0x4, fixed_abs, tag = 'smem constant byte address 0x4 - core index']
  #allocation1 [shape = 'u32[72,128]{1,0:T(1,128)}', space=vmem, size = 0x9000, scoped, tag = 'internal scratch']
  %s0 = inlined_call_operand.vmem [shape: f32[128,256], index: 0, kind: input, shape index: {}]
  %s1 = inlined_call_operand.vmem [shape: f32[256,256], index: 1, kind: input, shape index: {}]
  %s2 = inlined_call_operand.vmem [shape: f32[1,256], index: 2, kind: input, shape index: {}]
  %s3 = inlined_call_operand.vmem [shape: f32[256,256], index: 3, kind: input, shape index: {}]
  %s4 = inlined_call_operand.vmem [shape: f32[1,256], index: 4, kind: input, shape index: {}]
  %s5 = inlined_call_operand.vmem [shape: f32[256,256], index: 5, kind: input, shape index: {}]
  %s6 = inlined_call_operand.vmem [shape: f32[1,256], index: 6, kind: input, shape index: {}]
  %s7 = inlined_call_operand.vmem [shape: f32[128,256], index: 7, kind: output, shape index: {0}]
  %s8 = inlined_call_operand.vmem [shape: f32[128,256], index: 8, kind: output, shape index: {1}]
  %9 = xla_tuple %s7, %s8
  %s10 = sld [smem:[#allocation0]]
  $region46: #{graph_agent_forward.4} parent=0
    _
  %s12 = ssub.s32 1, %s10
  %s13 = scalar_select 0, %s12, %s10
  // Predicated region
  $region2: #{graph_agent_forward.4} parent=0 // pred_check
    _
  $region3: #{graph_agent_forward.4} parent=0 // pred_check_branch
    %15 = sbr.rel (0) target = $region5
  $region4: #{graph_agent_forward.4} parent=0 // pred_region
    _
  $region5: #{graph_agent_forward.4} parent=0 // pred_fallthru
    _
  // Predicated region
  $region6: #{graph_agent_forward.4} parent=0 // pred_check
    _
  $region7: #{graph_agent_forward.4} parent=0 // pred_check_branch
    %17 = sbr.rel (0) target = $region9
  $region8: #{graph_agent_forward.4} parent=0 // pred_region
    _
  $region9: #{graph_agent_forward.4} parent=0 // pred_fallthru
    _
  // Predicated region
  $region10: #{graph_agent_forward.4} parent=0 // pred_check
    _
  $region11: #{graph_agent_forward.4} parent=0 // pred_check_branch
    %19 = sbr.rel (0) target = $region13
  $region12: #{graph_agent_forward.4} parent=0 // pred_region
    _
  $region13: #{graph_agent_forward.4} parent=0 // pred_fallthru
    _
  // Predicated region
  $region14: #{graph_agent_forward.4} parent=0 // pred_check
    _
  $region15: #{graph_agent_forward.4} parent=0 // pred_check_branch
    %21 = sbr.rel (0) target = $region17
  $region16: #{graph_agent_forward.4} parent=0 // pred_region
    _
  $region17: #{graph_agent_forward.4} parent=0 // pred_fallthru
    _
  // Predicated region
  $region18: #{graph_agent_forward.4} parent=0 // pred_check
    _
  $region19: #{graph_agent_forward.4} parent=0 // pred_check_branch
    %23 = sbr.rel (0) target = $region21
  $region20: #{graph_agent_forward.4} parent=0 // pred_region
    _
  $region21: #{graph_agent_forward.4} parent=0 // pred_fallthru
    _
  // Predicated region
  $region22: #{graph_agent_forward.4} parent=0 // pred_check
    _
  $region23: #{graph_agent_forward.4} parent=0 // pred_check_branch
    %25 = sbr.rel (0) target = $region25
  $region24: #{graph_agent_forward.4} parent=0 // pred_region
    _
  $region25: #{graph_agent_forward.4} parent=0 // pred_fallthru
    _
  // Predicated region
  $region26: #{graph_agent_forward.4} parent=0 // pred_check
    _
  $region27: #{graph_agent_forward.4} parent=0 // pred_check_branch
    %27 = sbr.rel (0) target = $region29
  $region28: #{graph_agent_forward.4} parent=0 // pred_region
    _
  $region29: #{graph_agent_forward.4} parent=0 // pred_fallthru
    _
  %v28 = vld [vmem:[%s0] sm:$0xff]
  %v29 = vld [vmem:[%s0 + $0x8] sm:$0xff]
  %v30 = vld [vmem:[%s0 + $0x10] sm:$0xff]
  %v31 = vld [vmem:[%s0 + $0x18] sm:$0xff]
  %v32 = vld [vmem:[%s0 + $0x20] sm:$0xff]
  %v33 = vld [vmem:[%s0 + $0x28] sm:$0xff]
  %v34 = vld [vmem:[%s0 + $0x30] sm:$0xff]
  %v35 = vld [vmem:[%s0 + $0x38] sm:$0xff]
  %v36 = vld [vmem:[%s0 + $0x40] sm:$0xff]
  %v37 = vld [vmem:[%s0 + $0x48] sm:$0xff]
  %v38 = vld [vmem:[%s0 + $0x50] sm:$0xff]
  %v39 = vld [vmem:[%s0 + $0x58] sm:$0xff]
  %v40 = vld [vmem:[%s0 + $0x60] sm:$0xff]
  %v41 = vld [vmem:[%s0 + $0x68] sm:$0xff]
  %v42 = vld [vmem:[%s0 + $0x70] sm:$0xff]
  %v43 = vld [vmem:[%s0 + $0x78] sm:$0xff]
  %v44 = vld [vmem:[%s0 + $0x80] sm:$0xff]
  %v45 = vld [vmem:[%s0 + $0x88] sm:$0xff]
  %v46 = vld [vmem:[%s0 + $0x90] sm:$0xff]
  %v47 = vld [vmem:[%s0 + $0x98] sm:$0xff]
  %v48 = vld [vmem:[%s0 + $0xa0] sm:$0xff]
  %v49 = vld [vmem:[%s0 + $0xa8] sm:$0xff]
  %v50 = vld [vmem:[%s0 + $0xb0] sm:$0xff]
  %v51 = vld [vmem:[%s0 + $0xb8] sm:$0xff]
  %v52 = vld [vmem:[%s0 + $0xc0] sm:$0xff]
  %v53 = vld [vmem:[%s0 + $0xc8] sm:$0xff]
  %v54 = vld [vmem:[%s0 + $0xd0] sm:$0xff]
  %v55 = vld [vmem:[%s0 + $0xd8] sm:$0xff]
  %v56 = vld [vmem:[%s0 + $0xe0] sm:$0xff]
  %v57 = vld [vmem:[%s0 + $0xe8] sm:$0xff]
  %v58 = vld [vmem:[%s0 + $0xf0] sm:$0xff]
  %v59 = vld [vmem:[%s0 + $0xf8] sm:$0xff]
  %v60 = vld [vmem:[%s1] sm:$0xff]
  %v61 = vld [vmem:[%s1 + $0x8] sm:$0xff]
  %v62 = vld [vmem:[%s1 + $0x10] sm:$0xff]
  %v63 = vld [vmem:[%s1 + $0x18] sm:$0xff]
  %v64 = vld [vmem:[%s1 + $0x20] sm:$0xff]
  %v65 = vld [vmem:[%s1 + $0x28] sm:$0xff]
  %v66 = vld [vmem:[%s1 + $0x30] sm:$0xff]
  %v67 = vld [vmem:[%s1 + $0x38] sm:$0xff]
  %v68 = vld [vmem:[%s1 + $0x40] sm:$0xff]
  %v69 = vld [vmem:[%s1 + $0x48] sm:$0xff]
  %v70 = vld [vmem:[%s1 + $0x50] sm:$0xff]
  %v71 = vld [vmem:[%s1 + $0x58] sm:$0xff]
  %v72 = vld [vmem:[%s1 + $0x60] sm:$0xff]
  %v73 = vld [vmem:[%s1 + $0x68] sm:$0xff]
  %v74 = vld [vmem:[%s1 + $0x70] sm:$0xff]
  %v75 = vld [vmem:[%s1 + $0x78] sm:$0xff]
  %v76 = vld [vmem:[%s1 + $0x80] sm:$0xff]
  %v77 = vld [vmem:[%s1 + $0x88] sm:$0xff]
  %v78 = vld [vmem:[%s1 + $0x90] sm:$0xff]
  %v79 = vld [vmem:[%s1 + $0x98] sm:$0xff]
  %v80 = vld [vmem:[%s1 + $0xa0] sm:$0xff]
  %v81 = vld [vmem:[%s1 + $0xa8] sm:$0xff]
  %v82 = vld [vmem:[%s1 + $0xb0] sm:$0xff]
  %v83 = vld [vmem:[%s1 + $0xb8] sm:$0xff]
  %v84 = vld [vmem:[%s1 + $0xc0] sm:$0xff]
  %v85 = vld [vmem:[%s1 + $0xc8] sm:$0xff]
  %v86 = vld [vmem:[%s1 + $0xd0] sm:$0xff]
  %v87 = vld [vmem:[%s1 + $0xd8] sm:$0xff]
  %v88 = vld [vmem:[%s1 + $0xe0] sm:$0xff]
  %v89 = vld [vmem:[%s1 + $0xe8] sm:$0xff]
  %v90 = vld [vmem:[%s1 + $0xf0] sm:$0xff]
  %v91 = vld [vmem:[%s1 + $0xf8] sm:$0xff]
  %v92 = vld [vmem:[%s1 + $0x100] sm:$0xff]
  %v93 = vld [vmem:[%s1 + $0x108] sm:$0xff]
  %v94 = vld [vmem:[%s1 + $0x110] sm:$0xff]
  %v95 = vld [vmem:[%s1 + $0x118] sm:$0xff]
  %v96 = vld [vmem:[%s1 + $0x120] sm:$0xff]
  %v97 = vld [vmem:[%s1 + $0x128] sm:$0xff]
  %v98 = vld [vmem:[%s1 + $0x130] sm:$0xff]
  %v99 = vld [vmem:[%s1 + $0x138] sm:$0xff]
  %v100 = vld [vmem:[%s1 + $0x140] sm:$0xff]
  %v101 = vld [vmem:[%s1 + $0x148] sm:$0xff]
  %v102 = vld [vmem:[%s1 + $0x150] sm:$0xff]
  %v103 = vld [vmem:[%s1 + $0x158] sm:$0xff]
  %v104 = vld [vmem:[%s1 + $0x160] sm:$0xff]
  %v105 = vld [vmem:[%s1 + $0x168] sm:$0xff]
  %v106 = vld [vmem:[%s1 + $0x170] sm:$0xff]
  %v107 = vld [vmem:[%s1 + $0x178] sm:$0xff]
  %v108 = vld [vmem:[%s1 + $0x180] sm:$0xff]
  %v109 = vld [vmem:[%s1 + $0x188] sm:$0xff]
  %v110 = vld [vmem:[%s1 + $0x190] sm:$0xff]
  %v111 = vld [vmem:[%s1 + $0x198] sm:$0xff]
  %v112 = vld [vmem:[%s1 + $0x1a0] sm:$0xff]
  %v113 = vld [vmem:[%s1 + $0x1a8] sm:$0xff]
  %v114 = vld [vmem:[%s1 + $0x1b0] sm:$0xff]
  %v115 = vld [vmem:[%s1 + $0x1b8] sm:$0xff]
  %v116 = vld [vmem:[%s1 + $0x1c0] sm:$0xff]
  %v117 = vld [vmem:[%s1 + $0x1c8] sm:$0xff]
  %v118 = vld [vmem:[%s1 + $0x1d0] sm:$0xff]
  %v119 = vld [vmem:[%s1 + $0x1d8] sm:$0xff]
  %v120 = vld [vmem:[%s1 + $0x1e0] sm:$0xff]
  %v121 = vld [vmem:[%s1 + $0x1e8] sm:$0xff]
  %v122 = vld [vmem:[%s1 + $0x1f0] sm:$0xff]
  %v123 = vld [vmem:[%s1 + $0x1f8] sm:$0xff]
  %v124 = vld [vmem:[%s2] sm:$0x3]
  %v126 = vperm.slane %v124, 0
  %v127 = vperm.slane %v124, 1
  %130 = vmatpush.msra.mxu0 %v90
  %131 = vmatpush.msra.mxu0 %v88
  %132 = vmatpush.msra.mxu0 %v86
  %133 = vmatpush.msra.mxu0 %v84
  %134 = vmatpush.msra.mxu0 %v82
  %135 = vmatpush.msra.mxu0 %v80
  %136 = vmatpush.msra.mxu0 %v78
  %137 = vmatpush.msra.mxu0 %v76
  %138 = vmatpush.msra.mxu0 %v74
  %139 = vmatpush.msra.mxu0 %v72
  %140 = vmatpush.msra.mxu0 %v70
  %141 = vmatpush.msra.mxu0 %v68
  %142 = vmatpush.msra.mxu0 %v66
  %143 = vmatpush.msra.mxu0 %v64
  %144 = vmatpush.msra.mxu0 %v62
  %145 = vmatpush.msra.mxu0 %v60
  %146 = vmatmul.f32.gmra.mxu0 %v28
  %v147 = vpop.f32.mrf.mxu0
  %v148 = vadd.f32 %v126, %v147
  %149 = vmatmul.f32.gmra.mxu0 %v30
  %v150 = vpop.f32.mrf.mxu0
  %v151 = vadd.f32 %v126, %v150
  %152 = vmatmul.f32.gmra.mxu0 %v32
  %v153 = vpop.f32.mrf.mxu0
  %v154 = vadd.f32 %v126, %v153
  %155 = vmatmul.f32.gmra.mxu0 %v34
  %v156 = vpop.f32.mrf.mxu0
  %v157 = vadd.f32 %v126, %v156
  %158 = vmatmul.f32.gmra.mxu0 %v36
  %v159 = vpop.f32.mrf.mxu0
  %v160 = vadd.f32 %v126, %v159
  %161 = vmatmul.f32.gmra.mxu0 %v38
  %v162 = vpop.f32.mrf.mxu0
  %v163 = vadd.f32 %v126, %v162
  %164 = vmatmul.f32.gmra.mxu0 %v40
  %v165 = vpop.f32.mrf.mxu0
  %v166 = vadd.f32 %v126, %v165
  %167 = vmatmul.f32.gmra.mxu0 %v42
  %v168 = vpop.f32.mrf.mxu0
  %v169 = vadd.f32 %v126, %v168
  %170 = vmatmul.f32.gmra.mxu0 %v44
  %v171 = vpop.f32.mrf.mxu0
  %v172 = vadd.f32 %v126, %v171
  %173 = vmatmul.f32.gmra.mxu0 %v46
  %v174 = vpop.f32.mrf.mxu0
  %v175 = vadd.f32 %v126, %v174
  %176 = vmatmul.f32.gmra.mxu0 %v48
  %v177 = vpop.f32.mrf.mxu0
  %v178 = vadd.f32 %v126, %v177
  %179 = vmatmul.f32.gmra.mxu0 %v50
  %v180 = vpop.f32.mrf.mxu0
  %v181 = vadd.f32 %v126, %v180
  %182 = vmatmul.f32.gmra.mxu0 %v52
  %v183 = vpop.f32.mrf.mxu0
  %v184 = vadd.f32 %v126, %v183
  %185 = vmatmul.f32.gmra.mxu0 %v54
  %v186 = vpop.f32.mrf.mxu0
  %v187 = vadd.f32 %v126, %v186
  %188 = vmatmul.f32.gmra.mxu0 %v56
  %v189 = vpop.f32.mrf.mxu0
  %v190 = vadd.f32 %v126, %v189
  %191 = vmatmul.f32.gmra.mxu0 %v58
  %v192 = vpop.f32.mrf.mxu0
  %v193 = vadd.f32 %v126, %v192
  %194 = vdwg.mxu0
  %195 = vmatpush.msra.mxu0 %v122
  %196 = vmatpush.msra.mxu0 %v120
  %197 = vmatpush.msra.mxu0 %v118
  %198 = vmatpush.msra.mxu0 %v116
  %199 = vmatpush.msra.mxu0 %v114
  %200 = vmatpush.msra.mxu0 %v112
  %201 = vmatpush.msra.mxu0 %v110
  %202 = vmatpush.msra.mxu0 %v108
  %203 = vmatpush.msra.mxu0 %v106
  %204 = vmatpush.msra.mxu0 %v104
  %205 = vmatpush.msra.mxu0 %v102
  %206 = vmatpush.msra.mxu0 %v100
  %207 = vmatpush.msra.mxu0 %v98
  %208 = vmatpush.msra.mxu0 %v96
  %209 = vmatpush.msra.mxu0 %v94
  %210 = vmatpush.msra.mxu0 %v92
  %211 = vmatmul.f32.gmra.mxu0 %v29
  %v212 = vpop.f32.mrf.mxu0
  %v213 = vadd.f32 %v148, %v212
  %214 = vmatmul.f32.gmra.mxu0 %v31
  %v215 = vpop.f32.mrf.mxu0
  %v216 = vadd.f32 %v151, %v215
  %217 = vmatmul.f32.gmra.mxu0 %v33
  %v218 = vpop.f32.mrf.mxu0
  %v219 = vadd.f32 %v154, %v218
  %220 = vmatmul.f32.gmra.mxu0 %v35
  %v221 = vpop.f32.mrf.mxu0
  %v222 = vadd.f32 %v157, %v221
  %223 = vmatmul.f32.gmra.mxu0 %v37
  %v224 = vpop.f32.mrf.mxu0
  %v225 = vadd.f32 %v160, %v224
  %226 = vmatmul.f32.gmra.mxu0 %v39
  %v227 = vpop.f32.mrf.mxu0
  %v228 = vadd.f32 %v163, %v227
  %229 = vmatmul.f32.gmra.mxu0 %v41
  %v230 = vpop.f32.mrf.mxu0
  %v231 = vadd.f32 %v166, %v230
  %232 = vmatmul.f32.gmra.mxu0 %v43
  %v233 = vpop.f32.mrf.mxu0
  %v234 = vadd.f32 %v169, %v233
  %235 = vmatmul.f32.gmra.mxu0 %v45
  %v236 = vpop.f32.mrf.mxu0
  %v237 = vadd.f32 %v172, %v236
  %238 = vmatmul.f32.gmra.mxu0 %v47
  %v239 = vpop.f32.mrf.mxu0
  %v240 = vadd.f32 %v175, %v239
  %241 = vmatmul.f32.gmra.mxu0 %v49
  %v242 = vpop.f32.mrf.mxu0
  %v243 = vadd.f32 %v178, %v242
  %244 = vmatmul.f32.gmra.mxu0 %v51
  %v245 = vpop.f32.mrf.mxu0
  %v246 = vadd.f32 %v181, %v245
  %247 = vmatmul.f32.gmra.mxu0 %v53
  %v248 = vpop.f32.mrf.mxu0
  %v249 = vadd.f32 %v184, %v248
  %250 = vmatmul.f32.gmra.mxu0 %v55
  %v251 = vpop.f32.mrf.mxu0
  %v252 = vadd.f32 %v187, %v251
  %253 = vmatmul.f32.gmra.mxu0 %v57
  %v254 = vpop.f32.mrf.mxu0
  %v255 = vadd.f32 %v190, %v254
  %256 = vmatmul.f32.gmra.mxu0 %v59
  %v257 = vpop.f32.mrf.mxu0
  %v258 = vadd.f32 %v193, %v257
  %259 = vdwg.mxu0
  %260 = vmatpush.msra.mxu0 %v91
  %261 = vmatpush.msra.mxu0 %v89
  %262 = vmatpush.msra.mxu0 %v87
  %263 = vmatpush.msra.mxu0 %v85
  %264 = vmatpush.msra.mxu0 %v83
  %265 = vmatpush.msra.mxu0 %v81
  %266 = vmatpush.msra.mxu0 %v79
  %267 = vmatpush.msra.mxu0 %v77
  %268 = vmatpush.msra.mxu0 %v75
  %269 = vmatpush.msra.mxu0 %v73
  %270 = vmatpush.msra.mxu0 %v71
  %271 = vmatpush.msra.mxu0 %v69
  %272 = vmatpush.msra.mxu0 %v67
  %273 = vmatpush.msra.mxu0 %v65
  %274 = vmatpush.msra.mxu0 %v63
  %275 = vmatpush.msra.mxu0 %v61
  %276 = vmatmul.f32.gmra.mxu0 %v28
  %v277 = vpop.f32.mrf.mxu0
  %v278 = vadd.f32 %v127, %v277
  %279 = vmatmul.f32.gmra.mxu0 %v30
  %v280 = vpop.f32.mrf.mxu0
  %v281 = vadd.f32 %v127, %v280
  %282 = vmatmul.f32.gmra.mxu0 %v32
  %v283 = vpop.f32.mrf.mxu0
  %v284 = vadd.f32 %v127, %v283
  %285 = vmatmul.f32.gmra.mxu0 %v34
  %v286 = vpop.f32.mrf.mxu0
  %v287 = vadd.f32 %v127, %v286
  %288 = vmatmul.f32.gmra.mxu0 %v36
  %v289 = vpop.f32.mrf.mxu0
  %v290 = vadd.f32 %v127, %v289
  %291 = vmatmul.f32.gmra.mxu0 %v38
  %v292 = vpop.f32.mrf.mxu0
  %v293 = vadd.f32 %v127, %v292
  %294 = vmatmul.f32.gmra.mxu0 %v40
  %v295 = vpop.f32.mrf.mxu0
  %v296 = vadd.f32 %v127, %v295
  %297 = vmatmul.f32.gmra.mxu0 %v42
  %v298 = vpop.f32.mrf.mxu0
  %v299 = vadd.f32 %v127, %v298
  %300 = vmatmul.f32.gmra.mxu0 %v44
  %v301 = vpop.f32.mrf.mxu0
  %v302 = vadd.f32 %v127, %v301
  %303 = vmatmul.f32.gmra.mxu0 %v46
  %v304 = vpop.f32.mrf.mxu0
  %v305 = vadd.f32 %v127, %v304
  %306 = vmatmul.f32.gmra.mxu0 %v48
  %v307 = vpop.f32.mrf.mxu0
  %v308 = vadd.f32 %v127, %v307
  %309 = vmatmul.f32.gmra.mxu0 %v50
  %v310 = vpop.f32.mrf.mxu0
  %v311 = vadd.f32 %v127, %v310
  %312 = vmatmul.f32.gmra.mxu0 %v52
  %v313 = vpop.f32.mrf.mxu0
  %v314 = vadd.f32 %v127, %v313
  %315 = vmatmul.f32.gmra.mxu0 %v54
  %v316 = vpop.f32.mrf.mxu0
  %v317 = vadd.f32 %v127, %v316
  %318 = vmatmul.f32.gmra.mxu0 %v56
  %v319 = vpop.f32.mrf.mxu0
  %v320 = vadd.f32 %v127, %v319
  %321 = vmatmul.f32.gmra.mxu0 %v58
  %v322 = vpop.f32.mrf.mxu0
  %v323 = vadd.f32 %v127, %v322
  %324 = vdwg.mxu0
  %325 = vmatpush.msra.mxu0 %v123
  %326 = vmatpush.msra.mxu0 %v121
  %327 = vmatpush.msra.mxu0 %v119
  %328 = vmatpush.msra.mxu0 %v117
  %329 = vmatpush.msra.mxu0 %v115
  %330 = vmatpush.msra.mxu0 %v113
  %331 = vmatpush.msra.mxu0 %v111
  %332 = vmatpush.msra.mxu0 %v109
  %333 = vmatpush.msra.mxu0 %v107
  %334 = vmatpush.msra.mxu0 %v105
  %335 = vmatpush.msra.mxu0 %v103
  %336 = vmatpush.msra.mxu0 %v101
  %337 = vmatpush.msra.mxu0 %v99
  %338 = vmatpush.msra.mxu0 %v97
  %339 = vmatpush.msra.mxu0 %v95
  %340 = vmatpush.msra.mxu0 %v93
  %341 = vmatmul.f32.gmra.mxu0 %v29
  %v342 = vpop.f32.mrf.mxu0
  %v343 = vadd.f32 %v278, %v342
  %344 = vmatmul.f32.gmra.mxu0 %v31
  %v345 = vpop.f32.mrf.mxu0
  %v346 = vadd.f32 %v281, %v345
  %347 = vmatmul.f32.gmra.mxu0 %v33
  %v348 = vpop.f32.mrf.mxu0
  %v349 = vadd.f32 %v284, %v348
  %350 = vmatmul.f32.gmra.mxu0 %v35
  %v351 = vpop.f32.mrf.mxu0
  %v352 = vadd.f32 %v287, %v351
  %353 = vmatmul.f32.gmra.mxu0 %v37
  %v354 = vpop.f32.mrf.mxu0
  %v355 = vadd.f32 %v290, %v354
  %356 = vmatmul.f32.gmra.mxu0 %v39
  %v357 = vpop.f32.mrf.mxu0
  %v358 = vadd.f32 %v293, %v357
  %359 = vmatmul.f32.gmra.mxu0 %v41
  %v360 = vpop.f32.mrf.mxu0
  %v361 = vadd.f32 %v296, %v360
  %362 = vmatmul.f32.gmra.mxu0 %v43
  %v363 = vpop.f32.mrf.mxu0
  %v364 = vadd.f32 %v299, %v363
  %365 = vmatmul.f32.gmra.mxu0 %v45
  %v366 = vpop.f32.mrf.mxu0
  %v367 = vadd.f32 %v302, %v366
  %368 = vmatmul.f32.gmra.mxu0 %v47
  %v369 = vpop.f32.mrf.mxu0
  %v370 = vadd.f32 %v305, %v369
  %371 = vmatmul.f32.gmra.mxu0 %v49
  %v372 = vpop.f32.mrf.mxu0
  %v373 = vadd.f32 %v308, %v372
  %374 = vmatmul.f32.gmra.mxu0 %v51
  %v375 = vpop.f32.mrf.mxu0
  %v376 = vadd.f32 %v311, %v375
  %377 = vmatmul.f32.gmra.mxu0 %v53
  %v378 = vpop.f32.mrf.mxu0
  %v379 = vadd.f32 %v314, %v378
  %380 = vmatmul.f32.gmra.mxu0 %v55
  %v381 = vpop.f32.mrf.mxu0
  %v382 = vadd.f32 %v317, %v381
  %383 = vmatmul.f32.gmra.mxu0 %v57
  %v384 = vpop.f32.mrf.mxu0
  %v385 = vadd.f32 %v320, %v384
  %386 = vmatmul.f32.gmra.mxu0 %v59
  %v387 = vpop.f32.mrf.mxu0
  %v388 = vadd.f32 %v323, %v387
  %389 = vdwg.mxu0
  %v390 = vmul.f32 %v213, 0.01
  %v391 = vmul.f32 %v343, 0.01
  %v392 = vmul.f32 %v216, 0.01
  %v393 = vmul.f32 %v346, 0.01
  %v394 = vmul.f32 %v219, 0.01
  %v395 = vmul.f32 %v349, 0.01
  %v396 = vmul.f32 %v222, 0.01
  %v397 = vmul.f32 %v352, 0.01
  %v398 = vmul.f32 %v225, 0.01
  %v399 = vmul.f32 %v355, 0.01
  %v400 = vmul.f32 %v228, 0.01
  %v401 = vmul.f32 %v358, 0.01
  %v402 = vmul.f32 %v231, 0.01
  %v403 = vmul.f32 %v361, 0.01
  %v404 = vmul.f32 %v234, 0.01
  %v405 = vmul.f32 %v364, 0.01
  %v406 = vmul.f32 %v237, 0.01
  %v407 = vmul.f32 %v367, 0.01
  %v408 = vmul.f32 %v240, 0.01
  %v409 = vmul.f32 %v370, 0.01
  %v410 = vmul.f32 %v243, 0.01
  %v411 = vmul.f32 %v373, 0.01
  %v412 = vmul.f32 %v246, 0.01
  %v413 = vmul.f32 %v376, 0.01
  %v414 = vmul.f32 %v249, 0.01
  %v415 = vmul.f32 %v379, 0.01
  %v416 = vmul.f32 %v252, 0.01
  %v417 = vmul.f32 %v382, 0.01
  %v418 = vmul.f32 %v255, 0.01
  %v419 = vmul.f32 %v385, 0.01
  %v420 = vmul.f32 %v258, 0.01
  %v421 = vmul.f32 %v388, 0.01
  %v422 = vmax.f32 %v213, %v390
  %v423 = vmax.f32 %v343, %v391
  %v424 = vmax.f32 %v216, %v392
  %v425 = vmax.f32 %v346, %v393
  %v426 = vmax.f32 %v219, %v394
  %v427 = vmax.f32 %v349, %v395
  %v428 = vmax.f32 %v222, %v396
  %v429 = vmax.f32 %v352, %v397
  %v430 = vmax.f32 %v225, %v398
  %v431 = vmax.f32 %v355, %v399
  %v432 = vmax.f32 %v228, %v400
  %v433 = vmax.f32 %v358, %v401
  %v434 = vmax.f32 %v231, %v402
  %v435 = vmax.f32 %v361, %v403
  %v436 = vmax.f32 %v234, %v404
  %v437 = vmax.f32 %v364, %v405
  %v438 = vmax.f32 %v237, %v406
  %v439 = vmax.f32 %v367, %v407
  %v440 = vmax.f32 %v240, %v408
  %v441 = vmax.f32 %v370, %v409
  %v442 = vmax.f32 %v243, %v410
  %v443 = vmax.f32 %v373, %v411
  %v444 = vmax.f32 %v246, %v412
  %v445 = vmax.f32 %v376, %v413
  %v446 = vmax.f32 %v249, %v414
  %v447 = vmax.f32 %v379, %v415
  %v448 = vmax.f32 %v252, %v416
  %v449 = vmax.f32 %v382, %v417
  %v450 = vmax.f32 %v255, %v418
  %v451 = vmax.f32 %v385, %v419
  %v452 = vmax.f32 %v258, %v420
  %v453 = vmax.f32 %v388, %v421
  %v454 = vld [vmem:[%s3] sm:$0xff]
  %v455 = vld [vmem:[%s3 + $0x8] sm:$0xff]
  %v456 = vld [vmem:[%s3 + $0x10] sm:$0xff]
  %v457 = vld [vmem:[%s3 + $0x18] sm:$0xff]
  %v458 = vld [vmem:[%s3 + $0x20] sm:$0xff]
  %v459 = vld [vmem:[%s3 + $0x28] sm:$0xff]
  %v460 = vld [vmem:[%s3 + $0x30] sm:$0xff]
  %v461 = vld [vmem:[%s3 + $0x38] sm:$0xff]
  %v462 = vld [vmem:[%s3 + $0x40] sm:$0xff]
  %v463 = vld [vmem:[%s3 + $0x48] sm:$0xff]
  %v464 = vld [vmem:[%s3 + $0x50] sm:$0xff]
  %v465 = vld [vmem:[%s3 + $0x58] sm:$0xff]
  %v466 = vld [vmem:[%s3 + $0x60] sm:$0xff]
  %v467 = vld [vmem:[%s3 + $0x68] sm:$0xff]
  %v468 = vld [vmem:[%s3 + $0x70] sm:$0xff]
  %v469 = vld [vmem:[%s3 + $0x78] sm:$0xff]
  %v470 = vld [vmem:[%s3 + $0x80] sm:$0xff]
  %v471 = vld [vmem:[%s3 + $0x88] sm:$0xff]
  %v472 = vld [vmem:[%s3 + $0x90] sm:$0xff]
  %v473 = vld [vmem:[%s3 + $0x98] sm:$0xff]
  %v474 = vld [vmem:[%s3 + $0xa0] sm:$0xff]
  %v475 = vld [vmem:[%s3 + $0xa8] sm:$0xff]
  %v476 = vld [vmem:[%s3 + $0xb0] sm:$0xff]
  %v477 = vld [vmem:[%s3 + $0xb8] sm:$0xff]
  %v478 = vld [vmem:[%s3 + $0xc0] sm:$0xff]
  %v479 = vld [vmem:[%s3 + $0xc8] sm:$0xff]
  %v480 = vld [vmem:[%s3 + $0xd0] sm:$0xff]
  %v481 = vld [vmem:[%s3 + $0xd8] sm:$0xff]
  %v482 = vld [vmem:[%s3 + $0xe0] sm:$0xff]
  %v483 = vld [vmem:[%s3 + $0xe8] sm:$0xff]
  %v484 = vld [vmem:[%s3 + $0xf0] sm:$0xff]
  %v485 = vld [vmem:[%s3 + $0xf8] sm:$0xff]
  %v486 = vld [vmem:[%s3 + $0x100] sm:$0xff]
  %v487 = vld [vmem:[%s3 + $0x108] sm:$0xff]
  %v488 = vld [vmem:[%s3 + $0x110] sm:$0xff]
  %v489 = vld [vmem:[%s3 + $0x118] sm:$0xff]
  %v490 = vld [vmem:[%s3 + $0x120] sm:$0xff]
  %v491 = vld [vmem:[%s3 + $0x128] sm:$0xff]
  %v492 = vld [vmem:[%s3 + $0x130] sm:$0xff]
  %v493 = vld [vmem:[%s3 + $0x138] sm:$0xff]
  %v494 = vld [vmem:[%s3 + $0x140] sm:$0xff]
  %v495 = vld [vmem:[%s3 + $0x148] sm:$0xff]
  %v496 = vld [vmem:[%s3 + $0x150] sm:$0xff]
  %v497 = vld [vmem:[%s3 + $0x158] sm:$0xff]
  %v498 = vld [vmem:[%s3 + $0x160] sm:$0xff]
  %v499 = vld [vmem:[%s3 + $0x168] sm:$0xff]
  %v500 = vld [vmem:[%s3 + $0x170] sm:$0xff]
  %v501 = vld [vmem:[%s3 + $0x178] sm:$0xff]
  %v502 = vld [vmem:[%s3 + $0x180] sm:$0xff]
  %v503 = vld [vmem:[%s3 + $0x188] sm:$0xff]
  %v504 = vld [vmem:[%s3 + $0x190] sm:$0xff]
  %v505 = vld [vmem:[%s3 + $0x198] sm:$0xff]
  %v506 = vld [vmem:[%s3 + $0x1a0] sm:$0xff]
  %v507 = vld [vmem:[%s3 + $0x1a8] sm:$0xff]
  %v508 = vld [vmem:[%s3 + $0x1b0] sm:$0xff]
  %v509 = vld [vmem:[%s3 + $0x1b8] sm:$0xff]
  %v510 = vld [vmem:[%s3 + $0x1c0] sm:$0xff]
  %v511 = vld [vmem:[%s3 + $0x1c8] sm:$0xff]
  %v512 = vld [vmem:[%s3 + $0x1d0] sm:$0xff]
  %v513 = vld [vmem:[%s3 + $0x1d8] sm:$0xff]
  %v514 = vld [vmem:[%s3 + $0x1e0] sm:$0xff]
  %v515 = vld [vmem:[%s3 + $0x1e8] sm:$0xff]
  %v516 = vld [vmem:[%s3 + $0x1f0] sm:$0xff]
  %v517 = vld [vmem:[%s3 + $0x1f8] sm:$0xff]
  %v518 = vld [vmem:[%s4] sm:$0x3]
  %v520 = vperm.slane %v518, 0
  %v521 = vperm.slane %v518, 1
  %524 = vmatpush.msra.mxu0 %v484
  %525 = vmatpush.msra.mxu0 %v482
  %526 = vmatpush.msra.mxu0 %v480
  %527 = vmatpush.msra.mxu0 %v478
  %528 = vmatpush.msra.mxu0 %v476
  %529 = vmatpush.msra.mxu0 %v474
  %530 = vmatpush.msra.mxu0 %v472
  %531 = vmatpush.msra.mxu0 %v470
  %532 = vmatpush.msra.mxu0 %v468
  %533 = vmatpush.msra.mxu0 %v466
  %534 = vmatpush.msra.mxu0 %v464
  %535 = vmatpush.msra.mxu0 %v462
  %536 = vmatpush.msra.mxu0 %v460
  %537 = vmatpush.msra.mxu0 %v458
  %538 = vmatpush.msra.mxu0 %v456
  %539 = vmatpush.msra.mxu0 %v454
  %540 = vmatmul.f32.gmra.mxu0 %v422
  %v541 = vpop.f32.mrf.mxu0
  %v542 = vadd.f32 %v520, %v541
  %543 = vmatmul.f32.gmra.mxu0 %v424
  %v544 = vpop.f32.mrf.mxu0
  %v545 = vadd.f32 %v520, %v544
  %546 = vmatmul.f32.gmra.mxu0 %v426
  %v547 = vpop.f32.mrf.mxu0
  %v548 = vadd.f32 %v520, %v547
  %549 = vmatmul.f32.gmra.mxu0 %v428
  %v550 = vpop.f32.mrf.mxu0
  %v551 = vadd.f32 %v520, %v550
  %552 = vmatmul.f32.gmra.mxu0 %v430
  %v553 = vpop.f32.mrf.mxu0
  %v554 = vadd.f32 %v520, %v553
  %555 = vmatmul.f32.gmra.mxu0 %v432
  %v556 = vpop.f32.mrf.mxu0
  %v557 = vadd.f32 %v520, %v556
  %558 = vmatmul.f32.gmra.mxu0 %v434
  %v559 = vpop.f32.mrf.mxu0
  %v560 = vadd.f32 %v520, %v559
  %561 = vmatmul.f32.gmra.mxu0 %v436
  %v562 = vpop.f32.mrf.mxu0
  %v563 = vadd.f32 %v520, %v562
  %564 = vmatmul.f32.gmra.mxu0 %v438
  %v565 = vpop.f32.mrf.mxu0
  %v566 = vadd.f32 %v520, %v565
  %567 = vmatmul.f32.gmra.mxu0 %v440
  %v568 = vpop.f32.mrf.mxu0
  %v569 = vadd.f32 %v520, %v568
  %570 = vmatmul.f32.gmra.mxu0 %v442
  %v571 = vpop.f32.mrf.mxu0
  %v572 = vadd.f32 %v520, %v571
  %573 = vmatmul.f32.gmra.mxu0 %v444
  %v574 = vpop.f32.mrf.mxu0
  %v575 = vadd.f32 %v520, %v574
  %576 = vmatmul.f32.gmra.mxu0 %v446
  %v577 = vpop.f32.mrf.mxu0
  %v578 = vadd.f32 %v520, %v577
  %579 = vmatmul.f32.gmra.mxu0 %v448
  %v580 = vpop.f32.mrf.mxu0
  %v581 = vadd.f32 %v520, %v580
  %582 = vmatmul.f32.gmra.mxu0 %v450
  %v583 = vpop.f32.mrf.mxu0
  %v584 = vadd.f32 %v520, %v583
  %585 = vmatmul.f32.gmra.mxu0 %v452
  %v586 = vpop.f32.mrf.mxu0
  %v587 = vadd.f32 %v520, %v586
  %588 = vdwg.mxu0
  %589 = vmatpush.msra.mxu0 %v516
  %590 = vmatpush.msra.mxu0 %v514
  %591 = vmatpush.msra.mxu0 %v512
  %592 = vmatpush.msra.mxu0 %v510
  %593 = vmatpush.msra.mxu0 %v508
  %594 = vmatpush.msra.mxu0 %v506
  %595 = vmatpush.msra.mxu0 %v504
  %596 = vmatpush.msra.mxu0 %v502
  %597 = vmatpush.msra.mxu0 %v500
  %598 = vmatpush.msra.mxu0 %v498
  %599 = vmatpush.msra.mxu0 %v496
  %600 = vmatpush.msra.mxu0 %v494
  %601 = vmatpush.msra.mxu0 %v492
  %602 = vmatpush.msra.mxu0 %v490
  %603 = vmatpush.msra.mxu0 %v488
  %604 = vmatpush.msra.mxu0 %v486
  %605 = vmatmul.f32.gmra.mxu0 %v423
  %v606 = vpop.f32.mrf.mxu0
  %v607 = vadd.f32 %v542, %v606
  %608 = vmatmul.f32.gmra.mxu0 %v425
  %v609 = vpop.f32.mrf.mxu0
  %v610 = vadd.f32 %v545, %v609
  %611 = vmatmul.f32.gmra.mxu0 %v427
  %v612 = vpop.f32.mrf.mxu0
  %v613 = vadd.f32 %v548, %v612
  %614 = vmatmul.f32.gmra.mxu0 %v429
  %v615 = vpop.f32.mrf.mxu0
  %v616 = vadd.f32 %v551, %v615
  %617 = vmatmul.f32.gmra.mxu0 %v431
  %v618 = vpop.f32.mrf.mxu0
  %v619 = vadd.f32 %v554, %v618
  %620 = vmatmul.f32.gmra.mxu0 %v433
  %v621 = vpop.f32.mrf.mxu0
  %v622 = vadd.f32 %v557, %v621
  %623 = vmatmul.f32.gmra.mxu0 %v435
  %v624 = vpop.f32.mrf.mxu0
  %v625 = vadd.f32 %v560, %v624
  %626 = vmatmul.f32.gmra.mxu0 %v437
  %v627 = vpop.f32.mrf.mxu0
  %v628 = vadd.f32 %v563, %v627
  %629 = vmatmul.f32.gmra.mxu0 %v439
  %v630 = vpop.f32.mrf.mxu0
  %v631 = vadd.f32 %v566, %v630
  %632 = vmatmul.f32.gmra.mxu0 %v441
  %v633 = vpop.f32.mrf.mxu0
  %v634 = vadd.f32 %v569, %v633
  %635 = vmatmul.f32.gmra.mxu0 %v443
  %v636 = vpop.f32.mrf.mxu0
  %v637 = vadd.f32 %v572, %v636
  %638 = vmatmul.f32.gmra.mxu0 %v445
  %v639 = vpop.f32.mrf.mxu0
  %v640 = vadd.f32 %v575, %v639
  %641 = vmatmul.f32.gmra.mxu0 %v447
  %v642 = vpop.f32.mrf.mxu0
  %v643 = vadd.f32 %v578, %v642
  %644 = vmatmul.f32.gmra.mxu0 %v449
  %v645 = vpop.f32.mrf.mxu0
  %v646 = vadd.f32 %v581, %v645
  %647 = vmatmul.f32.gmra.mxu0 %v451
  %v648 = vpop.f32.mrf.mxu0
  %v649 = vadd.f32 %v584, %v648
  %650 = vmatmul.f32.gmra.mxu0 %v453
  %v651 = vpop.f32.mrf.mxu0
  %v652 = vadd.f32 %v587, %v651
  %653 = vdwg.mxu0
  %654 = vmatpush.msra.mxu0 %v485
  %655 = vmatpush.msra.mxu0 %v483
  %656 = vmatpush.msra.mxu0 %v481
  %657 = vmatpush.msra.mxu0 %v479
  %658 = vmatpush.msra.mxu0 %v477
  %659 = vmatpush.msra.mxu0 %v475
  %660 = vmatpush.msra.mxu0 %v473
  %661 = vmatpush.msra.mxu0 %v471
  %662 = vmatpush.msra.mxu0 %v469
  %663 = vmatpush.msra.mxu0 %v467
  %664 = vmatpush.msra.mxu0 %v465
  %665 = vmatpush.msra.mxu0 %v463
  %666 = vmatpush.msra.mxu0 %v461
  %667 = vmatpush.msra.mxu0 %v459
  %668 = vmatpush.msra.mxu0 %v457
  %669 = vmatpush.msra.mxu0 %v455
  %670 = vmatmul.f32.gmra.mxu0 %v422
  %v671 = vpop.f32.mrf.mxu0
  %v672 = vadd.f32 %v521, %v671
  %673 = vmatmul.f32.gmra.mxu0 %v424
  %v674 = vpop.f32.mrf.mxu0
  %v675 = vadd.f32 %v521, %v674
  %676 = vmatmul.f32.gmra.mxu0 %v426
  %v677 = vpop.f32.mrf.mxu0
  %v678 = vadd.f32 %v521, %v677
  %679 = vmatmul.f32.gmra.mxu0 %v428
  %v680 = vpop.f32.mrf.mxu0
  %v681 = vadd.f32 %v521, %v680
  %682 = vmatmul.f32.gmra.mxu0 %v430
  %v683 = vpop.f32.mrf.mxu0
  %v684 = vadd.f32 %v521, %v683
  %685 = vmatmul.f32.gmra.mxu0 %v432
  %v686 = vpop.f32.mrf.mxu0
  %v687 = vadd.f32 %v521, %v686
  %688 = vmatmul.f32.gmra.mxu0 %v434
  %v689 = vpop.f32.mrf.mxu0
  %v690 = vadd.f32 %v521, %v689
  %691 = vmatmul.f32.gmra.mxu0 %v436
  %v692 = vpop.f32.mrf.mxu0
  %v693 = vadd.f32 %v521, %v692
  %694 = vmatmul.f32.gmra.mxu0 %v438
  %v695 = vpop.f32.mrf.mxu0
  %v696 = vadd.f32 %v521, %v695
  %697 = vmatmul.f32.gmra.mxu0 %v440
  %v698 = vpop.f32.mrf.mxu0
  %v699 = vadd.f32 %v521, %v698
  %700 = vmatmul.f32.gmra.mxu0 %v442
  %v701 = vpop.f32.mrf.mxu0
  %v702 = vadd.f32 %v521, %v701
  %703 = vmatmul.f32.gmra.mxu0 %v444
  %v704 = vpop.f32.mrf.mxu0
  %v705 = vadd.f32 %v521, %v704
  %706 = vmatmul.f32.gmra.mxu0 %v446
  %v707 = vpop.f32.mrf.mxu0
  %v708 = vadd.f32 %v521, %v707
  %709 = vmatmul.f32.gmra.mxu0 %v448
  %v710 = vpop.f32.mrf.mxu0
  %v711 = vadd.f32 %v521, %v710
  %712 = vmatmul.f32.gmra.mxu0 %v450
  %v713 = vpop.f32.mrf.mxu0
  %v714 = vadd.f32 %v521, %v713
  %715 = vmatmul.f32.gmra.mxu0 %v452
  %v716 = vpop.f32.mrf.mxu0
  %v717 = vadd.f32 %v521, %v716
  %718 = vdwg.mxu0
  %719 = vmatpush.msra.mxu0 %v517
  %720 = vmatpush.msra.mxu0 %v515
  %721 = vmatpush.msra.mxu0 %v513
  %722 = vmatpush.msra.mxu0 %v511
  %723 = vmatpush.msra.mxu0 %v509
  %724 = vmatpush.msra.mxu0 %v507
  %725 = vmatpush.msra.mxu0 %v505
  %726 = vmatpush.msra.mxu0 %v503
  %727 = vmatpush.msra.mxu0 %v501
  %728 = vmatpush.msra.mxu0 %v499
  %729 = vmatpush.msra.mxu0 %v497
  %730 = vmatpush.msra.mxu0 %v495
  %731 = vmatpush.msra.mxu0 %v493
  %732 = vmatpush.msra.mxu0 %v491
  %733 = vmatpush.msra.mxu0 %v489
  %734 = vmatpush.msra.mxu0 %v487
  %735 = vmatmul.f32.gmra.mxu0 %v423
  %v736 = vpop.f32.mrf.mxu0
  %v737 = vadd.f32 %v672, %v736
  %738 = vmatmul.f32.gmra.mxu0 %v425
  %v739 = vpop.f32.mrf.mxu0
  %v740 = vadd.f32 %v675, %v739
  %741 = vmatmul.f32.gmra.mxu0 %v427
  %v742 = vpop.f32.mrf.mxu0
  %v743 = vadd.f32 %v678, %v742
  %744 = vmatmul.f32.gmra.mxu0 %v429
  %v745 = vpop.f32.mrf.mxu0
  %v746 = vadd.f32 %v681, %v745
  %747 = vmatmul.f32.gmra.mxu0 %v431
  %v748 = vpop.f32.mrf.mxu0
  %v749 = vadd.f32 %v684, %v748
  %750 = vmatmul.f32.gmra.mxu0 %v433
  %v751 = vpop.f32.mrf.mxu0
  %v752 = vadd.f32 %v687, %v751
  %753 = vmatmul.f32.gmra.mxu0 %v435
  %v754 = vpop.f32.mrf.mxu0
  %v755 = vadd.f32 %v690, %v754
  %756 = vmatmul.f32.gmra.mxu0 %v437
  %v757 = vpop.f32.mrf.mxu0
  %v758 = vadd.f32 %v693, %v757
  %759 = vmatmul.f32.gmra.mxu0 %v439
  %v760 = vpop.f32.mrf.mxu0
  %v761 = vadd.f32 %v696, %v760
  %762 = vmatmul.f32.gmra.mxu0 %v441
  %v763 = vpop.f32.mrf.mxu0
  %v764 = vadd.f32 %v699, %v763
  %765 = vmatmul.f32.gmra.mxu0 %v443
  %v766 = vpop.f32.mrf.mxu0
  %v767 = vadd.f32 %v702, %v766
  %768 = vmatmul.f32.gmra.mxu0 %v445
  %v769 = vpop.f32.mrf.mxu0
  %v770 = vadd.f32 %v705, %v769
  %771 = vmatmul.f32.gmra.mxu0 %v447
  %v772 = vpop.f32.mrf.mxu0
  %v773 = vadd.f32 %v708, %v772
  %774 = vmatmul.f32.gmra.mxu0 %v449
  %v775 = vpop.f32.mrf.mxu0
  %v776 = vadd.f32 %v711, %v775
  %777 = vmatmul.f32.gmra.mxu0 %v451
  %v778 = vpop.f32.mrf.mxu0
  %v779 = vadd.f32 %v714, %v778
  %780 = vmatmul.f32.gmra.mxu0 %v453
  %v781 = vpop.f32.mrf.mxu0
  %v782 = vadd.f32 %v717, %v781
  %783 = vdwg.mxu0
  %v784 = vld [vmem:[%s5] sm:$0xff]
  %v785 = vld [vmem:[%s5 + $0x8] sm:$0xff]
  %v786 = vld [vmem:[%s5 + $0x10] sm:$0xff]
  %v787 = vld [vmem:[%s5 + $0x18] sm:$0xff]
  %v788 = vld [vmem:[%s5 + $0x20] sm:$0xff]
  %v789 = vld [vmem:[%s5 + $0x28] sm:$0xff]
  %v790 = vld [vmem:[%s5 + $0x30] sm:$0xff]
  %v791 = vld [vmem:[%s5 + $0x38] sm:$0xff]
  %v792 = vld [vmem:[%s5 + $0x40] sm:$0xff]
  %v793 = vld [vmem:[%s5 + $0x48] sm:$0xff]
  %v794 = vld [vmem:[%s5 + $0x50] sm:$0xff]
  %v795 = vld [vmem:[%s5 + $0x58] sm:$0xff]
  %v796 = vld [vmem:[%s5 + $0x60] sm:$0xff]
  %v797 = vld [vmem:[%s5 + $0x68] sm:$0xff]
  %v798 = vld [vmem:[%s5 + $0x70] sm:$0xff]
  %v799 = vld [vmem:[%s5 + $0x78] sm:$0xff]
  %v800 = vld [vmem:[%s5 + $0x80] sm:$0xff]
  %v801 = vld [vmem:[%s5 + $0x88] sm:$0xff]
  %v802 = vld [vmem:[%s5 + $0x90] sm:$0xff]
  %v803 = vld [vmem:[%s5 + $0x98] sm:$0xff]
  %v804 = vld [vmem:[%s5 + $0xa0] sm:$0xff]
  %v805 = vld [vmem:[%s5 + $0xa8] sm:$0xff]
  %v806 = vld [vmem:[%s5 + $0xb0] sm:$0xff]
  %v807 = vld [vmem:[%s5 + $0xb8] sm:$0xff]
  %v808 = vld [vmem:[%s5 + $0xc0] sm:$0xff]
  %v809 = vld [vmem:[%s5 + $0xc8] sm:$0xff]
  %v810 = vld [vmem:[%s5 + $0xd0] sm:$0xff]
  %v811 = vld [vmem:[%s5 + $0xd8] sm:$0xff]
  %v812 = vld [vmem:[%s5 + $0xe0] sm:$0xff]
  %v813 = vld [vmem:[%s5 + $0xe8] sm:$0xff]
  %v814 = vld [vmem:[%s5 + $0xf0] sm:$0xff]
  %v815 = vld [vmem:[%s5 + $0xf8] sm:$0xff]
  %v816 = vld [vmem:[%s5 + $0x100] sm:$0xff]
  %v817 = vld [vmem:[%s5 + $0x108] sm:$0xff]
  %v818 = vld [vmem:[%s5 + $0x110] sm:$0xff]
  %v819 = vld [vmem:[%s5 + $0x118] sm:$0xff]
  %v820 = vld [vmem:[%s5 + $0x120] sm:$0xff]
  %v821 = vld [vmem:[%s5 + $0x128] sm:$0xff]
  %v822 = vld [vmem:[%s5 + $0x130] sm:$0xff]
  %v823 = vld [vmem:[%s5 + $0x138] sm:$0xff]
  %v824 = vld [vmem:[%s5 + $0x140] sm:$0xff]
  %v825 = vld [vmem:[%s5 + $0x148] sm:$0xff]
  %v826 = vld [vmem:[%s5 + $0x150] sm:$0xff]
  %v827 = vld [vmem:[%s5 + $0x158] sm:$0xff]
  %v828 = vld [vmem:[%s5 + $0x160] sm:$0xff]
  %v829 = vld [vmem:[%s5 + $0x168] sm:$0xff]
  %v830 = vld [vmem:[%s5 + $0x170] sm:$0xff]
  %v831 = vld [vmem:[%s5 + $0x178] sm:$0xff]
  %v832 = vld [vmem:[%s5 + $0x180] sm:$0xff]
  %v833 = vld [vmem:[%s5 + $0x188] sm:$0xff]
  %v834 = vld [vmem:[%s5 + $0x190] sm:$0xff]
  %v835 = vld [vmem:[%s5 + $0x198] sm:$0xff]
  %v836 = vld [vmem:[%s5 + $0x1a0] sm:$0xff]
  %v837 = vld [vmem:[%s5 + $0x1a8] sm:$0xff]
  %v838 = vld [vmem:[%s5 + $0x1b0] sm:$0xff]
  %v839 = vld [vmem:[%s5 + $0x1b8] sm:$0xff]
  %v840 = vld [vmem:[%s5 + $0x1c0] sm:$0xff]
  %v841 = vld [vmem:[%s5 + $0x1c8] sm:$0xff]
  %v842 = vld [vmem:[%s5 + $0x1d0] sm:$0xff]
  %v843 = vld [vmem:[%s5 + $0x1d8] sm:$0xff]
  %v844 = vld [vmem:[%s5 + $0x1e0] sm:$0xff]
  %v845 = vld [vmem:[%s5 + $0x1e8] sm:$0xff]
  %v846 = vld [vmem:[%s5 + $0x1f0] sm:$0xff]
  %v847 = vld [vmem:[%s5 + $0x1f8] sm:$0xff]
  %v848 = vld [vmem:[%s6] sm:$0x3]
  %v850 = vperm.slane %v848, 0
  %v851 = vperm.slane %v848, 1
  %854 = vmatpush.msra.mxu0 %v814
  %855 = vmatpush.msra.mxu0 %v812
  %856 = vmatpush.msra.mxu0 %v810
  %857 = vmatpush.msra.mxu0 %v808
  %858 = vmatpush.msra.mxu0 %v806
  %859 = vmatpush.msra.mxu0 %v804
  %860 = vmatpush.msra.mxu0 %v802
  %861 = vmatpush.msra.mxu0 %v800
  %862 = vmatpush.msra.mxu0 %v798
  %863 = vmatpush.msra.mxu0 %v796
  %864 = vmatpush.msra.mxu0 %v794
  %865 = vmatpush.msra.mxu0 %v792
  %866 = vmatpush.msra.mxu0 %v790
  %867 = vmatpush.msra.mxu0 %v788
  %868 = vmatpush.msra.mxu0 %v786
  %869 = vmatpush.msra.mxu0 %v784
  %870 = vmatmul.f32.gmra.mxu0 %v607
  %v871 = vpop.f32.mrf.mxu0
  %v872 = vadd.f32 %v850, %v871
  %873 = vmatmul.f32.gmra.mxu0 %v610
  %v874 = vpop.f32.mrf.mxu0
  %v875 = vadd.f32 %v850, %v874
  %876 = vmatmul.f32.gmra.mxu0 %v613
  %v877 = vpop.f32.mrf.mxu0
  %v878 = vadd.f32 %v850, %v877
  %879 = vmatmul.f32.gmra.mxu0 %v616
  %v880 = vpop.f32.mrf.mxu0
  %v881 = vadd.f32 %v850, %v880
  %882 = vmatmul.f32.gmra.mxu0 %v619
  %v883 = vpop.f32.mrf.mxu0
  %v884 = vadd.f32 %v850, %v883
  %885 = vmatmul.f32.gmra.mxu0 %v622
  %v886 = vpop.f32.mrf.mxu0
  %v887 = vadd.f32 %v850, %v886
  %888 = vmatmul.f32.gmra.mxu0 %v625
  %v889 = vpop.f32.mrf.mxu0
  %v890 = vadd.f32 %v850, %v889
  %891 = vmatmul.f32.gmra.mxu0 %v628
  %v892 = vpop.f32.mrf.mxu0
  %v893 = vadd.f32 %v850, %v892
  %894 = vmatmul.f32.gmra.mxu0 %v631
  %v895 = vpop.f32.mrf.mxu0
  %v896 = vadd.f32 %v850, %v895
  %897 = vmatmul.f32.gmra.mxu0 %v634
  %v898 = vpop.f32.mrf.mxu0
  %v899 = vadd.f32 %v850, %v898
  %900 = vmatmul.f32.gmra.mxu0 %v637
  %v901 = vpop.f32.mrf.mxu0
  %v902 = vadd.f32 %v850, %v901
  %903 = vmatmul.f32.gmra.mxu0 %v640
  %v904 = vpop.f32.mrf.mxu0
  %v905 = vadd.f32 %v850, %v904
  %906 = vmatmul.f32.gmra.mxu0 %v643
  %v907 = vpop.f32.mrf.mxu0
  %v908 = vadd.f32 %v850, %v907
  %909 = vmatmul.f32.gmra.mxu0 %v646
  %v910 = vpop.f32.mrf.mxu0
  %v911 = vadd.f32 %v850, %v910
  %912 = vmatmul.f32.gmra.mxu0 %v649
  %v913 = vpop.f32.mrf.mxu0
  %v914 = vadd.f32 %v850, %v913
  %915 = vmatmul.f32.gmra.mxu0 %v652
  %v916 = vpop.f32.mrf.mxu0
  %v917 = vadd.f32 %v850, %v916
  %918 = vdwg.mxu0
  %919 = vmatpush.msra.mxu0 %v846
  %920 = vmatpush.msra.mxu0 %v844
  %921 = vmatpush.msra.mxu0 %v842
  %922 = vmatpush.msra.mxu0 %v840
  %923 = vmatpush.msra.mxu0 %v838
  %924 = vmatpush.msra.mxu0 %v836
  %925 = vmatpush.msra.mxu0 %v834
  %926 = vmatpush.msra.mxu0 %v832
  %927 = vmatpush.msra.mxu0 %v830
  %928 = vmatpush.msra.mxu0 %v828
  %929 = vmatpush.msra.mxu0 %v826
  %930 = vmatpush.msra.mxu0 %v824
  %931 = vmatpush.msra.mxu0 %v822
  %932 = vmatpush.msra.mxu0 %v820
  %933 = vmatpush.msra.mxu0 %v818
  %934 = vmatpush.msra.mxu0 %v816
  %935 = vmatmul.f32.gmra.mxu0 %v737
  %v936 = vpop.f32.mrf.mxu0
  %v937 = vadd.f32 %v872, %v936
  %938 = vmatmul.f32.gmra.mxu0 %v740
  %v939 = vpop.f32.mrf.mxu0
  %v940 = vadd.f32 %v875, %v939
  %941 = vmatmul.f32.gmra.mxu0 %v743
  %v942 = vpop.f32.mrf.mxu0
  %v943 = vadd.f32 %v878, %v942
  %944 = vmatmul.f32.gmra.mxu0 %v746
  %v945 = vpop.f32.mrf.mxu0
  %v946 = vadd.f32 %v881, %v945
  %947 = vmatmul.f32.gmra.mxu0 %v749
  %v948 = vpop.f32.mrf.mxu0
  %v949 = vadd.f32 %v884, %v948
  %950 = vmatmul.f32.gmra.mxu0 %v752
  %v951 = vpop.f32.mrf.mxu0
  %v952 = vadd.f32 %v887, %v951
  %953 = vmatmul.f32.gmra.mxu0 %v755
  %v954 = vpop.f32.mrf.mxu0
  %v955 = vadd.f32 %v890, %v954
  %956 = vmatmul.f32.gmra.mxu0 %v758
  %v957 = vpop.f32.mrf.mxu0
  %v958 = vadd.f32 %v893, %v957
  %959 = vmatmul.f32.gmra.mxu0 %v761
  %v960 = vpop.f32.mrf.mxu0
  %v961 = vadd.f32 %v896, %v960
  %962 = vmatmul.f32.gmra.mxu0 %v764
  %v963 = vpop.f32.mrf.mxu0
  %v964 = vadd.f32 %v899, %v963
  %965 = vmatmul.f32.gmra.mxu0 %v767
  %v966 = vpop.f32.mrf.mxu0
  %v967 = vadd.f32 %v902, %v966
  %968 = vmatmul.f32.gmra.mxu0 %v770
  %v969 = vpop.f32.mrf.mxu0
  %v970 = vadd.f32 %v905, %v969
  %971 = vmatmul.f32.gmra.mxu0 %v773
  %v972 = vpop.f32.mrf.mxu0
  %v973 = vadd.f32 %v908, %v972
  %974 = vmatmul.f32.gmra.mxu0 %v776
  %v975 = vpop.f32.mrf.mxu0
  %v976 = vadd.f32 %v911, %v975
  %977 = vmatmul.f32.gmra.mxu0 %v779
  %v978 = vpop.f32.mrf.mxu0
  %v979 = vadd.f32 %v914, %v978
  %980 = vmatmul.f32.gmra.mxu0 %v782
  %v981 = vpop.f32.mrf.mxu0
  %v982 = vadd.f32 %v917, %v981
  %983 = vdwg.mxu0
  %984 = vmatpush.msra.mxu0 %v815
  %985 = vmatpush.msra.mxu0 %v813
  %986 = vmatpush.msra.mxu0 %v811
  %987 = vmatpush.msra.mxu0 %v809
  %988 = vmatpush.msra.mxu0 %v807
  %989 = vmatpush.msra.mxu0 %v805
  %990 = vmatpush.msra.mxu0 %v803
  %991 = vmatpush.msra.mxu0 %v801
  %992 = vmatpush.msra.mxu0 %v799
  %993 = vmatpush.msra.mxu0 %v797
  %994 = vmatpush.msra.mxu0 %v795
  %995 = vmatpush.msra.mxu0 %v793
  %996 = vmatpush.msra.mxu0 %v791
  %997 = vmatpush.msra.mxu0 %v789
  %998 = vmatpush.msra.mxu0 %v787
  %999 = vmatpush.msra.mxu0 %v785
  %1000 = vmatmul.f32.gmra.mxu0 %v607
  %v1001 = vpop.f32.mrf.mxu0
  %v1002 = vadd.f32 %v851, %v1001
  %1003 = vmatmul.f32.gmra.mxu0 %v610
  %v1004 = vpop.f32.mrf.mxu0
  %v1005 = vadd.f32 %v851, %v1004
  %1006 = vmatmul.f32.gmra.mxu0 %v613
  %v1007 = vpop.f32.mrf.mxu0
  %v1008 = vadd.f32 %v851, %v1007
  %1009 = vmatmul.f32.gmra.mxu0 %v616
  %v1010 = vpop.f32.mrf.mxu0
  %v1011 = vadd.f32 %v851, %v1010
  %1012 = vmatmul.f32.gmra.mxu0 %v619
  %v1013 = vpop.f32.mrf.mxu0
  %v1014 = vadd.f32 %v851, %v1013
  %1015 = vmatmul.f32.gmra.mxu0 %v622
  %v1016 = vpop.f32.mrf.mxu0
  %v1017 = vadd.f32 %v851, %v1016
  %1018 = vmatmul.f32.gmra.mxu0 %v625
  %v1019 = vpop.f32.mrf.mxu0
  %v1020 = vadd.f32 %v851, %v1019
  %1021 = vmatmul.f32.gmra.mxu0 %v628
  %v1022 = vpop.f32.mrf.mxu0
  %v1023 = vadd.f32 %v851, %v1022
  %1024 = vmatmul.f32.gmra.mxu0 %v631
  %v1025 = vpop.f32.mrf.mxu0
  %v1026 = vadd.f32 %v851, %v1025
  %1027 = vmatmul.f32.gmra.mxu0 %v634
  %v1028 = vpop.f32.mrf.mxu0
  %v1029 = vadd.f32 %v851, %v1028
  %1030 = vmatmul.f32.gmra.mxu0 %v637
  %v1031 = vpop.f32.mrf.mxu0
  %v1032 = vadd.f32 %v851, %v1031
  %1033 = vmatmul.f32.gmra.mxu0 %v640
  %v1034 = vpop.f32.mrf.mxu0
  %v1035 = vadd.f32 %v851, %v1034
  %1036 = vmatmul.f32.gmra.mxu0 %v643
  %v1037 = vpop.f32.mrf.mxu0
  %v1038 = vadd.f32 %v851, %v1037
  %1039 = vmatmul.f32.gmra.mxu0 %v646
  %v1040 = vpop.f32.mrf.mxu0
  %v1041 = vadd.f32 %v851, %v1040
  %1042 = vmatmul.f32.gmra.mxu0 %v649
  %v1043 = vpop.f32.mrf.mxu0
  %v1044 = vadd.f32 %v851, %v1043
  %1045 = vmatmul.f32.gmra.mxu0 %v652
  %v1046 = vpop.f32.mrf.mxu0
  %v1047 = vadd.f32 %v851, %v1046
  %1048 = vdwg.mxu0
  %1049 = vmatpush.msra.mxu0 %v847
  %1050 = vmatpush.msra.mxu0 %v845
  %1051 = vmatpush.msra.mxu0 %v843
  %1052 = vmatpush.msra.mxu0 %v841
  %1053 = vmatpush.msra.mxu0 %v839
  %1054 = vmatpush.msra.mxu0 %v837
  %1055 = vmatpush.msra.mxu0 %v835
  %1056 = vmatpush.msra.mxu0 %v833
  %1057 = vmatpush.msra.mxu0 %v831
  %1058 = vmatpush.msra.mxu0 %v829
  %1059 = vmatpush.msra.mxu0 %v827
  %1060 = vmatpush.msra.mxu0 %v825
  %1061 = vmatpush.msra.mxu0 %v823
  %1062 = vmatpush.msra.mxu0 %v821
  %1063 = vmatpush.msra.mxu0 %v819
  %1064 = vmatpush.msra.mxu0 %v817
  %1065 = vmatmul.f32.gmra.mxu0 %v737
  %v1066 = vpop.f32.mrf.mxu0
  %v1067 = vadd.f32 %v1002, %v1066
  %1068 = vmatmul.f32.gmra.mxu0 %v740
  %v1069 = vpop.f32.mrf.mxu0
  %v1070 = vadd.f32 %v1005, %v1069
  %1071 = vmatmul.f32.gmra.mxu0 %v743
  %v1072 = vpop.f32.mrf.mxu0
  %v1073 = vadd.f32 %v1008, %v1072
  %1074 = vmatmul.f32.gmra.mxu0 %v746
  %v1075 = vpop.f32.mrf.mxu0
  %v1076 = vadd.f32 %v1011, %v1075
  %1077 = vmatmul.f32.gmra.mxu0 %v749
  %v1078 = vpop.f32.mrf.mxu0
  %v1079 = vadd.f32 %v1014, %v1078
  %1080 = vmatmul.f32.gmra.mxu0 %v752
  %v1081 = vpop.f32.mrf.mxu0
  %v1082 = vadd.f32 %v1017, %v1081
  %1083 = vmatmul.f32.gmra.mxu0 %v755
  %v1084 = vpop.f32.mrf.mxu0
  %v1085 = vadd.f32 %v1020, %v1084
  %1086 = vmatmul.f32.gmra.mxu0 %v758
  %v1087 = vpop.f32.mrf.mxu0
  %v1088 = vadd.f32 %v1023, %v1087
  %1089 = vmatmul.f32.gmra.mxu0 %v761
  %v1090 = vpop.f32.mrf.mxu0
  %v1091 = vadd.f32 %v1026, %v1090
  %1092 = vmatmul.f32.gmra.mxu0 %v764
  %v1093 = vpop.f32.mrf.mxu0
  %v1094 = vadd.f32 %v1029, %v1093
  %1095 = vmatmul.f32.gmra.mxu0 %v767
  %v1096 = vpop.f32.mrf.mxu0
  %v1097 = vadd.f32 %v1032, %v1096
  %1098 = vmatmul.f32.gmra.mxu0 %v770
  %v1099 = vpop.f32.mrf.mxu0
  %v1100 = vadd.f32 %v1035, %v1099
  %1101 = vmatmul.f32.gmra.mxu0 %v773
  %v1102 = vpop.f32.mrf.mxu0
  %v1103 = vadd.f32 %v1038, %v1102
  %1104 = vmatmul.f32.gmra.mxu0 %v776
  %v1105 = vpop.f32.mrf.mxu0
  %v1106 = vadd.f32 %v1041, %v1105
  %1107 = vmatmul.f32.gmra.mxu0 %v779
  %v1108 = vpop.f32.mrf.mxu0
  %v1109 = vadd.f32 %v1044, %v1108
  %1110 = vmatmul.f32.gmra.mxu0 %v782
  %v1111 = vpop.f32.mrf.mxu0
  %v1112 = vadd.f32 %v1047, %v1111
  %1113 = vdwg.mxu0
  %v1114 = vmul.f32 %v937, 0.01
  %v1115 = vmul.f32 %v1067, 0.01
  %v1116 = vmul.f32 %v940, 0.01
  %v1117 = vmul.f32 %v1070, 0.01
  %v1118 = vmul.f32 %v943, 0.01
  %v1119 = vmul.f32 %v1073, 0.01
  %v1120 = vmul.f32 %v946, 0.01
  %v1121 = vmul.f32 %v1076, 0.01
  %v1122 = vmul.f32 %v949, 0.01
  %v1123 = vmul.f32 %v1079, 0.01
  %v1124 = vmul.f32 %v952, 0.01
  %v1125 = vmul.f32 %v1082, 0.01
  %v1126 = vmul.f32 %v955, 0.01
  %v1127 = vmul.f32 %v1085, 0.01
  %v1128 = vmul.f32 %v958, 0.01
  %v1129 = vmul.f32 %v1088, 0.01
  %v1130 = vmul.f32 %v961, 0.01
  %v1131 = vmul.f32 %v1091, 0.01
  %v1132 = vmul.f32 %v964, 0.01
  %v1133 = vmul.f32 %v1094, 0.01
  %v1134 = vmul.f32 %v967, 0.01
  %v1135 = vmul.f32 %v1097, 0.01
  %v1136 = vmul.f32 %v970, 0.01
  %v1137 = vmul.f32 %v1100, 0.01
  %v1138 = vmul.f32 %v973, 0.01
  %v1139 = vmul.f32 %v1103, 0.01
  %v1140 = vmul.f32 %v976, 0.01
  %v1141 = vmul.f32 %v1106, 0.01
  %v1142 = vmul.f32 %v979, 0.01
  %v1143 = vmul.f32 %v1109, 0.01
  %v1144 = vmul.f32 %v982, 0.01
  %v1145 = vmul.f32 %v1112, 0.01
  %v1146 = vmax.f32 %v937, %v1114
  %v1147 = vmax.f32 %v1067, %v1115
  %v1148 = vmax.f32 %v940, %v1116
  %v1149 = vmax.f32 %v1070, %v1117
  %v1150 = vmax.f32 %v943, %v1118
  %v1151 = vmax.f32 %v1073, %v1119
  %v1152 = vmax.f32 %v946, %v1120
  %v1153 = vmax.f32 %v1076, %v1121
  %v1154 = vmax.f32 %v949, %v1122
  %v1155 = vmax.f32 %v1079, %v1123
  %v1156 = vmax.f32 %v952, %v1124
  %v1157 = vmax.f32 %v1082, %v1125
  %v1158 = vmax.f32 %v955, %v1126
  %v1159 = vmax.f32 %v1085, %v1127
  %v1160 = vmax.f32 %v958, %v1128
  %v1161 = vmax.f32 %v1088, %v1129
  %v1162 = vmax.f32 %v961, %v1130
  %v1163 = vmax.f32 %v1091, %v1131
  %v1164 = vmax.f32 %v964, %v1132
  %v1165 = vmax.f32 %v1094, %v1133
  %v1166 = vmax.f32 %v967, %v1134
  %v1167 = vmax.f32 %v1097, %v1135
  %v1168 = vmax.f32 %v970, %v1136
  %v1169 = vmax.f32 %v1100, %v1137
  %v1170 = vmax.f32 %v973, %v1138
  %v1171 = vmax.f32 %v1103, %v1139
  %v1172 = vmax.f32 %v976, %v1140
  %v1173 = vmax.f32 %v1106, %v1141
  %v1174 = vmax.f32 %v979, %v1142
  %v1175 = vmax.f32 %v1109, %v1143
  %v1176 = vmax.f32 %v982, %v1144
  %v1177 = vmax.f32 %v1112, %v1145
  %1178 = vst [vmem:[%s7] sm:$0xff] %v607
  %1179 = vst [vmem:[%s7 + $0x8] sm:$0xff] %v737
  %1180 = vst [vmem:[%s7 + $0x10] sm:$0xff] %v610
  %1181 = vst [vmem:[%s7 + $0x18] sm:$0xff] %v740
  %1182 = vst [vmem:[%s7 + $0x20] sm:$0xff] %v613
  %1183 = vst [vmem:[%s7 + $0x28] sm:$0xff] %v743
  %1184 = vst [vmem:[%s7 + $0x30] sm:$0xff] %v616
  %1185 = vst [vmem:[%s7 + $0x38] sm:$0xff] %v746
  %1186 = vst [vmem:[%s7 + $0x40] sm:$0xff] %v619
  %1187 = vst [vmem:[%s7 + $0x48] sm:$0xff] %v749
  %1188 = vst [vmem:[%s7 + $0x50] sm:$0xff] %v622
  %1189 = vst [vmem:[%s7 + $0x58] sm:$0xff] %v752
  %1190 = vst [vmem:[%s7 + $0x60] sm:$0xff] %v625
  %1191 = vst [vmem:[%s7 + $0x68] sm:$0xff] %v755
  %1192 = vst [vmem:[%s7 + $0x70] sm:$0xff] %v628
  %1193 = vst [vmem:[%s7 + $0x78] sm:$0xff] %v758
  %1194 = vst [vmem:[%s7 + $0x80] sm:$0xff] %v631
  %1195 = vst [vmem:[%s7 + $0x88] sm:$0xff] %v761
  %1196 = vst [vmem:[%s7 + $0x90] sm:$0xff] %v634
  %1197 = vst [vmem:[%s7 + $0x98] sm:$0xff] %v764
  %1198 = vst [vmem:[%s7 + $0xa0] sm:$0xff] %v637
  %1199 = vst [vmem:[%s7 + $0xa8] sm:$0xff] %v767
  %1200 = vst [vmem:[%s7 + $0xb0] sm:$0xff] %v640
  %1201 = vst [vmem:[%s7 + $0xb8] sm:$0xff] %v770
  %1202 = vst [vmem:[%s7 + $0xc0] sm:$0xff] %v643
  %1203 = vst [vmem:[%s7 + $0xc8] sm:$0xff] %v773
  %1204 = vst [vmem:[%s7 + $0xd0] sm:$0xff] %v646
  %1205 = vst [vmem:[%s7 + $0xd8] sm:$0xff] %v776
  %1206 = vst [vmem:[%s7 + $0xe0] sm:$0xff] %v649
  %1207 = vst [vmem:[%s7 + $0xe8] sm:$0xff] %v779
  %1208 = vst [vmem:[%s7 + $0xf0] sm:$0xff] %v652
  %1209 = vst [vmem:[%s7 + $0xf8] sm:$0xff] %v782
  %1210 = vst [vmem:[%s8] sm:$0xff] %v1146
  %1211 = vst [vmem:[%s8 + $0x8] sm:$0xff] %v1147
  %1212 = vst [vmem:[%s8 + $0x10] sm:$0xff] %v1148
  %1213 = vst [vmem:[%s8 + $0x18] sm:$0xff] %v1149
  %1214 = vst [vmem:[%s8 + $0x20] sm:$0xff] %v1150
  %1215 = vst [vmem:[%s8 + $0x28] sm:$0xff] %v1151
  %1216 = vst [vmem:[%s8 + $0x30] sm:$0xff] %v1152
  %1217 = vst [vmem:[%s8 + $0x38] sm:$0xff] %v1153
  %1218 = vst [vmem:[%s8 + $0x40] sm:$0xff] %v1154
  %1219 = vst [vmem:[%s8 + $0x48] sm:$0xff] %v1155
  %1220 = vst [vmem:[%s8 + $0x50] sm:$0xff] %v1156
  %1221 = vst [vmem:[%s8 + $0x58] sm:$0xff] %v1157
  %1222 = vst [vmem:[%s8 + $0x60] sm:$0xff] %v1158
  %1223 = vst [vmem:[%s8 + $0x68] sm:$0xff] %v1159
  %1224 = vst [vmem:[%s8 + $0x70] sm:$0xff] %v1160
  %1225 = vst [vmem:[%s8 + $0x78] sm:$0xff] %v1161
  %1226 = vst [vmem:[%s8 + $0x80] sm:$0xff] %v1162
  %1227 = vst [vmem:[%s8 + $0x88] sm:$0xff] %v1163
  %1228 = vst [vmem:[%s8 + $0x90] sm:$0xff] %v1164
  %1229 = vst [vmem:[%s8 + $0x98] sm:$0xff] %v1165
  %1230 = vst [vmem:[%s8 + $0xa0] sm:$0xff] %v1166
  %1231 = vst [vmem:[%s8 + $0xa8] sm:$0xff] %v1167
  %1232 = vst [vmem:[%s8 + $0xb0] sm:$0xff] %v1168
  %1233 = vst [vmem:[%s8 + $0xb8] sm:$0xff] %v1169
  %1234 = vst [vmem:[%s8 + $0xc0] sm:$0xff] %v1170
  %1235 = vst [vmem:[%s8 + $0xc8] sm:$0xff] %v1171
  %1236 = vst [vmem:[%s8 + $0xd0] sm:$0xff] %v1172
  %1237 = vst [vmem:[%s8 + $0xd8] sm:$0xff] %v1173
  %1238 = vst [vmem:[%s8 + $0xe0] sm:$0xff] %v1174
  %1239 = vst [vmem:[%s8 + $0xe8] sm:$0xff] %v1175
  %1240 = vst [vmem:[%s8 + $0xf0] sm:$0xff] %v1176
  %1241 = vst [vmem:[%s8 + $0xf8] sm:$0xff] %v1177
  // Predicated region
  $region30: #{graph_agent_forward.4} parent=0 // pred_check
    _
  $region31: #{graph_agent_forward.4} parent=0 // pred_check_branch
    %1243 = sbr.rel (0) target = $region33
  $region32: #{graph_agent_forward.4} parent=0 // pred_region
    _
  $region33: #{graph_agent_forward.4} parent=0 // pred_fallthru
    _
  // Predicated region
  $region34: #{graph_agent_forward.4} parent=0 // pred_check
    _
  $region35: #{graph_agent_forward.4} parent=0 // pred_check_branch
    %1245 = sbr.rel (0) target = $region37
  $region36: #{graph_agent_forward.4} parent=0 // pred_region
    _
  $region37: #{graph_agent_forward.4} parent=0 // pred_fallthru
    _
  // Predicated region
  $region38: #{graph_agent_forward.4} parent=0 // pred_check
    _
  $region39: #{graph_agent_forward.4} parent=0 // pred_check_branch
    %1247 = sbr.rel (0) target = $region41
  $region40: #{graph_agent_forward.4} parent=0 // pred_region
    _
  $region41: #{graph_agent_forward.4} parent=0 // pred_fallthru
    _
  // Predicated region
  $region42: #{graph_agent_forward.4} parent=0 // pred_check
    _
  $region43: #{graph_agent_forward.4} parent=0 // pred_check_branch
    %1249 = sbr.rel (0) target = $region45
  $region44: #{graph_agent_forward.4} parent=0 // pred_region
    _
  $region45: #{graph_agent_forward.4} parent=0 // pred_fallthru
    _

// kernel: graph_agent_forward.6
$region0: #{graph_agent_forward.6}
  #allocation0 [shape = 'u32[]', space=smem, size = 0x4, offset = 0x4, fixed_abs, tag = 'smem constant byte address 0x4 - core index']
  #allocation1 [shape = 'u32[72,128]{1,0:T(1,128)}', space=vmem, size = 0x9000, scoped, tag = 'internal scratch']
  %s0 = inlined_call_operand.vmem [shape: f32[16,512], index: 0, kind: input, shape index: {}]
  %s1 = inlined_call_operand.vmem [shape: f32[512,256], index: 1, kind: input, shape index: {}]
  %s2 = inlined_call_operand.vmem [shape: f32[1,256], index: 2, kind: input, shape index: {}]
  %s3 = inlined_call_operand.vmem [shape: f32[256,256], index: 3, kind: input, shape index: {}]
  %s4 = inlined_call_operand.vmem [shape: f32[1,256], index: 4, kind: input, shape index: {}]
  %s5 = inlined_call_operand.vmem [shape: f32[256,128], index: 5, kind: input, shape index: {}]
  %s6 = inlined_call_operand.vmem [shape: f32[1,128], index: 6, kind: input, shape index: {}]
  %s7 = inlined_call_operand.vmem [shape: f32[16,128], index: 7, kind: output, shape index: {}]
  %s8 = sld [smem:[#allocation0]]
  $region38: #{graph_agent_forward.6} parent=0
    _
  %s10 = ssub.s32 1, %s8
  %s11 = scalar_select 0, %s10, %s8
  // Predicated region
  $region2: #{graph_agent_forward.6} parent=0 // pred_check
    _
  $region3: #{graph_agent_forward.6} parent=0 // pred_check_branch
    %13 = sbr.rel (0) target = $region5
  $region4: #{graph_agent_forward.6} parent=0 // pred_region
    _
  $region5: #{graph_agent_forward.6} parent=0 // pred_fallthru
    _
  // Predicated region
  $region6: #{graph_agent_forward.6} parent=0 // pred_check
    _
  $region7: #{graph_agent_forward.6} parent=0 // pred_check_branch
    %15 = sbr.rel (0) target = $region9
  $region8: #{graph_agent_forward.6} parent=0 // pred_region
    _
  $region9: #{graph_agent_forward.6} parent=0 // pred_fallthru
    _
  // Predicated region
  $region10: #{graph_agent_forward.6} parent=0 // pred_check
    _
  $region11: #{graph_agent_forward.6} parent=0 // pred_check_branch
    %17 = sbr.rel (0) target = $region13
  $region12: #{graph_agent_forward.6} parent=0 // pred_region
    _
  $region13: #{graph_agent_forward.6} parent=0 // pred_fallthru
    _
  // Predicated region
  $region14: #{graph_agent_forward.6} parent=0 // pred_check
    _
  $region15: #{graph_agent_forward.6} parent=0 // pred_check_branch
    %19 = sbr.rel (0) target = $region17
  $region16: #{graph_agent_forward.6} parent=0 // pred_region
    _
  $region17: #{graph_agent_forward.6} parent=0 // pred_fallthru
    _
  // Predicated region
  $region18: #{graph_agent_forward.6} parent=0 // pred_check
    _
  $region19: #{graph_agent_forward.6} parent=0 // pred_check_branch
    %21 = sbr.rel (0) target = $region21
  $region20: #{graph_agent_forward.6} parent=0 // pred_region
    _
  $region21: #{graph_agent_forward.6} parent=0 // pred_fallthru
    _
  // Predicated region
  $region22: #{graph_agent_forward.6} parent=0 // pred_check
    _
  $region23: #{graph_agent_forward.6} parent=0 // pred_check_branch
    %23 = sbr.rel (0) target = $region25
  $region24: #{graph_agent_forward.6} parent=0 // pred_region
    _
  $region25: #{graph_agent_forward.6} parent=0 // pred_fallthru
    _
  // Predicated region
  $region26: #{graph_agent_forward.6} parent=0 // pred_check
    _
  $region27: #{graph_agent_forward.6} parent=0 // pred_check_branch
    %25 = sbr.rel (0) target = $region29
  $region28: #{graph_agent_forward.6} parent=0 // pred_region
    _
  $region29: #{graph_agent_forward.6} parent=0 // pred_fallthru
    _
  %v26 = vld [vmem:[%s0] sm:$0xff]
  %v27 = vld [vmem:[%s0 + $0x8] sm:$0xff]
  %v28 = vld [vmem:[%s0 + $0x10] sm:$0xff]
  %v29 = vld [vmem:[%s0 + $0x18] sm:$0xff]
  %v30 = vld [vmem:[%s0 + $0x20] sm:$0xff]
  %v31 = vld [vmem:[%s0 + $0x28] sm:$0xff]
  %v32 = vld [vmem:[%s0 + $0x30] sm:$0xff]
  %v33 = vld [vmem:[%s0 + $0x38] sm:$0xff]
  %v34 = vld [vmem:[%s1] sm:$0xff]
  %v35 = vld [vmem:[%s1 + $0x8] sm:$0xff]
  %v36 = vld [vmem:[%s1 + $0x10] sm:$0xff]
  %v37 = vld [vmem:[%s1 + $0x18] sm:$0xff]
  %v38 = vld [vmem:[%s1 + $0x20] sm:$0xff]
  %v39 = vld [vmem:[%s1 + $0x28] sm:$0xff]
  %v40 = vld [vmem:[%s1 + $0x30] sm:$0xff]
  %v41 = vld [vmem:[%s1 + $0x38] sm:$0xff]
  %v42 = vld [vmem:[%s1 + $0x40] sm:$0xff]
  %v43 = vld [vmem:[%s1 + $0x48] sm:$0xff]
  %v44 = vld [vmem:[%s1 + $0x50] sm:$0xff]
  %v45 = vld [vmem:[%s1 + $0x58] sm:$0xff]
  %v46 = vld [vmem:[%s1 + $0x60] sm:$0xff]
  %v47 = vld [vmem:[%s1 + $0x68] sm:$0xff]
  %v48 = vld [vmem:[%s1 + $0x70] sm:$0xff]
  %v49 = vld [vmem:[%s1 + $0x78] sm:$0xff]
  %v50 = vld [vmem:[%s1 + $0x80] sm:$0xff]
  %v51 = vld [vmem:[%s1 + $0x88] sm:$0xff]
  %v52 = vld [vmem:[%s1 + $0x90] sm:$0xff]
  %v53 = vld [vmem:[%s1 + $0x98] sm:$0xff]
  %v54 = vld [vmem:[%s1 + $0xa0] sm:$0xff]
  %v55 = vld [vmem:[%s1 + $0xa8] sm:$0xff]
  %v56 = vld [vmem:[%s1 + $0xb0] sm:$0xff]
  %v57 = vld [vmem:[%s1 + $0xb8] sm:$0xff]
  %v58 = vld [vmem:[%s1 + $0xc0] sm:$0xff]
  %v59 = vld [vmem:[%s1 + $0xc8] sm:$0xff]
  %v60 = vld [vmem:[%s1 + $0xd0] sm:$0xff]
  %v61 = vld [vmem:[%s1 + $0xd8] sm:$0xff]
  %v62 = vld [vmem:[%s1 + $0xe0] sm:$0xff]
  %v63 = vld [vmem:[%s1 + $0xe8] sm:$0xff]
  %v64 = vld [vmem:[%s1 + $0xf0] sm:$0xff]
  %v65 = vld [vmem:[%s1 + $0xf8] sm:$0xff]
  %v66 = vld [vmem:[%s1 + $0x100] sm:$0xff]
  %v67 = vld [vmem:[%s1 + $0x108] sm:$0xff]
  %v68 = vld [vmem:[%s1 + $0x110] sm:$0xff]
  %v69 = vld [vmem:[%s1 + $0x118] sm:$0xff]
  %v70 = vld [vmem:[%s1 + $0x120] sm:$0xff]
  %v71 = vld [vmem:[%s1 + $0x128] sm:$0xff]
  %v72 = vld [vmem:[%s1 + $0x130] sm:$0xff]
  %v73 = vld [vmem:[%s1 + $0x138] sm:$0xff]
  %v74 = vld [vmem:[%s1 + $0x140] sm:$0xff]
  %v75 = vld [vmem:[%s1 + $0x148] sm:$0xff]
  %v76 = vld [vmem:[%s1 + $0x150] sm:$0xff]
  %v77 = vld [vmem:[%s1 + $0x158] sm:$0xff]
  %v78 = vld [vmem:[%s1 + $0x160] sm:$0xff]
  %v79 = vld [vmem:[%s1 + $0x168] sm:$0xff]
  %v80 = vld [vmem:[%s1 + $0x170] sm:$0xff]
  %v81 = vld [vmem:[%s1 + $0x178] sm:$0xff]
  %v82 = vld [vmem:[%s1 + $0x180] sm:$0xff]
  %v83 = vld [vmem:[%s1 + $0x188] sm:$0xff]
  %v84 = vld [vmem:[%s1 + $0x190] sm:$0xff]
  %v85 = vld [vmem:[%s1 + $0x198] sm:$0xff]
  %v86 = vld [vmem:[%s1 + $0x1a0] sm:$0xff]
  %v87 = vld [vmem:[%s1 + $0x1a8] sm:$0xff]
  %v88 = vld [vmem:[%s1 + $0x1b0] sm:$0xff]
  %v89 = vld [vmem:[%s1 + $0x1b8] sm:$0xff]
  %v90 = vld [vmem:[%s1 + $0x1c0] sm:$0xff]
  %v91 = vld [vmem:[%s1 + $0x1c8] sm:$0xff]
  %v92 = vld [vmem:[%s1 + $0x1d0] sm:$0xff]
  %v93 = vld [vmem:[%s1 + $0x1d8] sm:$0xff]
  %v94 = vld [vmem:[%s1 + $0x1e0] sm:$0xff]
  %v95 = vld [vmem:[%s1 + $0x1e8] sm:$0xff]
  %v96 = vld [vmem:[%s1 + $0x1f0] sm:$0xff]
  %v97 = vld [vmem:[%s1 + $0x1f8] sm:$0xff]
  %v98 = vld [vmem:[%s1 + $0x200] sm:$0xff]
  %v99 = vld [vmem:[%s1 + $0x208] sm:$0xff]
  %v100 = vld [vmem:[%s1 + $0x210] sm:$0xff]
  %v101 = vld [vmem:[%s1 + $0x218] sm:$0xff]
  %v102 = vld [vmem:[%s1 + $0x220] sm:$0xff]
  %v103 = vld [vmem:[%s1 + $0x228] sm:$0xff]
  %v104 = vld [vmem:[%s1 + $0x230] sm:$0xff]
  %v105 = vld [vmem:[%s1 + $0x238] sm:$0xff]
  %v106 = vld [vmem:[%s1 + $0x240] sm:$0xff]
  %v107 = vld [vmem:[%s1 + $0x248] sm:$0xff]
  %v108 = vld [vmem:[%s1 + $0x250] sm:$0xff]
  %v109 = vld [vmem:[%s1 + $0x258] sm:$0xff]
  %v110 = vld [vmem:[%s1 + $0x260] sm:$0xff]
  %v111 = vld [vmem:[%s1 + $0x268] sm:$0xff]
  %v112 = vld [vmem:[%s1 + $0x270] sm:$0xff]
  %v113 = vld [vmem:[%s1 + $0x278] sm:$0xff]
  %v114 = vld [vmem:[%s1 + $0x280] sm:$0xff]
  %v115 = vld [vmem:[%s1 + $0x288] sm:$0xff]
  %v116 = vld [vmem:[%s1 + $0x290] sm:$0xff]
  %v117 = vld [vmem:[%s1 + $0x298] sm:$0xff]
  %v118 = vld [vmem:[%s1 + $0x2a0] sm:$0xff]
  %v119 = vld [vmem:[%s1 + $0x2a8] sm:$0xff]
  %v120 = vld [vmem:[%s1 + $0x2b0] sm:$0xff]
  %v121 = vld [vmem:[%s1 + $0x2b8] sm:$0xff]
  %v122 = vld [vmem:[%s1 + $0x2c0] sm:$0xff]
  %v123 = vld [vmem:[%s1 + $0x2c8] sm:$0xff]
  %v124 = vld [vmem:[%s1 + $0x2d0] sm:$0xff]
  %v125 = vld [vmem:[%s1 + $0x2d8] sm:$0xff]
  %v126 = vld [vmem:[%s1 + $0x2e0] sm:$0xff]
  %v127 = vld [vmem:[%s1 + $0x2e8] sm:$0xff]
  %v128 = vld [vmem:[%s1 + $0x2f0] sm:$0xff]
  %v129 = vld [vmem:[%s1 + $0x2f8] sm:$0xff]
  %v130 = vld [vmem:[%s1 + $0x300] sm:$0xff]
  %v131 = vld [vmem:[%s1 + $0x308] sm:$0xff]
  %v132 = vld [vmem:[%s1 + $0x310] sm:$0xff]
  %v133 = vld [vmem:[%s1 + $0x318] sm:$0xff]
  %v134 = vld [vmem:[%s1 + $0x320] sm:$0xff]
  %v135 = vld [vmem:[%s1 + $0x328] sm:$0xff]
  %v136 = vld [vmem:[%s1 + $0x330] sm:$0xff]
  %v137 = vld [vmem:[%s1 + $0x338] sm:$0xff]
  %v138 = vld [vmem:[%s1 + $0x340] sm:$0xff]
  %v139 = vld [vmem:[%s1 + $0x348] sm:$0xff]
  %v140 = vld [vmem:[%s1 + $0x350] sm:$0xff]
  %v141 = vld [vmem:[%s1 + $0x358] sm:$0xff]
  %v142 = vld [vmem:[%s1 + $0x360] sm:$0xff]
  %v143 = vld [vmem:[%s1 + $0x368] sm:$0xff]
  %v144 = vld [vmem:[%s1 + $0x370] sm:$0xff]
  %v145 = vld [vmem:[%s1 + $0x378] sm:$0xff]
  %v146 = vld [vmem:[%s1 + $0x380] sm:$0xff]
  %v147 = vld [vmem:[%s1 + $0x388] sm:$0xff]
  %v148 = vld [vmem:[%s1 + $0x390] sm:$0xff]
  %v149 = vld [vmem:[%s1 + $0x398] sm:$0xff]
  %v150 = vld [vmem:[%s1 + $0x3a0] sm:$0xff]
  %v151 = vld [vmem:[%s1 + $0x3a8] sm:$0xff]
  %v152 = vld [vmem:[%s1 + $0x3b0] sm:$0xff]
  %v153 = vld [vmem:[%s1 + $0x3b8] sm:$0xff]
  %v154 = vld [vmem:[%s1 + $0x3c0] sm:$0xff]
  %v155 = vld [vmem:[%s1 + $0x3c8] sm:$0xff]
  %v156 = vld [vmem:[%s1 + $0x3d0] sm:$0xff]
  %v157 = vld [vmem:[%s1 + $0x3d8] sm:$0xff]
  %v158 = vld [vmem:[%s1 + $0x3e0] sm:$0xff]
  %v159 = vld [vmem:[%s1 + $0x3e8] sm:$0xff]
  %v160 = vld [vmem:[%s1 + $0x3f0] sm:$0xff]
  %v161 = vld [vmem:[%s1 + $0x3f8] sm:$0xff]
  %v162 = vld [vmem:[%s2] sm:$0x3]
  %v164 = vperm.slane %v162, 0
  %v165 = vperm.slane %v162, 1
  %168 = vmatpush.msra.mxu0 %v64
  %169 = vmatpush.msra.mxu0 %v62
  %170 = vmatpush.msra.mxu0 %v60
  %171 = vmatpush.msra.mxu0 %v58
  %172 = vmatpush.msra.mxu0 %v56
  %173 = vmatpush.msra.mxu0 %v54
  %174 = vmatpush.msra.mxu0 %v52
  %175 = vmatpush.msra.mxu0 %v50
  %176 = vmatpush.msra.mxu0 %v48
  %177 = vmatpush.msra.mxu0 %v46
  %178 = vmatpush.msra.mxu0 %v44
  %179 = vmatpush.msra.mxu0 %v42
  %180 = vmatpush.msra.mxu0 %v40
  %181 = vmatpush.msra.mxu0 %v38
  %182 = vmatpush.msra.mxu0 %v36
  %183 = vmatpush.msra.mxu0 %v34
  %184 = vmatmul.f32.gmra.mxu0 %v26
  %v185 = vpop.f32.mrf.mxu0
  %v186 = vadd.f32 %v164, %v185
  %187 = vmatmul.f32.gmra.mxu0 %v30
  %v188 = vpop.f32.mrf.mxu0
  %v189 = vadd.f32 %v164, %v188
  %190 = vdwg.mxu0
  %191 = vmatpush.msra.mxu0 %v96
  %192 = vmatpush.msra.mxu0 %v94
  %193 = vmatpush.msra.mxu0 %v92
  %194 = vmatpush.msra.mxu0 %v90
  %195 = vmatpush.msra.mxu0 %v88
  %196 = vmatpush.msra.mxu0 %v86
  %197 = vmatpush.msra.mxu0 %v84
  %198 = vmatpush.msra.mxu0 %v82
  %199 = vmatpush.msra.mxu0 %v80
  %200 = vmatpush.msra.mxu0 %v78
  %201 = vmatpush.msra.mxu0 %v76
  %202 = vmatpush.msra.mxu0 %v74
  %203 = vmatpush.msra.mxu0 %v72
  %204 = vmatpush.msra.mxu0 %v70
  %205 = vmatpush.msra.mxu0 %v68
  %206 = vmatpush.msra.mxu0 %v66
  %207 = vmatmul.f32.gmra.mxu0 %v27
  %v208 = vpop.f32.mrf.mxu0
  %v209 = vadd.f32 %v186, %v208
  %210 = vmatmul.f32.gmra.mxu0 %v31
  %v211 = vpop.f32.mrf.mxu0
  %v212 = vadd.f32 %v189, %v211
  %213 = vdwg.mxu0
  %214 = vmatpush.msra.mxu0 %v128
  %215 = vmatpush.msra.mxu0 %v126
  %216 = vmatpush.msra.mxu0 %v124
  %217 = vmatpush.msra.mxu0 %v122
  %218 = vmatpush.msra.mxu0 %v120
  %219 = vmatpush.msra.mxu0 %v118
  %220 = vmatpush.msra.mxu0 %v116
  %221 = vmatpush.msra.mxu0 %v114
  %222 = vmatpush.msra.mxu0 %v112
  %223 = vmatpush.msra.mxu0 %v110
  %224 = vmatpush.msra.mxu0 %v108
  %225 = vmatpush.msra.mxu0 %v106
  %226 = vmatpush.msra.mxu0 %v104
  %227 = vmatpush.msra.mxu0 %v102
  %228 = vmatpush.msra.mxu0 %v100
  %229 = vmatpush.msra.mxu0 %v98
  %230 = vmatmul.f32.gmra.mxu0 %v28
  %v231 = vpop.f32.mrf.mxu0
  %v232 = vadd.f32 %v209, %v231
  %233 = vmatmul.f32.gmra.mxu0 %v32
  %v234 = vpop.f32.mrf.mxu0
  %v235 = vadd.f32 %v212, %v234
  %236 = vdwg.mxu0
  %237 = vmatpush.msra.mxu0 %v160
  %238 = vmatpush.msra.mxu0 %v158
  %239 = vmatpush.msra.mxu0 %v156
  %240 = vmatpush.msra.mxu0 %v154
  %241 = vmatpush.msra.mxu0 %v152
  %242 = vmatpush.msra.mxu0 %v150
  %243 = vmatpush.msra.mxu0 %v148
  %244 = vmatpush.msra.mxu0 %v146
  %245 = vmatpush.msra.mxu0 %v144
  %246 = vmatpush.msra.mxu0 %v142
  %247 = vmatpush.msra.mxu0 %v140
  %248 = vmatpush.msra.mxu0 %v138
  %249 = vmatpush.msra.mxu0 %v136
  %250 = vmatpush.msra.mxu0 %v134
  %251 = vmatpush.msra.mxu0 %v132
  %252 = vmatpush.msra.mxu0 %v130
  %253 = vmatmul.f32.gmra.mxu0 %v29
  %v254 = vpop.f32.mrf.mxu0
  %v255 = vadd.f32 %v232, %v254
  %256 = vmatmul.f32.gmra.mxu0 %v33
  %v257 = vpop.f32.mrf.mxu0
  %v258 = vadd.f32 %v235, %v257
  %259 = vdwg.mxu0
  %260 = vmatpush.msra.mxu0 %v65
  %261 = vmatpush.msra.mxu0 %v63
  %262 = vmatpush.msra.mxu0 %v61
  %263 = vmatpush.msra.mxu0 %v59
  %264 = vmatpush.msra.mxu0 %v57
  %265 = vmatpush.msra.mxu0 %v55
  %266 = vmatpush.msra.mxu0 %v53
  %267 = vmatpush.msra.mxu0 %v51
  %268 = vmatpush.msra.mxu0 %v49
  %269 = vmatpush.msra.mxu0 %v47
  %270 = vmatpush.msra.mxu0 %v45
  %271 = vmatpush.msra.mxu0 %v43
  %272 = vmatpush.msra.mxu0 %v41
  %273 = vmatpush.msra.mxu0 %v39
  %274 = vmatpush.msra.mxu0 %v37
  %275 = vmatpush.msra.mxu0 %v35
  %276 = vmatmul.f32.gmra.mxu0 %v26
  %v277 = vpop.f32.mrf.mxu0
  %v278 = vadd.f32 %v165, %v277
  %279 = vmatmul.f32.gmra.mxu0 %v30
  %v280 = vpop.f32.mrf.mxu0
  %v281 = vadd.f32 %v165, %v280
  %282 = vdwg.mxu0
  %283 = vmatpush.msra.mxu0 %v97
  %284 = vmatpush.msra.mxu0 %v95
  %285 = vmatpush.msra.mxu0 %v93
  %286 = vmatpush.msra.mxu0 %v91
  %287 = vmatpush.msra.mxu0 %v89
  %288 = vmatpush.msra.mxu0 %v87
  %289 = vmatpush.msra.mxu0 %v85
  %290 = vmatpush.msra.mxu0 %v83
  %291 = vmatpush.msra.mxu0 %v81
  %292 = vmatpush.msra.mxu0 %v79
  %293 = vmatpush.msra.mxu0 %v77
  %294 = vmatpush.msra.mxu0 %v75
  %295 = vmatpush.msra.mxu0 %v73
  %296 = vmatpush.msra.mxu0 %v71
  %297 = vmatpush.msra.mxu0 %v69
  %298 = vmatpush.msra.mxu0 %v67
  %299 = vmatmul.f32.gmra.mxu0 %v27
  %v300 = vpop.f32.mrf.mxu0
  %v301 = vadd.f32 %v278, %v300
  %302 = vmatmul.f32.gmra.mxu0 %v31
  %v303 = vpop.f32.mrf.mxu0
  %v304 = vadd.f32 %v281, %v303
  %305 = vdwg.mxu0
  %306 = vmatpush.msra.mxu0 %v129
  %307 = vmatpush.msra.mxu0 %v127
  %308 = vmatpush.msra.mxu0 %v125
  %309 = vmatpush.msra.mxu0 %v123
  %310 = vmatpush.msra.mxu0 %v121
  %311 = vmatpush.msra.mxu0 %v119
  %312 = vmatpush.msra.mxu0 %v117
  %313 = vmatpush.msra.mxu0 %v115
  %314 = vmatpush.msra.mxu0 %v113
  %315 = vmatpush.msra.mxu0 %v111
  %316 = vmatpush.msra.mxu0 %v109
  %317 = vmatpush.msra.mxu0 %v107
  %318 = vmatpush.msra.mxu0 %v105
  %319 = vmatpush.msra.mxu0 %v103
  %320 = vmatpush.msra.mxu0 %v101
  %321 = vmatpush.msra.mxu0 %v99
  %322 = vmatmul.f32.gmra.mxu0 %v28
  %v323 = vpop.f32.mrf.mxu0
  %v324 = vadd.f32 %v301, %v323
  %325 = vmatmul.f32.gmra.mxu0 %v32
  %v326 = vpop.f32.mrf.mxu0
  %v327 = vadd.f32 %v304, %v326
  %328 = vdwg.mxu0
  %329 = vmatpush.msra.mxu0 %v161
  %330 = vmatpush.msra.mxu0 %v159
  %331 = vmatpush.msra.mxu0 %v157
  %332 = vmatpush.msra.mxu0 %v155
  %333 = vmatpush.msra.mxu0 %v153
  %334 = vmatpush.msra.mxu0 %v151
  %335 = vmatpush.msra.mxu0 %v149
  %336 = vmatpush.msra.mxu0 %v147
  %337 = vmatpush.msra.mxu0 %v145
  %338 = vmatpush.msra.mxu0 %v143
  %339 = vmatpush.msra.mxu0 %v141
  %340 = vmatpush.msra.mxu0 %v139
  %341 = vmatpush.msra.mxu0 %v137
  %342 = vmatpush.msra.mxu0 %v135
  %343 = vmatpush.msra.mxu0 %v133
  %344 = vmatpush.msra.mxu0 %v131
  %345 = vmatmul.f32.gmra.mxu0 %v29
  %v346 = vpop.f32.mrf.mxu0
  %v347 = vadd.f32 %v324, %v346
  %348 = vmatmul.f32.gmra.mxu0 %v33
  %v349 = vpop.f32.mrf.mxu0
  %v350 = vadd.f32 %v327, %v349
  %351 = vdwg.mxu0
  %v352 = vmul.f32 %v255, 0.01
  %v353 = vmul.f32 %v347, 0.01
  %v354 = vmul.f32 %v258, 0.01
  %v355 = vmul.f32 %v350, 0.01
  %v356 = vmax.f32 %v255, %v352
  %v357 = vmax.f32 %v347, %v353
  %v358 = vmax.f32 %v258, %v354
  %v359 = vmax.f32 %v350, %v355
  %v360 = vld [vmem:[%s3] sm:$0xff]
  %v361 = vld [vmem:[%s3 + $0x8] sm:$0xff]
  %v362 = vld [vmem:[%s3 + $0x10] sm:$0xff]
  %v363 = vld [vmem:[%s3 + $0x18] sm:$0xff]
  %v364 = vld [vmem:[%s3 + $0x20] sm:$0xff]
  %v365 = vld [vmem:[%s3 + $0x28] sm:$0xff]
  %v366 = vld [vmem:[%s3 + $0x30] sm:$0xff]
  %v367 = vld [vmem:[%s3 + $0x38] sm:$0xff]
  %v368 = vld [vmem:[%s3 + $0x40] sm:$0xff]
  %v369 = vld [vmem:[%s3 + $0x48] sm:$0xff]
  %v370 = vld [vmem:[%s3 + $0x50] sm:$0xff]
  %v371 = vld [vmem:[%s3 + $0x58] sm:$0xff]
  %v372 = vld [vmem:[%s3 + $0x60] sm:$0xff]
  %v373 = vld [vmem:[%s3 + $0x68] sm:$0xff]
  %v374 = vld [vmem:[%s3 + $0x70] sm:$0xff]
  %v375 = vld [vmem:[%s3 + $0x78] sm:$0xff]
  %v376 = vld [vmem:[%s3 + $0x80] sm:$0xff]
  %v377 = vld [vmem:[%s3 + $0x88] sm:$0xff]
  %v378 = vld [vmem:[%s3 + $0x90] sm:$0xff]
  %v379 = vld [vmem:[%s3 + $0x98] sm:$0xff]
  %v380 = vld [vmem:[%s3 + $0xa0] sm:$0xff]
  %v381 = vld [vmem:[%s3 + $0xa8] sm:$0xff]
  %v382 = vld [vmem:[%s3 + $0xb0] sm:$0xff]
  %v383 = vld [vmem:[%s3 + $0xb8] sm:$0xff]
  %v384 = vld [vmem:[%s3 + $0xc0] sm:$0xff]
  %v385 = vld [vmem:[%s3 + $0xc8] sm:$0xff]
  %v386 = vld [vmem:[%s3 + $0xd0] sm:$0xff]
  %v387 = vld [vmem:[%s3 + $0xd8] sm:$0xff]
  %v388 = vld [vmem:[%s3 + $0xe0] sm:$0xff]
  %v389 = vld [vmem:[%s3 + $0xe8] sm:$0xff]
  %v390 = vld [vmem:[%s3 + $0xf0] sm:$0xff]
  %v391 = vld [vmem:[%s3 + $0xf8] sm:$0xff]
  %v392 = vld [vmem:[%s3 + $0x100] sm:$0xff]
  %v393 = vld [vmem:[%s3 + $0x108] sm:$0xff]
  %v394 = vld [vmem:[%s3 + $0x110] sm:$0xff]
  %v395 = vld [vmem:[%s3 + $0x118] sm:$0xff]
  %v396 = vld [vmem:[%s3 + $0x120] sm:$0xff]
  %v397 = vld [vmem:[%s3 + $0x128] sm:$0xff]
  %v398 = vld [vmem:[%s3 + $0x130] sm:$0xff]
  %v399 = vld [vmem:[%s3 + $0x138] sm:$0xff]
  %v400 = vld [vmem:[%s3 + $0x140] sm:$0xff]
  %v401 = vld [vmem:[%s3 + $0x148] sm:$0xff]
  %v402 = vld [vmem:[%s3 + $0x150] sm:$0xff]
  %v403 = vld [vmem:[%s3 + $0x158] sm:$0xff]
  %v404 = vld [vmem:[%s3 + $0x160] sm:$0xff]
  %v405 = vld [vmem:[%s3 + $0x168] sm:$0xff]
  %v406 = vld [vmem:[%s3 + $0x170] sm:$0xff]
  %v407 = vld [vmem:[%s3 + $0x178] sm:$0xff]
  %v408 = vld [vmem:[%s3 + $0x180] sm:$0xff]
  %v409 = vld [vmem:[%s3 + $0x188] sm:$0xff]
  %v410 = vld [vmem:[%s3 + $0x190] sm:$0xff]
  %v411 = vld [vmem:[%s3 + $0x198] sm:$0xff]
  %v412 = vld [vmem:[%s3 + $0x1a0] sm:$0xff]
  %v413 = vld [vmem:[%s3 + $0x1a8] sm:$0xff]
  %v414 = vld [vmem:[%s3 + $0x1b0] sm:$0xff]
  %v415 = vld [vmem:[%s3 + $0x1b8] sm:$0xff]
  %v416 = vld [vmem:[%s3 + $0x1c0] sm:$0xff]
  %v417 = vld [vmem:[%s3 + $0x1c8] sm:$0xff]
  %v418 = vld [vmem:[%s3 + $0x1d0] sm:$0xff]
  %v419 = vld [vmem:[%s3 + $0x1d8] sm:$0xff]
  %v420 = vld [vmem:[%s3 + $0x1e0] sm:$0xff]
  %v421 = vld [vmem:[%s3 + $0x1e8] sm:$0xff]
  %v422 = vld [vmem:[%s3 + $0x1f0] sm:$0xff]
  %v423 = vld [vmem:[%s3 + $0x1f8] sm:$0xff]
  %v424 = vld [vmem:[%s4] sm:$0x3]
  %v426 = vperm.slane %v424, 0
  %v427 = vperm.slane %v424, 1
  %430 = vmatpush.msra.mxu0 %v390
  %431 = vmatpush.msra.mxu0 %v388
  %432 = vmatpush.msra.mxu0 %v386
  %433 = vmatpush.msra.mxu0 %v384
  %434 = vmatpush.msra.mxu0 %v382
  %435 = vmatpush.msra.mxu0 %v380
  %436 = vmatpush.msra.mxu0 %v378
  %437 = vmatpush.msra.mxu0 %v376
  %438 = vmatpush.msra.mxu0 %v374
  %439 = vmatpush.msra.mxu0 %v372
  %440 = vmatpush.msra.mxu0 %v370
  %441 = vmatpush.msra.mxu0 %v368
  %442 = vmatpush.msra.mxu0 %v366
  %443 = vmatpush.msra.mxu0 %v364
  %444 = vmatpush.msra.mxu0 %v362
  %445 = vmatpush.msra.mxu0 %v360
  %446 = vmatmul.f32.gmra.mxu0 %v356
  %v447 = vpop.f32.mrf.mxu0
  %v448 = vadd.f32 %v426, %v447
  %449 = vmatmul.f32.gmra.mxu0 %v358
  %v450 = vpop.f32.mrf.mxu0
  %v451 = vadd.f32 %v426, %v450
  %452 = vdwg.mxu0
  %453 = vmatpush.msra.mxu0 %v422
  %454 = vmatpush.msra.mxu0 %v420
  %455 = vmatpush.msra.mxu0 %v418
  %456 = vmatpush.msra.mxu0 %v416
  %457 = vmatpush.msra.mxu0 %v414
  %458 = vmatpush.msra.mxu0 %v412
  %459 = vmatpush.msra.mxu0 %v410
  %460 = vmatpush.msra.mxu0 %v408
  %461 = vmatpush.msra.mxu0 %v406
  %462 = vmatpush.msra.mxu0 %v404
  %463 = vmatpush.msra.mxu0 %v402
  %464 = vmatpush.msra.mxu0 %v400
  %465 = vmatpush.msra.mxu0 %v398
  %466 = vmatpush.msra.mxu0 %v396
  %467 = vmatpush.msra.mxu0 %v394
  %468 = vmatpush.msra.mxu0 %v392
  %469 = vmatmul.f32.gmra.mxu0 %v357
  %v470 = vpop.f32.mrf.mxu0
  %v471 = vadd.f32 %v448, %v470
  %472 = vmatmul.f32.gmra.mxu0 %v359
  %v473 = vpop.f32.mrf.mxu0
  %v474 = vadd.f32 %v451, %v473
  %475 = vdwg.mxu0
  %476 = vmatpush.msra.mxu0 %v391
  %477 = vmatpush.msra.mxu0 %v389
  %478 = vmatpush.msra.mxu0 %v387
  %479 = vmatpush.msra.mxu0 %v385
  %480 = vmatpush.msra.mxu0 %v383
  %481 = vmatpush.msra.mxu0 %v381
  %482 = vmatpush.msra.mxu0 %v379
  %483 = vmatpush.msra.mxu0 %v377
  %484 = vmatpush.msra.mxu0 %v375
  %485 = vmatpush.msra.mxu0 %v373
  %486 = vmatpush.msra.mxu0 %v371
  %487 = vmatpush.msra.mxu0 %v369
  %488 = vmatpush.msra.mxu0 %v367
  %489 = vmatpush.msra.mxu0 %v365
  %490 = vmatpush.msra.mxu0 %v363
  %491 = vmatpush.msra.mxu0 %v361
  %492 = vmatmul.f32.gmra.mxu0 %v356
  %v493 = vpop.f32.mrf.mxu0
  %v494 = vadd.f32 %v427, %v493
  %495 = vmatmul.f32.gmra.mxu0 %v358
  %v496 = vpop.f32.mrf.mxu0
  %v497 = vadd.f32 %v427, %v496
  %498 = vdwg.mxu0
  %499 = vmatpush.msra.mxu0 %v423
  %500 = vmatpush.msra.mxu0 %v421
  %501 = vmatpush.msra.mxu0 %v419
  %502 = vmatpush.msra.mxu0 %v417
  %503 = vmatpush.msra.mxu0 %v415
  %504 = vmatpush.msra.mxu0 %v413
  %505 = vmatpush.msra.mxu0 %v411
  %506 = vmatpush.msra.mxu0 %v409
  %507 = vmatpush.msra.mxu0 %v407
  %508 = vmatpush.msra.mxu0 %v405
  %509 = vmatpush.msra.mxu0 %v403
  %510 = vmatpush.msra.mxu0 %v401
  %511 = vmatpush.msra.mxu0 %v399
  %512 = vmatpush.msra.mxu0 %v397
  %513 = vmatpush.msra.mxu0 %v395
  %514 = vmatpush.msra.mxu0 %v393
  %515 = vmatmul.f32.gmra.mxu0 %v357
  %v516 = vpop.f32.mrf.mxu0
  %v517 = vadd.f32 %v494, %v516
  %518 = vmatmul.f32.gmra.mxu0 %v359
  %v519 = vpop.f32.mrf.mxu0
  %v520 = vadd.f32 %v497, %v519
  %521 = vdwg.mxu0
  %v522 = vmul.f32 %v471, 0.01
  %v523 = vmul.f32 %v517, 0.01
  %v524 = vmul.f32 %v474, 0.01
  %v525 = vmul.f32 %v520, 0.01
  %v526 = vmax.f32 %v471, %v522
  %v527 = vmax.f32 %v517, %v523
  %v528 = vmax.f32 %v474, %v524
  %v529 = vmax.f32 %v520, %v525
  %v530 = vld [vmem:[%s5] sm:$0xff]
  %v531 = vld [vmem:[%s5 + $0x8] sm:$0xff]
  %v532 = vld [vmem:[%s5 + $0x10] sm:$0xff]
  %v533 = vld [vmem:[%s5 + $0x18] sm:$0xff]
  %v534 = vld [vmem:[%s5 + $0x20] sm:$0xff]
  %v535 = vld [vmem:[%s5 + $0x28] sm:$0xff]
  %v536 = vld [vmem:[%s5 + $0x30] sm:$0xff]
  %v537 = vld [vmem:[%s5 + $0x38] sm:$0xff]
  %v538 = vld [vmem:[%s5 + $0x40] sm:$0xff]
  %v539 = vld [vmem:[%s5 + $0x48] sm:$0xff]
  %v540 = vld [vmem:[%s5 + $0x50] sm:$0xff]
  %v541 = vld [vmem:[%s5 + $0x58] sm:$0xff]
  %v542 = vld [vmem:[%s5 + $0x60] sm:$0xff]
  %v543 = vld [vmem:[%s5 + $0x68] sm:$0xff]
  %v544 = vld [vmem:[%s5 + $0x70] sm:$0xff]
  %v545 = vld [vmem:[%s5 + $0x78] sm:$0xff]
  %v546 = vld [vmem:[%s5 + $0x80] sm:$0xff]
  %v547 = vld [vmem:[%s5 + $0x88] sm:$0xff]
  %v548 = vld [vmem:[%s5 + $0x90] sm:$0xff]
  %v549 = vld [vmem:[%s5 + $0x98] sm:$0xff]
  %v550 = vld [vmem:[%s5 + $0xa0] sm:$0xff]
  %v551 = vld [vmem:[%s5 + $0xa8] sm:$0xff]
  %v552 = vld [vmem:[%s5 + $0xb0] sm:$0xff]
  %v553 = vld [vmem:[%s5 + $0xb8] sm:$0xff]
  %v554 = vld [vmem:[%s5 + $0xc0] sm:$0xff]
  %v555 = vld [vmem:[%s5 + $0xc8] sm:$0xff]
  %v556 = vld [vmem:[%s5 + $0xd0] sm:$0xff]
  %v557 = vld [vmem:[%s5 + $0xd8] sm:$0xff]
  %v558 = vld [vmem:[%s5 + $0xe0] sm:$0xff]
  %v559 = vld [vmem:[%s5 + $0xe8] sm:$0xff]
  %v560 = vld [vmem:[%s5 + $0xf0] sm:$0xff]
  %v561 = vld [vmem:[%s5 + $0xf8] sm:$0xff]
  %v562 = vld [vmem:[%s6] sm:$0x1]
  %v564 = vperm.slane %v562, 0
  %566 = vmatpush.msra.mxu0 %v545
  %567 = vmatpush.msra.mxu0 %v544
  %568 = vmatpush.msra.mxu0 %v543
  %569 = vmatpush.msra.mxu0 %v542
  %570 = vmatpush.msra.mxu0 %v541
  %571 = vmatpush.msra.mxu0 %v540
  %572 = vmatpush.msra.mxu0 %v539
  %573 = vmatpush.msra.mxu0 %v538
  %574 = vmatpush.msra.mxu0 %v537
  %575 = vmatpush.msra.mxu0 %v536
  %576 = vmatpush.msra.mxu0 %v535
  %577 = vmatpush.msra.mxu0 %v534
  %578 = vmatpush.msra.mxu0 %v533
  %579 = vmatpush.msra.mxu0 %v532
  %580 = vmatpush.msra.mxu0 %v531
  %581 = vmatpush.msra.mxu0 %v530
  %582 = vmatmul.f32.gmra.mxu0 %v526
  %v583 = vpop.f32.mrf.mxu0
  %v584 = vadd.f32 %v564, %v583
  %585 = vmatmul.f32.gmra.mxu0 %v528
  %v586 = vpop.f32.mrf.mxu0
  %v587 = vadd.f32 %v564, %v586
  %588 = vdwg.mxu0
  %589 = vmatpush.msra.mxu0 %v561
  %590 = vmatpush.msra.mxu0 %v560
  %591 = vmatpush.msra.mxu0 %v559
  %592 = vmatpush.msra.mxu0 %v558
  %593 = vmatpush.msra.mxu0 %v557
  %594 = vmatpush.msra.mxu0 %v556
  %595 = vmatpush.msra.mxu0 %v555
  %596 = vmatpush.msra.mxu0 %v554
  %597 = vmatpush.msra.mxu0 %v553
  %598 = vmatpush.msra.mxu0 %v552
  %599 = vmatpush.msra.mxu0 %v551
  %600 = vmatpush.msra.mxu0 %v550
  %601 = vmatpush.msra.mxu0 %v549
  %602 = vmatpush.msra.mxu0 %v548
  %603 = vmatpush.msra.mxu0 %v547
  %604 = vmatpush.msra.mxu0 %v546
  %605 = vmatmul.f32.gmra.mxu0 %v527
  %v606 = vpop.f32.mrf.mxu0
  %v607 = vadd.f32 %v584, %v606
  %608 = vmatmul.f32.gmra.mxu0 %v529
  %v609 = vpop.f32.mrf.mxu0
  %v610 = vadd.f32 %v587, %v609
  %611 = vdwg.mxu0
  %612 = vst [vmem:[%s7] sm:$0xff] %v607
  %613 = vst [vmem:[%s7 + $0x8] sm:$0xff] %v610
  // Predicated region
  $region30: #{graph_agent_forward.6} parent=0 // pred_check
    _
  $region31: #{graph_agent_forward.6} parent=0 // pred_check_branch
    %615 = sbr.rel (0) target = $region33
  $region32: #{graph_agent_forward.6} parent=0 // pred_region
    _
  $region33: #{graph_agent_forward.6} parent=0 // pred_fallthru
    _
  // Predicated region
  $region34: #{graph_agent_forward.6} parent=0 // pred_check
    _
  $region35: #{graph_agent_forward.6} parent=0 // pred_check_branch
    %617 = sbr.rel (0) target = $region37
  $region36: #{graph_agent_forward.6} parent=0 // pred_region
    _
  $region37: #{graph_agent_forward.6} parent=0 // pred_fallthru
    _

// kernel: graph_agent_forward.5
$region0: #{graph_agent_forward.5}
  #allocation0 [shape = 'u32[]', space=smem, size = 0x4, offset = 0x4, fixed_abs, tag = 'smem constant byte address 0x4 - core index']
  #allocation1 [shape = 'u32[72,128]{1,0:T(1,128)}', space=vmem, size = 0x9000, scoped, tag = 'internal scratch']
  #allocation2 [shape = 'f32[128,256]{1,0:T(8,128)}', space=vmem, size = 0x20000, scoped, tag = 'scratch operand']
  %s0 = inlined_call_operand.vmem [shape: f32[128,256], index: 0, kind: input, shape index: {}]
  %s1 = inlined_call_operand.vmem [shape: f32[256,256], index: 1, kind: input, shape index: {}]
  %s2 = inlined_call_operand.vmem [shape: f32[128,256], index: 2, kind: input, shape index: {}]
  %s3 = inlined_call_operand.vmem [shape: f32[128,1], index: 3, kind: input, shape index: {}]
  %s4 = inlined_call_operand.vmem [shape: f32[256,256], index: 4, kind: input, shape index: {}]
  %s5 = inlined_call_operand.vmem [shape: f32[1,256], index: 5, kind: input, shape index: {}]
  %s6 = inlined_call_operand.vmem [shape: f32[128,256], index: 6, kind: output, shape index: {}]
  %s7 = sld [smem:[#allocation0]]
  $region42: #{graph_agent_forward.5} parent=0
    _
  %s9 = ssub.s32 1, %s7
  %s10 = scalar_select 0, %s9, %s7
  // Predicated region
  $region2: #{graph_agent_forward.5} parent=0 // pred_check
    _
  $region3: #{graph_agent_forward.5} parent=0 // pred_check_branch
    %12 = sbr.rel (0) target = $region5
  $region4: #{graph_agent_forward.5} parent=0 // pred_region
    _
  $region5: #{graph_agent_forward.5} parent=0 // pred_fallthru
    _
  // Predicated region
  $region6: #{graph_agent_forward.5} parent=0 // pred_check
    _
  $region7: #{graph_agent_forward.5} parent=0 // pred_check_branch
    %14 = sbr.rel (0) target = $region9
  $region8: #{graph_agent_forward.5} parent=0 // pred_region
    _
  $region9: #{graph_agent_forward.5} parent=0 // pred_fallthru
    _
  // Predicated region
  $region10: #{graph_agent_forward.5} parent=0 // pred_check
    _
  $region11: #{graph_agent_forward.5} parent=0 // pred_check_branch
    %16 = sbr.rel (0) target = $region13
  $region12: #{graph_agent_forward.5} parent=0 // pred_region
    _
  $region13: #{graph_agent_forward.5} parent=0 // pred_fallthru
    _
  // Predicated region
  $region14: #{graph_agent_forward.5} parent=0 // pred_check
    _
  $region15: #{graph_agent_forward.5} parent=0 // pred_check_branch
    %18 = sbr.rel (0) target = $region17
  $region16: #{graph_agent_forward.5} parent=0 // pred_region
    _
  $region17: #{graph_agent_forward.5} parent=0 // pred_fallthru
    _
  // Predicated region
  $region18: #{graph_agent_forward.5} parent=0 // pred_check
    _
  $region19: #{graph_agent_forward.5} parent=0 // pred_check_branch
    %20 = sbr.rel (0) target = $region21
  $region20: #{graph_agent_forward.5} parent=0 // pred_region
    _
  $region21: #{graph_agent_forward.5} parent=0 // pred_fallthru
    _
  // Predicated region
  $region22: #{graph_agent_forward.5} parent=0 // pred_check
    _
  $region23: #{graph_agent_forward.5} parent=0 // pred_check_branch
    %22 = sbr.rel (0) target = $region25
  $region24: #{graph_agent_forward.5} parent=0 // pred_region
    _
  $region25: #{graph_agent_forward.5} parent=0 // pred_fallthru
    _
  %p23 = scmp.eq.s32.totalorder 0, 0
  // Predicated region
  $region26: #{graph_agent_forward.5} parent=0 // pred_check
    %p24 = pneg %p23
  $region27: #{graph_agent_forward.5} parent=0 // pred_check_branch
    %26 = sbr.rel (%p24) target = $region29
  $region28: #{graph_agent_forward.5} parent=0 // pred_region
    %27 = vst [vmem:[#allocation2] sm:$0xff] 0.0
    %28 = vst [vmem:[#allocation2 + $0x8] sm:$0xff] 0.0
    %29 = vst [vmem:[#allocation2 + $0x10] sm:$0xff] 0.0
    %30 = vst [vmem:[#allocation2 + $0x18] sm:$0xff] 0.0
    %31 = vst [vmem:[#allocation2 + $0x20] sm:$0xff] 0.0
    %32 = vst [vmem:[#allocation2 + $0x28] sm:$0xff] 0.0
    %33 = vst [vmem:[#allocation2 + $0x30] sm:$0xff] 0.0
    %34 = vst [vmem:[#allocation2 + $0x38] sm:$0xff] 0.0
    %35 = vst [vmem:[#allocation2 + $0x40] sm:$0xff] 0.0
    %36 = vst [vmem:[#allocation2 + $0x48] sm:$0xff] 0.0
    %37 = vst [vmem:[#allocation2 + $0x50] sm:$0xff] 0.0
    %38 = vst [vmem:[#allocation2 + $0x58] sm:$0xff] 0.0
    %39 = vst [vmem:[#allocation2 + $0x60] sm:$0xff] 0.0
    %40 = vst [vmem:[#allocation2 + $0x68] sm:$0xff] 0.0
    %41 = vst [vmem:[#allocation2 + $0x70] sm:$0xff] 0.0
    %42 = vst [vmem:[#allocation2 + $0x78] sm:$0xff] 0.0
    %43 = vst [vmem:[#allocation2 + $0x80] sm:$0xff] 0.0
    %44 = vst [vmem:[#allocation2 + $0x88] sm:$0xff] 0.0
    %45 = vst [vmem:[#allocation2 + $0x90] sm:$0xff] 0.0
    %46 = vst [vmem:[#allocation2 + $0x98] sm:$0xff] 0.0
    %47 = vst [vmem:[#allocation2 + $0xa0] sm:$0xff] 0.0
    %48 = vst [vmem:[#allocation2 + $0xa8] sm:$0xff] 0.0
    %49 = vst [vmem:[#allocation2 + $0xb0] sm:$0xff] 0.0
    %50 = vst [vmem:[#allocation2 + $0xb8] sm:$0xff] 0.0
    %51 = vst [vmem:[#allocation2 + $0xc0] sm:$0xff] 0.0
    %52 = vst [vmem:[#allocation2 + $0xc8] sm:$0xff] 0.0
    %53 = vst [vmem:[#allocation2 + $0xd0] sm:$0xff] 0.0
    %54 = vst [vmem:[#allocation2 + $0xd8] sm:$0xff] 0.0
    %55 = vst [vmem:[#allocation2 + $0xe0] sm:$0xff] 0.0
    %56 = vst [vmem:[#allocation2 + $0xe8] sm:$0xff] 0.0
    %57 = vst [vmem:[#allocation2 + $0xf0] sm:$0xff] 0.0
    %58 = vst [vmem:[#allocation2 + $0xf8] sm:$0xff] 0.0
  $region29: #{graph_agent_forward.5} parent=0 // pred_fallthru
    _
  %v59 = vld [vmem:[#allocation2] sm:$0xff]
  %v60 = vld [vmem:[#allocation2 + $0x8] sm:$0xff]
  %v61 = vld [vmem:[#allocation2 + $0x10] sm:$0xff]
  %v62 = vld [vmem:[#allocation2 + $0x18] sm:$0xff]
  %v63 = vld [vmem:[#allocation2 + $0x20] sm:$0xff]
  %v64 = vld [vmem:[#allocation2 + $0x28] sm:$0xff]
  %v65 = vld [vmem:[#allocation2 + $0x30] sm:$0xff]
  %v66 = vld [vmem:[#allocation2 + $0x38] sm:$0xff]
  %v67 = vld [vmem:[#allocation2 + $0x40] sm:$0xff]
  %v68 = vld [vmem:[#allocation2 + $0x48] sm:$0xff]
  %v69 = vld [vmem:[#allocation2 + $0x50] sm:$0xff]
  %v70 = vld [vmem:[#allocation2 + $0x58] sm:$0xff]
  %v71 = vld [vmem:[#allocation2 + $0x60] sm:$0xff]
  %v72 = vld [vmem:[#allocation2 + $0x68] sm:$0xff]
  %v73 = vld [vmem:[#allocation2 + $0x70] sm:$0xff]
  %v74 = vld [vmem:[#allocation2 + $0x78] sm:$0xff]
  %v75 = vld [vmem:[#allocation2 + $0x80] sm:$0xff]
  %v76 = vld [vmem:[#allocation2 + $0x88] sm:$0xff]
  %v77 = vld [vmem:[#allocation2 + $0x90] sm:$0xff]
  %v78 = vld [vmem:[#allocation2 + $0x98] sm:$0xff]
  %v79 = vld [vmem:[#allocation2 + $0xa0] sm:$0xff]
  %v80 = vld [vmem:[#allocation2 + $0xa8] sm:$0xff]
  %v81 = vld [vmem:[#allocation2 + $0xb0] sm:$0xff]
  %v82 = vld [vmem:[#allocation2 + $0xb8] sm:$0xff]
  %v83 = vld [vmem:[#allocation2 + $0xc0] sm:$0xff]
  %v84 = vld [vmem:[#allocation2 + $0xc8] sm:$0xff]
  %v85 = vld [vmem:[#allocation2 + $0xd0] sm:$0xff]
  %v86 = vld [vmem:[#allocation2 + $0xd8] sm:$0xff]
  %v87 = vld [vmem:[#allocation2 + $0xe0] sm:$0xff]
  %v88 = vld [vmem:[#allocation2 + $0xe8] sm:$0xff]
  %v89 = vld [vmem:[#allocation2 + $0xf0] sm:$0xff]
  %v90 = vld [vmem:[#allocation2 + $0xf8] sm:$0xff]
  %v91 = vld [vmem:[%s0] sm:$0xff]
  %v92 = vld [vmem:[%s0 + $0x8] sm:$0xff]
  %v93 = vld [vmem:[%s0 + $0x10] sm:$0xff]
  %v94 = vld [vmem:[%s0 + $0x18] sm:$0xff]
  %v95 = vld [vmem:[%s0 + $0x20] sm:$0xff]
  %v96 = vld [vmem:[%s0 + $0x28] sm:$0xff]
  %v97 = vld [vmem:[%s0 + $0x30] sm:$0xff]
  %v98 = vld [vmem:[%s0 + $0x38] sm:$0xff]
  %v99 = vld [vmem:[%s0 + $0x40] sm:$0xff]
  %v100 = vld [vmem:[%s0 + $0x48] sm:$0xff]
  %v101 = vld [vmem:[%s0 + $0x50] sm:$0xff]
  %v102 = vld [vmem:[%s0 + $0x58] sm:$0xff]
  %v103 = vld [vmem:[%s0 + $0x60] sm:$0xff]
  %v104 = vld [vmem:[%s0 + $0x68] sm:$0xff]
  %v105 = vld [vmem:[%s0 + $0x70] sm:$0xff]
  %v106 = vld [vmem:[%s0 + $0x78] sm:$0xff]
  %v107 = vld [vmem:[%s0 + $0x80] sm:$0xff]
  %v108 = vld [vmem:[%s0 + $0x88] sm:$0xff]
  %v109 = vld [vmem:[%s0 + $0x90] sm:$0xff]
  %v110 = vld [vmem:[%s0 + $0x98] sm:$0xff]
  %v111 = vld [vmem:[%s0 + $0xa0] sm:$0xff]
  %v112 = vld [vmem:[%s0 + $0xa8] sm:$0xff]
  %v113 = vld [vmem:[%s0 + $0xb0] sm:$0xff]
  %v114 = vld [vmem:[%s0 + $0xb8] sm:$0xff]
  %v115 = vld [vmem:[%s0 + $0xc0] sm:$0xff]
  %v116 = vld [vmem:[%s0 + $0xc8] sm:$0xff]
  %v117 = vld [vmem:[%s0 + $0xd0] sm:$0xff]
  %v118 = vld [vmem:[%s0 + $0xd8] sm:$0xff]
  %v119 = vld [vmem:[%s0 + $0xe0] sm:$0xff]
  %v120 = vld [vmem:[%s0 + $0xe8] sm:$0xff]
  %v121 = vld [vmem:[%s0 + $0xf0] sm:$0xff]
  %v122 = vld [vmem:[%s0 + $0xf8] sm:$0xff]
  %v123 = vld [vmem:[%s1] sm:$0xff]
  %v124 = vld [vmem:[%s1 + $0x8] sm:$0xff]
  %v125 = vld [vmem:[%s1 + $0x10] sm:$0xff]
  %v126 = vld [vmem:[%s1 + $0x18] sm:$0xff]
  %v127 = vld [vmem:[%s1 + $0x20] sm:$0xff]
  %v128 = vld [vmem:[%s1 + $0x28] sm:$0xff]
  %v129 = vld [vmem:[%s1 + $0x30] sm:$0xff]
  %v130 = vld [vmem:[%s1 + $0x38] sm:$0xff]
  %v131 = vld [vmem:[%s1 + $0x40] sm:$0xff]
  %v132 = vld [vmem:[%s1 + $0x48] sm:$0xff]
  %v133 = vld [vmem:[%s1 + $0x50] sm:$0xff]
  %v134 = vld [vmem:[%s1 + $0x58] sm:$0xff]
  %v135 = vld [vmem:[%s1 + $0x60] sm:$0xff]
  %v136 = vld [vmem:[%s1 + $0x68] sm:$0xff]
  %v137 = vld [vmem:[%s1 + $0x70] sm:$0xff]
  %v138 = vld [vmem:[%s1 + $0x78] sm:$0xff]
  %v139 = vld [vmem:[%s1 + $0x80] sm:$0xff]
  %v140 = vld [vmem:[%s1 + $0x88] sm:$0xff]
  %v141 = vld [vmem:[%s1 + $0x90] sm:$0xff]
  %v142 = vld [vmem:[%s1 + $0x98] sm:$0xff]
  %v143 = vld [vmem:[%s1 + $0xa0] sm:$0xff]
  %v144 = vld [vmem:[%s1 + $0xa8] sm:$0xff]
  %v145 = vld [vmem:[%s1 + $0xb0] sm:$0xff]
  %v146 = vld [vmem:[%s1 + $0xb8] sm:$0xff]
  %v147 = vld [vmem:[%s1 + $0xc0] sm:$0xff]
  %v148 = vld [vmem:[%s1 + $0xc8] sm:$0xff]
  %v149 = vld [vmem:[%s1 + $0xd0] sm:$0xff]
  %v150 = vld [vmem:[%s1 + $0xd8] sm:$0xff]
  %v151 = vld [vmem:[%s1 + $0xe0] sm:$0xff]
  %v152 = vld [vmem:[%s1 + $0xe8] sm:$0xff]
  %v153 = vld [vmem:[%s1 + $0xf0] sm:$0xff]
  %v154 = vld [vmem:[%s1 + $0xf8] sm:$0xff]
  %v155 = vld [vmem:[%s1 + $0x100] sm:$0xff]
  %v156 = vld [vmem:[%s1 + $0x108] sm:$0xff]
  %v157 = vld [vmem:[%s1 + $0x110] sm:$0xff]
  %v158 = vld [vmem:[%s1 + $0x118] sm:$0xff]
  %v159 = vld [vmem:[%s1 + $0x120] sm:$0xff]
  %v160 = vld [vmem:[%s1 + $0x128] sm:$0xff]
  %v161 = vld [vmem:[%s1 + $0x130] sm:$0xff]
  %v162 = vld [vmem:[%s1 + $0x138] sm:$0xff]
  %v163 = vld [vmem:[%s1 + $0x140] sm:$0xff]
  %v164 = vld [vmem:[%s1 + $0x148] sm:$0xff]
  %v165 = vld [vmem:[%s1 + $0x150] sm:$0xff]
  %v166 = vld [vmem:[%s1 + $0x158] sm:$0xff]
  %v167 = vld [vmem:[%s1 + $0x160] sm:$0xff]
  %v168 = vld [vmem:[%s1 + $0x168] sm:$0xff]
  %v169 = vld [vmem:[%s1 + $0x170] sm:$0xff]
  %v170 = vld [vmem:[%s1 + $0x178] sm:$0xff]
  %v171 = vld [vmem:[%s1 + $0x180] sm:$0xff]
  %v172 = vld [vmem:[%s1 + $0x188] sm:$0xff]
  %v173 = vld [vmem:[%s1 + $0x190] sm:$0xff]
  %v174 = vld [vmem:[%s1 + $0x198] sm:$0xff]
  %v175 = vld [vmem:[%s1 + $0x1a0] sm:$0xff]
  %v176 = vld [vmem:[%s1 + $0x1a8] sm:$0xff]
  %v177 = vld [vmem:[%s1 + $0x1b0] sm:$0xff]
  %v178 = vld [vmem:[%s1 + $0x1b8] sm:$0xff]
  %v179 = vld [vmem:[%s1 + $0x1c0] sm:$0xff]
  %v180 = vld [vmem:[%s1 + $0x1c8] sm:$0xff]
  %v181 = vld [vmem:[%s1 + $0x1d0] sm:$0xff]
  %v182 = vld [vmem:[%s1 + $0x1d8] sm:$0xff]
  %v183 = vld [vmem:[%s1 + $0x1e0] sm:$0xff]
  %v184 = vld [vmem:[%s1 + $0x1e8] sm:$0xff]
  %v185 = vld [vmem:[%s1 + $0x1f0] sm:$0xff]
  %v186 = vld [vmem:[%s1 + $0x1f8] sm:$0xff]
  %187 = vmatpush.msra.mxu0 %v153
  %188 = vmatpush.msra.mxu0 %v151
  %189 = vmatpush.msra.mxu0 %v149
  %190 = vmatpush.msra.mxu0 %v147
  %191 = vmatpush.msra.mxu0 %v145
  %192 = vmatpush.msra.mxu0 %v143
  %193 = vmatpush.msra.mxu0 %v141
  %194 = vmatpush.msra.mxu0 %v139
  %195 = vmatpush.msra.mxu0 %v137
  %196 = vmatpush.msra.mxu0 %v135
  %197 = vmatpush.msra.mxu0 %v133
  %198 = vmatpush.msra.mxu0 %v131
  %199 = vmatpush.msra.mxu0 %v129
  %200 = vmatpush.msra.mxu0 %v127
  %201 = vmatpush.msra.mxu0 %v125
  %202 = vmatpush.msra.mxu0 %v123
  %203 = vmatmul.f32.gmra.mxu0 %v91
  %v204 = vpop.f32.mrf.mxu0
  %v205 = vadd.f32 0.0, %v204
  %206 = vmatmul.f32.gmra.mxu0 %v93
  %v207 = vpop.f32.mrf.mxu0
  %v208 = vadd.f32 0.0, %v207
  %209 = vmatmul.f32.gmra.mxu0 %v95
  %v210 = vpop.f32.mrf.mxu0
  %v211 = vadd.f32 0.0, %v210
  %212 = vmatmul.f32.gmra.mxu0 %v97
  %v213 = vpop.f32.mrf.mxu0
  %v214 = vadd.f32 0.0, %v213
  %215 = vmatmul.f32.gmra.mxu0 %v99
  %v216 = vpop.f32.mrf.mxu0
  %v217 = vadd.f32 0.0, %v216
  %218 = vmatmul.f32.gmra.mxu0 %v101
  %v219 = vpop.f32.mrf.mxu0
  %v220 = vadd.f32 0.0, %v219
  %221 = vmatmul.f32.gmra.mxu0 %v103
  %v222 = vpop.f32.mrf.mxu0
  %v223 = vadd.f32 0.0, %v222
  %224 = vmatmul.f32.gmra.mxu0 %v105
  %v225 = vpop.f32.mrf.mxu0
  %v226 = vadd.f32 0.0, %v225
  %227 = vmatmul.f32.gmra.mxu0 %v107
  %v228 = vpop.f32.mrf.mxu0
  %v229 = vadd.f32 0.0, %v228
  %230 = vmatmul.f32.gmra.mxu0 %v109
  %v231 = vpop.f32.mrf.mxu0
  %v232 = vadd.f32 0.0, %v231
  %233 = vmatmul.f32.gmra.mxu0 %v111
  %v234 = vpop.f32.mrf.mxu0
  %v235 = vadd.f32 0.0, %v234
  %236 = vmatmul.f32.gmra.mxu0 %v113
  %v237 = vpop.f32.mrf.mxu0
  %v238 = vadd.f32 0.0, %v237
  %239 = vmatmul.f32.gmra.mxu0 %v115
  %v240 = vpop.f32.mrf.mxu0
  %v241 = vadd.f32 0.0, %v240
  %242 = vmatmul.f32.gmra.mxu0 %v117
  %v243 = vpop.f32.mrf.mxu0
  %v244 = vadd.f32 0.0, %v243
  %245 = vmatmul.f32.gmra.mxu0 %v119
  %v246 = vpop.f32.mrf.mxu0
  %v247 = vadd.f32 0.0, %v246
  %248 = vmatmul.f32.gmra.mxu0 %v121
  %v249 = vpop.f32.mrf.mxu0
  %v250 = vadd.f32 0.0, %v249
  %251 = vdwg.mxu0
  %252 = vmatpush.msra.mxu0 %v185
  %253 = vmatpush.msra.mxu0 %v183
  %254 = vmatpush.msra.mxu0 %v181
  %255 = vmatpush.msra.mxu0 %v179
  %256 = vmatpush.msra.mxu0 %v177
  %257 = vmatpush.msra.mxu0 %v175
  %258 = vmatpush.msra.mxu0 %v173
  %259 = vmatpush.msra.mxu0 %v171
  %260 = vmatpush.msra.mxu0 %v169
  %261 = vmatpush.msra.mxu0 %v167
  %262 = vmatpush.msra.mxu0 %v165
  %263 = vmatpush.msra.mxu0 %v163
  %264 = vmatpush.msra.mxu0 %v161
  %265 = vmatpush.msra.mxu0 %v159
  %266 = vmatpush.msra.mxu0 %v157
  %267 = vmatpush.msra.mxu0 %v155
  %268 = vmatmul.f32.gmra.mxu0 %v92
  %v269 = vpop.f32.mrf.mxu0
  %v270 = vadd.f32 %v205, %v269
  %271 = vmatmul.f32.gmra.mxu0 %v94
  %v272 = vpop.f32.mrf.mxu0
  %v273 = vadd.f32 %v208, %v272
  %274 = vmatmul.f32.gmra.mxu0 %v96
  %v275 = vpop.f32.mrf.mxu0
  %v276 = vadd.f32 %v211, %v275
  %277 = vmatmul.f32.gmra.mxu0 %v98
  %v278 = vpop.f32.mrf.mxu0
  %v279 = vadd.f32 %v214, %v278
  %280 = vmatmul.f32.gmra.mxu0 %v100
  %v281 = vpop.f32.mrf.mxu0
  %v282 = vadd.f32 %v217, %v281
  %283 = vmatmul.f32.gmra.mxu0 %v102
  %v284 = vpop.f32.mrf.mxu0
  %v285 = vadd.f32 %v220, %v284
  %286 = vmatmul.f32.gmra.mxu0 %v104
  %v287 = vpop.f32.mrf.mxu0
  %v288 = vadd.f32 %v223, %v287
  %289 = vmatmul.f32.gmra.mxu0 %v106
  %v290 = vpop.f32.mrf.mxu0
  %v291 = vadd.f32 %v226, %v290
  %292 = vmatmul.f32.gmra.mxu0 %v108
  %v293 = vpop.f32.mrf.mxu0
  %v294 = vadd.f32 %v229, %v293
  %295 = vmatmul.f32.gmra.mxu0 %v110
  %v296 = vpop.f32.mrf.mxu0
  %v297 = vadd.f32 %v232, %v296
  %298 = vmatmul.f32.gmra.mxu0 %v112
  %v299 = vpop.f32.mrf.mxu0
  %v300 = vadd.f32 %v235, %v299
  %301 = vmatmul.f32.gmra.mxu0 %v114
  %v302 = vpop.f32.mrf.mxu0
  %v303 = vadd.f32 %v238, %v302
  %304 = vmatmul.f32.gmra.mxu0 %v116
  %v305 = vpop.f32.mrf.mxu0
  %v306 = vadd.f32 %v241, %v305
  %307 = vmatmul.f32.gmra.mxu0 %v118
  %v308 = vpop.f32.mrf.mxu0
  %v309 = vadd.f32 %v244, %v308
  %310 = vmatmul.f32.gmra.mxu0 %v120
  %v311 = vpop.f32.mrf.mxu0
  %v312 = vadd.f32 %v247, %v311
  %313 = vmatmul.f32.gmra.mxu0 %v122
  %v314 = vpop.f32.mrf.mxu0
  %v315 = vadd.f32 %v250, %v314
  %316 = vdwg.mxu0
  %317 = vmatpush.msra.mxu0 %v154
  %318 = vmatpush.msra.mxu0 %v152
  %319 = vmatpush.msra.mxu0 %v150
  %320 = vmatpush.msra.mxu0 %v148
  %321 = vmatpush.msra.mxu0 %v146
  %322 = vmatpush.msra.mxu0 %v144
  %323 = vmatpush.msra.mxu0 %v142
  %324 = vmatpush.msra.mxu0 %v140
  %325 = vmatpush.msra.mxu0 %v138
  %326 = vmatpush.msra.mxu0 %v136
  %327 = vmatpush.msra.mxu0 %v134
  %328 = vmatpush.msra.mxu0 %v132
  %329 = vmatpush.msra.mxu0 %v130
  %330 = vmatpush.msra.mxu0 %v128
  %331 = vmatpush.msra.mxu0 %v126
  %332 = vmatpush.msra.mxu0 %v124
  %333 = vmatmul.f32.gmra.mxu0 %v91
  %v334 = vpop.f32.mrf.mxu0
  %v335 = vadd.f32 0.0, %v334
  %336 = vmatmul.f32.gmra.mxu0 %v93
  %v337 = vpop.f32.mrf.mxu0
  %v338 = vadd.f32 0.0, %v337
  %339 = vmatmul.f32.gmra.mxu0 %v95
  %v340 = vpop.f32.mrf.mxu0
  %v341 = vadd.f32 0.0, %v340
  %342 = vmatmul.f32.gmra.mxu0 %v97
  %v343 = vpop.f32.mrf.mxu0
  %v344 = vadd.f32 0.0, %v343
  %345 = vmatmul.f32.gmra.mxu0 %v99
  %v346 = vpop.f32.mrf.mxu0
  %v347 = vadd.f32 0.0, %v346
  %348 = vmatmul.f32.gmra.mxu0 %v101
  %v349 = vpop.f32.mrf.mxu0
  %v350 = vadd.f32 0.0, %v349
  %351 = vmatmul.f32.gmra.mxu0 %v103
  %v352 = vpop.f32.mrf.mxu0
  %v353 = vadd.f32 0.0, %v352
  %354 = vmatmul.f32.gmra.mxu0 %v105
  %v355 = vpop.f32.mrf.mxu0
  %v356 = vadd.f32 0.0, %v355
  %357 = vmatmul.f32.gmra.mxu0 %v107
  %v358 = vpop.f32.mrf.mxu0
  %v359 = vadd.f32 0.0, %v358
  %360 = vmatmul.f32.gmra.mxu0 %v109
  %v361 = vpop.f32.mrf.mxu0
  %v362 = vadd.f32 0.0, %v361
  %363 = vmatmul.f32.gmra.mxu0 %v111
  %v364 = vpop.f32.mrf.mxu0
  %v365 = vadd.f32 0.0, %v364
  %366 = vmatmul.f32.gmra.mxu0 %v113
  %v367 = vpop.f32.mrf.mxu0
  %v368 = vadd.f32 0.0, %v367
  %369 = vmatmul.f32.gmra.mxu0 %v115
  %v370 = vpop.f32.mrf.mxu0
  %v371 = vadd.f32 0.0, %v370
  %372 = vmatmul.f32.gmra.mxu0 %v117
  %v373 = vpop.f32.mrf.mxu0
  %v374 = vadd.f32 0.0, %v373
  %375 = vmatmul.f32.gmra.mxu0 %v119
  %v376 = vpop.f32.mrf.mxu0
  %v377 = vadd.f32 0.0, %v376
  %378 = vmatmul.f32.gmra.mxu0 %v121
  %v379 = vpop.f32.mrf.mxu0
  %v380 = vadd.f32 0.0, %v379
  %381 = vdwg.mxu0
  %382 = vmatpush.msra.mxu0 %v186
  %383 = vmatpush.msra.mxu0 %v184
  %384 = vmatpush.msra.mxu0 %v182
  %385 = vmatpush.msra.mxu0 %v180
  %386 = vmatpush.msra.mxu0 %v178
  %387 = vmatpush.msra.mxu0 %v176
  %388 = vmatpush.msra.mxu0 %v174
  %389 = vmatpush.msra.mxu0 %v172
  %390 = vmatpush.msra.mxu0 %v170
  %391 = vmatpush.msra.mxu0 %v168
  %392 = vmatpush.msra.mxu0 %v166
  %393 = vmatpush.msra.mxu0 %v164
  %394 = vmatpush.msra.mxu0 %v162
  %395 = vmatpush.msra.mxu0 %v160
  %396 = vmatpush.msra.mxu0 %v158
  %397 = vmatpush.msra.mxu0 %v156
  %398 = vmatmul.f32.gmra.mxu0 %v92
  %v399 = vpop.f32.mrf.mxu0
  %v400 = vadd.f32 %v335, %v399
  %401 = vmatmul.f32.gmra.mxu0 %v94
  %v402 = vpop.f32.mrf.mxu0
  %v403 = vadd.f32 %v338, %v402
  %404 = vmatmul.f32.gmra.mxu0 %v96
  %v405 = vpop.f32.mrf.mxu0
  %v406 = vadd.f32 %v341, %v405
  %407 = vmatmul.f32.gmra.mxu0 %v98
  %v408 = vpop.f32.mrf.mxu0
  %v409 = vadd.f32 %v344, %v408
  %410 = vmatmul.f32.gmra.mxu0 %v100
  %v411 = vpop.f32.mrf.mxu0
  %v412 = vadd.f32 %v347, %v411
  %413 = vmatmul.f32.gmra.mxu0 %v102
  %v414 = vpop.f32.mrf.mxu0
  %v415 = vadd.f32 %v350, %v414
  %416 = vmatmul.f32.gmra.mxu0 %v104
  %v417 = vpop.f32.mrf.mxu0
  %v418 = vadd.f32 %v353, %v417
  %419 = vmatmul.f32.gmra.mxu0 %v106
  %v420 = vpop.f32.mrf.mxu0
  %v421 = vadd.f32 %v356, %v420
  %422 = vmatmul.f32.gmra.mxu0 %v108
  %v423 = vpop.f32.mrf.mxu0
  %v424 = vadd.f32 %v359, %v423
  %425 = vmatmul.f32.gmra.mxu0 %v110
  %v426 = vpop.f32.mrf.mxu0
  %v427 = vadd.f32 %v362, %v426
  %428 = vmatmul.f32.gmra.mxu0 %v112
  %v429 = vpop.f32.mrf.mxu0
  %v430 = vadd.f32 %v365, %v429
  %431 = vmatmul.f32.gmra.mxu0 %v114
  %v432 = vpop.f32.mrf.mxu0
  %v433 = vadd.f32 %v368, %v432
  %434 = vmatmul.f32.gmra.mxu0 %v116
  %v435 = vpop.f32.mrf.mxu0
  %v436 = vadd.f32 %v371, %v435
  %437 = vmatmul.f32.gmra.mxu0 %v118
  %v438 = vpop.f32.mrf.mxu0
  %v439 = vadd.f32 %v374, %v438
  %440 = vmatmul.f32.gmra.mxu0 %v120
  %v441 = vpop.f32.mrf.mxu0
  %v442 = vadd.f32 %v377, %v441
  %443 = vmatmul.f32.gmra.mxu0 %v122
  %v444 = vpop.f32.mrf.mxu0
  %v445 = vadd.f32 %v380, %v444
  %446 = vdwg.mxu0
  %v447 = vadd.f32 %v59, %v270
  %v448 = vadd.f32 %v60, %v400
  %v449 = vadd.f32 %v61, %v273
  %v450 = vadd.f32 %v62, %v403
  %v451 = vadd.f32 %v63, %v276
  %v452 = vadd.f32 %v64, %v406
  %v453 = vadd.f32 %v65, %v279
  %v454 = vadd.f32 %v66, %v409
  %v455 = vadd.f32 %v67, %v282
  %v456 = vadd.f32 %v68, %v412
  %v457 = vadd.f32 %v69, %v285
  %v458 = vadd.f32 %v70, %v415
  %v459 = vadd.f32 %v71, %v288
  %v460 = vadd.f32 %v72, %v418
  %v461 = vadd.f32 %v73, %v291
  %v462 = vadd.f32 %v74, %v421
  %v463 = vadd.f32 %v75, %v294
  %v464 = vadd.f32 %v76, %v424
  %v465 = vadd.f32 %v77, %v297
  %v466 = vadd.f32 %v78, %v427
  %v467 = vadd.f32 %v79, %v300
  %v468 = vadd.f32 %v80, %v430
  %v469 = vadd.f32 %v81, %v303
  %v470 = vadd.f32 %v82, %v433
  %v471 = vadd.f32 %v83, %v306
  %v472 = vadd.f32 %v84, %v436
  %v473 = vadd.f32 %v85, %v309
  %v474 = vadd.f32 %v86, %v439
  %v475 = vadd.f32 %v87, %v312
  %v476 = vadd.f32 %v88, %v442
  %v477 = vadd.f32 %v89, %v315
  %v478 = vadd.f32 %v90, %v445
  %479 = vst [vmem:[#allocation2] sm:$0xff] %v447
  %480 = vst [vmem:[#allocation2 + $0x8] sm:$0xff] %v448
  %481 = vst [vmem:[#allocation2 + $0x10] sm:$0xff] %v449
  %482 = vst [vmem:[#allocation2 + $0x18] sm:$0xff] %v450
  %483 = vst [vmem:[#allocation2 + $0x20] sm:$0xff] %v451
  %484 = vst [vmem:[#allocation2 + $0x28] sm:$0xff] %v452
  %485 = vst [vmem:[#allocation2 + $0x30] sm:$0xff] %v453
  %486 = vst [vmem:[#allocation2 + $0x38] sm:$0xff] %v454
  %487 = vst [vmem:[#allocation2 + $0x40] sm:$0xff] %v455
  %488 = vst [vmem:[#allocation2 + $0x48] sm:$0xff] %v456
  %489 = vst [vmem:[#allocation2 + $0x50] sm:$0xff] %v457
  %490 = vst [vmem:[#allocation2 + $0x58] sm:$0xff] %v458
  %491 = vst [vmem:[#allocation2 + $0x60] sm:$0xff] %v459
  %492 = vst [vmem:[#allocation2 + $0x68] sm:$0xff] %v460
  %493 = vst [vmem:[#allocation2 + $0x70] sm:$0xff] %v461
  %494 = vst [vmem:[#allocation2 + $0x78] sm:$0xff] %v462
  %495 = vst [vmem:[#allocation2 + $0x80] sm:$0xff] %v463
  %496 = vst [vmem:[#allocation2 + $0x88] sm:$0xff] %v464
  %497 = vst [vmem:[#allocation2 + $0x90] sm:$0xff] %v465
  %498 = vst [vmem:[#allocation2 + $0x98] sm:$0xff] %v466
  %499 = vst [vmem:[#allocation2 + $0xa0] sm:$0xff] %v467
  %500 = vst [vmem:[#allocation2 + $0xa8] sm:$0xff] %v468
  %501 = vst [vmem:[#allocation2 + $0xb0] sm:$0xff] %v469
  %502 = vst [vmem:[#allocation2 + $0xb8] sm:$0xff] %v470
  %503 = vst [vmem:[#allocation2 + $0xc0] sm:$0xff] %v471
  %504 = vst [vmem:[#allocation2 + $0xc8] sm:$0xff] %v472
  %505 = vst [vmem:[#allocation2 + $0xd0] sm:$0xff] %v473
  %506 = vst [vmem:[#allocation2 + $0xd8] sm:$0xff] %v474
  %507 = vst [vmem:[#allocation2 + $0xe0] sm:$0xff] %v475
  %508 = vst [vmem:[#allocation2 + $0xe8] sm:$0xff] %v476
  %509 = vst [vmem:[#allocation2 + $0xf0] sm:$0xff] %v477
  %510 = vst [vmem:[#allocation2 + $0xf8] sm:$0xff] %v478
  // Predicated region
  $region30: #{graph_agent_forward.5} parent=0 // pred_check
    %p511 = pneg %p23
  $region31: #{graph_agent_forward.5} parent=0 // pred_check_branch
    %513 = sbr.rel (%p511) target = $region33
  $region32: #{graph_agent_forward.5} parent=0 // pred_region
    %v514 = vld [vmem:[#allocation2] sm:$0xff]
    %v515 = vld [vmem:[#allocation2 + $0x8] sm:$0xff]
    %v516 = vld [vmem:[#allocation2 + $0x10] sm:$0xff]
    %v517 = vld [vmem:[#allocation2 + $0x18] sm:$0xff]
    %v518 = vld [vmem:[#allocation2 + $0x20] sm:$0xff]
    %v519 = vld [vmem:[#allocation2 + $0x28] sm:$0xff]
    %v520 = vld [vmem:[#allocation2 + $0x30] sm:$0xff]
    %v521 = vld [vmem:[#allocation2 + $0x38] sm:$0xff]
    %v522 = vld [vmem:[#allocation2 + $0x40] sm:$0xff]
    %v523 = vld [vmem:[#allocation2 + $0x48] sm:$0xff]
    %v524 = vld [vmem:[#allocation2 + $0x50] sm:$0xff]
    %v525 = vld [vmem:[#allocation2 + $0x58] sm:$0xff]
    %v526 = vld [vmem:[#allocation2 + $0x60] sm:$0xff]
    %v527 = vld [vmem:[#allocation2 + $0x68] sm:$0xff]
    %v528 = vld [vmem:[#allocation2 + $0x70] sm:$0xff]
    %v529 = vld [vmem:[#allocation2 + $0x78] sm:$0xff]
    %v530 = vld [vmem:[#allocation2 + $0x80] sm:$0xff]
    %v531 = vld [vmem:[#allocation2 + $0x88] sm:$0xff]
    %v532 = vld [vmem:[#allocation2 + $0x90] sm:$0xff]
    %v533 = vld [vmem:[#allocation2 + $0x98] sm:$0xff]
    %v534 = vld [vmem:[#allocation2 + $0xa0] sm:$0xff]
    %v535 = vld [vmem:[#allocation2 + $0xa8] sm:$0xff]
    %v536 = vld [vmem:[#allocation2 + $0xb0] sm:$0xff]
    %v537 = vld [vmem:[#allocation2 + $0xb8] sm:$0xff]
    %v538 = vld [vmem:[#allocation2 + $0xc0] sm:$0xff]
    %v539 = vld [vmem:[#allocation2 + $0xc8] sm:$0xff]
    %v540 = vld [vmem:[#allocation2 + $0xd0] sm:$0xff]
    %v541 = vld [vmem:[#allocation2 + $0xd8] sm:$0xff]
    %v542 = vld [vmem:[#allocation2 + $0xe0] sm:$0xff]
    %v543 = vld [vmem:[#allocation2 + $0xe8] sm:$0xff]
    %v544 = vld [vmem:[#allocation2 + $0xf0] sm:$0xff]
    %v545 = vld [vmem:[#allocation2 + $0xf8] sm:$0xff]
    %v546 = vld [vmem:[%s3] sm:$0xff]
    %v547 = vld [vmem:[%s3 + $0x8] sm:$0xff]
    %v548 = vld [vmem:[%s3 + $0x10] sm:$0xff]
    %v549 = vld [vmem:[%s3 + $0x18] sm:$0xff]
    %v550 = vld [vmem:[%s3 + $0x20] sm:$0xff]
    %v551 = vld [vmem:[%s3 + $0x28] sm:$0xff]
    %v552 = vld [vmem:[%s3 + $0x30] sm:$0xff]
    %v553 = vld [vmem:[%s3 + $0x38] sm:$0xff]
    %v554 = vld [vmem:[%s3 + $0x40] sm:$0xff]
    %v555 = vld [vmem:[%s3 + $0x48] sm:$0xff]
    %v556 = vld [vmem:[%s3 + $0x50] sm:$0xff]
    %v557 = vld [vmem:[%s3 + $0x58] sm:$0xff]
    %v558 = vld [vmem:[%s3 + $0x60] sm:$0xff]
    %v559 = vld [vmem:[%s3 + $0x68] sm:$0xff]
    %v560 = vld [vmem:[%s3 + $0x70] sm:$0xff]
    %v561 = vld [vmem:[%s3 + $0x78] sm:$0xff]
    %563 = vset.pattern.permute.xlu0 0
    %564 = vperm.xlu0 %563, %v546
    %v565 = vpop.permute.xlu0 %564
    %568 = vset.pattern.permute.xlu0 0
    %569 = vperm.xlu0 %568, %v547
    %v570 = vpop.permute.xlu0 %569
    %573 = vset.pattern.permute.xlu0 0
    %574 = vperm.xlu0 %573, %v548
    %v575 = vpop.permute.xlu0 %574
    %578 = vset.pattern.permute.xlu0 0
    %579 = vperm.xlu0 %578, %v549
    %v580 = vpop.permute.xlu0 %579
    %583 = vset.pattern.permute.xlu0 0
    %584 = vperm.xlu0 %583, %v550
    %v585 = vpop.permute.xlu0 %584
    %588 = vset.pattern.permute.xlu0 0
    %589 = vperm.xlu0 %588, %v551
    %v590 = vpop.permute.xlu0 %589
    %593 = vset.pattern.permute.xlu0 0
    %594 = vperm.xlu0 %593, %v552
    %v595 = vpop.permute.xlu0 %594
    %598 = vset.pattern.permute.xlu0 0
    %599 = vperm.xlu0 %598, %v553
    %v600 = vpop.permute.xlu0 %599
    %603 = vset.pattern.permute.xlu0 0
    %604 = vperm.xlu0 %603, %v554
    %v605 = vpop.permute.xlu0 %604
    %608 = vset.pattern.permute.xlu0 0
    %609 = vperm.xlu0 %608, %v555
    %v610 = vpop.permute.xlu0 %609
    %613 = vset.pattern.permute.xlu0 0
    %614 = vperm.xlu0 %613, %v556
    %v615 = vpop.permute.xlu0 %614
    %618 = vset.pattern.permute.xlu0 0
    %619 = vperm.xlu0 %618, %v557
    %v620 = vpop.permute.xlu0 %619
    %623 = vset.pattern.permute.xlu0 0
    %624 = vperm.xlu0 %623, %v558
    %v625 = vpop.permute.xlu0 %624
    %628 = vset.pattern.permute.xlu0 0
    %629 = vperm.xlu0 %628, %v559
    %v630 = vpop.permute.xlu0 %629
    %633 = vset.pattern.permute.xlu0 0
    %634 = vperm.xlu0 %633, %v560
    %v635 = vpop.permute.xlu0 %634
    %638 = vset.pattern.permute.xlu0 0
    %639 = vperm.xlu0 %638, %v561
    %v640 = vpop.permute.xlu0 %639
    %v642 = vmul.f32 %v514, %v565
    %v643 = vmul.f32 %v515, %v565
    %v644 = vmul.f32 %v516, %v570
    %v645 = vmul.f32 %v517, %v570
    %v646 = vmul.f32 %v518, %v575
    %v647 = vmul.f32 %v519, %v575
    %v648 = vmul.f32 %v520, %v580
    %v649 = vmul.f32 %v521, %v580
    %v650 = vmul.f32 %v522, %v585
    %v651 = vmul.f32 %v523, %v585
    %v652 = vmul.f32 %v524, %v590
    %v653 = vmul.f32 %v525, %v590
    %v654 = vmul.f32 %v526, %v595
    %v655 = vmul.f32 %v527, %v595
    %v656 = vmul.f32 %v528, %v600
    %v657 = vmul.f32 %v529, %v600
    %v658 = vmul.f32 %v530, %v605
    %v659 = vmul.f32 %v531, %v605
    %v660 = vmul.f32 %v532, %v610
    %v661 = vmul.f32 %v533, %v610
    %v662 = vmul.f32 %v534, %v615
    %v663 = vmul.f32 %v535, %v615
    %v664 = vmul.f32 %v536, %v620
    %v665 = vmul.f32 %v537, %v620
    %v666 = vmul.f32 %v538, %v625
    %v667 = vmul.f32 %v539, %v625
    %v668 = vmul.f32 %v540, %v630
    %v669 = vmul.f32 %v541, %v630
    %v670 = vmul.f32 %v542, %v635
    %v671 = vmul.f32 %v543, %v635
    %v672 = vmul.f32 %v544, %v640
    %v673 = vmul.f32 %v545, %v640
    %v674 = vld [vmem:[%s2] sm:$0xff]
    %v675 = vld [vmem:[%s2 + $0x8] sm:$0xff]
    %v676 = vld [vmem:[%s2 + $0x10] sm:$0xff]
    %v677 = vld [vmem:[%s2 + $0x18] sm:$0xff]
    %v678 = vld [vmem:[%s2 + $0x20] sm:$0xff]
    %v679 = vld [vmem:[%s2 + $0x28] sm:$0xff]
    %v680 = vld [vmem:[%s2 + $0x30] sm:$0xff]
    %v681 = vld [vmem:[%s2 + $0x38] sm:$0xff]
    %v682 = vld [vmem:[%s2 + $0x40] sm:$0xff]
    %v683 = vld [vmem:[%s2 + $0x48] sm:$0xff]
    %v684 = vld [vmem:[%s2 + $0x50] sm:$0xff]
    %v685 = vld [vmem:[%s2 + $0x58] sm:$0xff]
    %v686 = vld [vmem:[%s2 + $0x60] sm:$0xff]
    %v687 = vld [vmem:[%s2 + $0x68] sm:$0xff]
    %v688 = vld [vmem:[%s2 + $0x70] sm:$0xff]
    %v689 = vld [vmem:[%s2 + $0x78] sm:$0xff]
    %v690 = vld [vmem:[%s2 + $0x80] sm:$0xff]
    %v691 = vld [vmem:[%s2 + $0x88] sm:$0xff]
    %v692 = vld [vmem:[%s2 + $0x90] sm:$0xff]
    %v693 = vld [vmem:[%s2 + $0x98] sm:$0xff]
    %v694 = vld [vmem:[%s2 + $0xa0] sm:$0xff]
    %v695 = vld [vmem:[%s2 + $0xa8] sm:$0xff]
    %v696 = vld [vmem:[%s2 + $0xb0] sm:$0xff]
    %v697 = vld [vmem:[%s2 + $0xb8] sm:$0xff]
    %v698 = vld [vmem:[%s2 + $0xc0] sm:$0xff]
    %v699 = vld [vmem:[%s2 + $0xc8] sm:$0xff]
    %v700 = vld [vmem:[%s2 + $0xd0] sm:$0xff]
    %v701 = vld [vmem:[%s2 + $0xd8] sm:$0xff]
    %v702 = vld [vmem:[%s2 + $0xe0] sm:$0xff]
    %v703 = vld [vmem:[%s2 + $0xe8] sm:$0xff]
    %v704 = vld [vmem:[%s2 + $0xf0] sm:$0xff]
    %v705 = vld [vmem:[%s2 + $0xf8] sm:$0xff]
    %v706 = vadd.f32 %v642, %v674
    %v707 = vadd.f32 %v643, %v675
    %v708 = vadd.f32 %v644, %v676
    %v709 = vadd.f32 %v645, %v677
    %v710 = vadd.f32 %v646, %v678
    %v711 = vadd.f32 %v647, %v679
    %v712 = vadd.f32 %v648, %v680
    %v713 = vadd.f32 %v649, %v681
    %v714 = vadd.f32 %v650, %v682
    %v715 = vadd.f32 %v651, %v683
    %v716 = vadd.f32 %v652, %v684
    %v717 = vadd.f32 %v653, %v685
    %v718 = vadd.f32 %v654, %v686
    %v719 = vadd.f32 %v655, %v687
    %v720 = vadd.f32 %v656, %v688
    %v721 = vadd.f32 %v657, %v689
    %v722 = vadd.f32 %v658, %v690
    %v723 = vadd.f32 %v659, %v691
    %v724 = vadd.f32 %v660, %v692
    %v725 = vadd.f32 %v661, %v693
    %v726 = vadd.f32 %v662, %v694
    %v727 = vadd.f32 %v663, %v695
    %v728 = vadd.f32 %v664, %v696
    %v729 = vadd.f32 %v665, %v697
    %v730 = vadd.f32 %v666, %v698
    %v731 = vadd.f32 %v667, %v699
    %v732 = vadd.f32 %v668, %v700
    %v733 = vadd.f32 %v669, %v701
    %v734 = vadd.f32 %v670, %v702
    %v735 = vadd.f32 %v671, %v703
    %v736 = vadd.f32 %v672, %v704
    %v737 = vadd.f32 %v673, %v705
    %v738 = vld [vmem:[%s4] sm:$0xff]
    %v739 = vld [vmem:[%s4 + $0x8] sm:$0xff]
    %v740 = vld [vmem:[%s4 + $0x10] sm:$0xff]
    %v741 = vld [vmem:[%s4 + $0x18] sm:$0xff]
    %v742 = vld [vmem:[%s4 + $0x20] sm:$0xff]
    %v743 = vld [vmem:[%s4 + $0x28] sm:$0xff]
    %v744 = vld [vmem:[%s4 + $0x30] sm:$0xff]
    %v745 = vld [vmem:[%s4 + $0x38] sm:$0xff]
    %v746 = vld [vmem:[%s4 + $0x40] sm:$0xff]
    %v747 = vld [vmem:[%s4 + $0x48] sm:$0xff]
    %v748 = vld [vmem:[%s4 + $0x50] sm:$0xff]
    %v749 = vld [vmem:[%s4 + $0x58] sm:$0xff]
    %v750 = vld [vmem:[%s4 + $0x60] sm:$0xff]
    %v751 = vld [vmem:[%s4 + $0x68] sm:$0xff]
    %v752 = vld [vmem:[%s4 + $0x70] sm:$0xff]
    %v753 = vld [vmem:[%s4 + $0x78] sm:$0xff]
    %v754 = vld [vmem:[%s4 + $0x80] sm:$0xff]
    %v755 = vld [vmem:[%s4 + $0x88] sm:$0xff]
    %v756 = vld [vmem:[%s4 + $0x90] sm:$0xff]
    %v757 = vld [vmem:[%s4 + $0x98] sm:$0xff]
    %v758 = vld [vmem:[%s4 + $0xa0] sm:$0xff]
    %v759 = vld [vmem:[%s4 + $0xa8] sm:$0xff]
    %v760 = vld [vmem:[%s4 + $0xb0] sm:$0xff]
    %v761 = vld [vmem:[%s4 + $0xb8] sm:$0xff]
    %v762 = vld [vmem:[%s4 + $0xc0] sm:$0xff]
    %v763 = vld [vmem:[%s4 + $0xc8] sm:$0xff]
    %v764 = vld [vmem:[%s4 + $0xd0] sm:$0xff]
    %v765 = vld [vmem:[%s4 + $0xd8] sm:$0xff]
    %v766 = vld [vmem:[%s4 + $0xe0] sm:$0xff]
    %v767 = vld [vmem:[%s4 + $0xe8] sm:$0xff]
    %v768 = vld [vmem:[%s4 + $0xf0] sm:$0xff]
    %v769 = vld [vmem:[%s4 + $0xf8] sm:$0xff]
    %v770 = vld [vmem:[%s4 + $0x100] sm:$0xff]
    %v771 = vld [vmem:[%s4 + $0x108] sm:$0xff]
    %v772 = vld [vmem:[%s4 + $0x110] sm:$0xff]
    %v773 = vld [vmem:[%s4 + $0x118] sm:$0xff]
    %v774 = vld [vmem:[%s4 + $0x120] sm:$0xff]
    %v775 = vld [vmem:[%s4 + $0x128] sm:$0xff]
    %v776 = vld [vmem:[%s4 + $0x130] sm:$0xff]
    %v777 = vld [vmem:[%s4 + $0x138] sm:$0xff]
    %v778 = vld [vmem:[%s4 + $0x140] sm:$0xff]
    %v779 = vld [vmem:[%s4 + $0x148] sm:$0xff]
    %v780 = vld [vmem:[%s4 + $0x150] sm:$0xff]
    %v781 = vld [vmem:[%s4 + $0x158] sm:$0xff]
    %v782 = vld [vmem:[%s4 + $0x160] sm:$0xff]
    %v783 = vld [vmem:[%s4 + $0x168] sm:$0xff]
    %v784 = vld [vmem:[%s4 + $0x170] sm:$0xff]
    %v785 = vld [vmem:[%s4 + $0x178] sm:$0xff]
    %v786 = vld [vmem:[%s4 + $0x180] sm:$0xff]
    %v787 = vld [vmem:[%s4 + $0x188] sm:$0xff]
    %v788 = vld [vmem:[%s4 + $0x190] sm:$0xff]
    %v789 = vld [vmem:[%s4 + $0x198] sm:$0xff]
    %v790 = vld [vmem:[%s4 + $0x1a0] sm:$0xff]
    %v791 = vld [vmem:[%s4 + $0x1a8] sm:$0xff]
    %v792 = vld [vmem:[%s4 + $0x1b0] sm:$0xff]
    %v793 = vld [vmem:[%s4 + $0x1b8] sm:$0xff]
    %v794 = vld [vmem:[%s4 + $0x1c0] sm:$0xff]
    %v795 = vld [vmem:[%s4 + $0x1c8] sm:$0xff]
    %v796 = vld [vmem:[%s4 + $0x1d0] sm:$0xff]
    %v797 = vld [vmem:[%s4 + $0x1d8] sm:$0xff]
    %v798 = vld [vmem:[%s4 + $0x1e0] sm:$0xff]
    %v799 = vld [vmem:[%s4 + $0x1e8] sm:$0xff]
    %v800 = vld [vmem:[%s4 + $0x1f0] sm:$0xff]
    %v801 = vld [vmem:[%s4 + $0x1f8] sm:$0xff]
    %v802 = vld [vmem:[%s5] sm:$0x3]
    %v804 = vperm.slane %v802, 0
    %v805 = vperm.slane %v802, 1
    %808 = vmatpush.msra.mxu0 %v768
    %809 = vmatpush.msra.mxu0 %v766
    %810 = vmatpush.msra.mxu0 %v764
    %811 = vmatpush.msra.mxu0 %v762
    %812 = vmatpush.msra.mxu0 %v760
    %813 = vmatpush.msra.mxu0 %v758
    %814 = vmatpush.msra.mxu0 %v756
    %815 = vmatpush.msra.mxu0 %v754
    %816 = vmatpush.msra.mxu0 %v752
    %817 = vmatpush.msra.mxu0 %v750
    %818 = vmatpush.msra.mxu0 %v748
    %819 = vmatpush.msra.mxu0 %v746
    %820 = vmatpush.msra.mxu0 %v744
    %821 = vmatpush.msra.mxu0 %v742
    %822 = vmatpush.msra.mxu0 %v740
    %823 = vmatpush.msra.mxu0 %v738
    %824 = vmatmul.f32.gmra.mxu0 %v706
    %v825 = vpop.f32.mrf.mxu0
    %v826 = vadd.f32 %v804, %v825
    %827 = vmatmul.f32.gmra.mxu0 %v708
    %v828 = vpop.f32.mrf.mxu0
    %v829 = vadd.f32 %v804, %v828
    %830 = vmatmul.f32.gmra.mxu0 %v710
    %v831 = vpop.f32.mrf.mxu0
    %v832 = vadd.f32 %v804, %v831
    %833 = vmatmul.f32.gmra.mxu0 %v712
    %v834 = vpop.f32.mrf.mxu0
    %v835 = vadd.f32 %v804, %v834
    %836 = vmatmul.f32.gmra.mxu0 %v714
    %v837 = vpop.f32.mrf.mxu0
    %v838 = vadd.f32 %v804, %v837
    %839 = vmatmul.f32.gmra.mxu0 %v716
    %v840 = vpop.f32.mrf.mxu0
    %v841 = vadd.f32 %v804, %v840
    %842 = vmatmul.f32.gmra.mxu0 %v718
    %v843 = vpop.f32.mrf.mxu0
    %v844 = vadd.f32 %v804, %v843
    %845 = vmatmul.f32.gmra.mxu0 %v720
    %v846 = vpop.f32.mrf.mxu0
    %v847 = vadd.f32 %v804, %v846
    %848 = vmatmul.f32.gmra.mxu0 %v722
    %v849 = vpop.f32.mrf.mxu0
    %v850 = vadd.f32 %v804, %v849
    %851 = vmatmul.f32.gmra.mxu0 %v724
    %v852 = vpop.f32.mrf.mxu0
    %v853 = vadd.f32 %v804, %v852
    %854 = vmatmul.f32.gmra.mxu0 %v726
    %v855 = vpop.f32.mrf.mxu0
    %v856 = vadd.f32 %v804, %v855
    %857 = vmatmul.f32.gmra.mxu0 %v728
    %v858 = vpop.f32.mrf.mxu0
    %v859 = vadd.f32 %v804, %v858
    %860 = vmatmul.f32.gmra.mxu0 %v730
    %v861 = vpop.f32.mrf.mxu0
    %v862 = vadd.f32 %v804, %v861
    %863 = vmatmul.f32.gmra.mxu0 %v732
    %v864 = vpop.f32.mrf.mxu0
    %v865 = vadd.f32 %v804, %v864
    %866 = vmatmul.f32.gmra.mxu0 %v734
    %v867 = vpop.f32.mrf.mxu0
    %v868 = vadd.f32 %v804, %v867
    %869 = vmatmul.f32.gmra.mxu0 %v736
    %v870 = vpop.f32.mrf.mxu0
    %v871 = vadd.f32 %v804, %v870
    %872 = vdwg.mxu0
    %873 = vmatpush.msra.mxu0 %v800
    %874 = vmatpush.msra.mxu0 %v798
    %875 = vmatpush.msra.mxu0 %v796
    %876 = vmatpush.msra.mxu0 %v794
    %877 = vmatpush.msra.mxu0 %v792
    %878 = vmatpush.msra.mxu0 %v790
    %879 = vmatpush.msra.mxu0 %v788
    %880 = vmatpush.msra.mxu0 %v786
    %881 = vmatpush.msra.mxu0 %v784
    %882 = vmatpush.msra.mxu0 %v782
    %883 = vmatpush.msra.mxu0 %v780
    %884 = vmatpush.msra.mxu0 %v778
    %885 = vmatpush.msra.mxu0 %v776
    %886 = vmatpush.msra.mxu0 %v774
    %887 = vmatpush.msra.mxu0 %v772
    %888 = vmatpush.msra.mxu0 %v770
    %889 = vmatmul.f32.gmra.mxu0 %v707
    %v890 = vpop.f32.mrf.mxu0
    %v891 = vadd.f32 %v826, %v890
    %892 = vmatmul.f32.gmra.mxu0 %v709
    %v893 = vpop.f32.mrf.mxu0
    %v894 = vadd.f32 %v829, %v893
    %895 = vmatmul.f32.gmra.mxu0 %v711
    %v896 = vpop.f32.mrf.mxu0
    %v897 = vadd.f32 %v832, %v896
    %898 = vmatmul.f32.gmra.mxu0 %v713
    %v899 = vpop.f32.mrf.mxu0
    %v900 = vadd.f32 %v835, %v899
    %901 = vmatmul.f32.gmra.mxu0 %v715
    %v902 = vpop.f32.mrf.mxu0
    %v903 = vadd.f32 %v838, %v902
    %904 = vmatmul.f32.gmra.mxu0 %v717
    %v905 = vpop.f32.mrf.mxu0
    %v906 = vadd.f32 %v841, %v905
    %907 = vmatmul.f32.gmra.mxu0 %v719
    %v908 = vpop.f32.mrf.mxu0
    %v909 = vadd.f32 %v844, %v908
    %910 = vmatmul.f32.gmra.mxu0 %v721
    %v911 = vpop.f32.mrf.mxu0
    %v912 = vadd.f32 %v847, %v911
    %913 = vmatmul.f32.gmra.mxu0 %v723
    %v914 = vpop.f32.mrf.mxu0
    %v915 = vadd.f32 %v850, %v914
    %916 = vmatmul.f32.gmra.mxu0 %v725
    %v917 = vpop.f32.mrf.mxu0
    %v918 = vadd.f32 %v853, %v917
    %919 = vmatmul.f32.gmra.mxu0 %v727
    %v920 = vpop.f32.mrf.mxu0
    %v921 = vadd.f32 %v856, %v920
    %922 = vmatmul.f32.gmra.mxu0 %v729
    %v923 = vpop.f32.mrf.mxu0
    %v924 = vadd.f32 %v859, %v923
    %925 = vmatmul.f32.gmra.mxu0 %v731
    %v926 = vpop.f32.mrf.mxu0
    %v927 = vadd.f32 %v862, %v926
    %928 = vmatmul.f32.gmra.mxu0 %v733
    %v929 = vpop.f32.mrf.mxu0
    %v930 = vadd.f32 %v865, %v929
    %931 = vmatmul.f32.gmra.mxu0 %v735
    %v932 = vpop.f32.mrf.mxu0
    %v933 = vadd.f32 %v868, %v932
    %934 = vmatmul.f32.gmra.mxu0 %v737
    %v935 = vpop.f32.mrf.mxu0
    %v936 = vadd.f32 %v871, %v935
    %937 = vdwg.mxu0
    %938 = vmatpush.msra.mxu0 %v769
    %939 = vmatpush.msra.mxu0 %v767
    %940 = vmatpush.msra.mxu0 %v765
    %941 = vmatpush.msra.mxu0 %v763
    %942 = vmatpush.msra.mxu0 %v761
    %943 = vmatpush.msra.mxu0 %v759
    %944 = vmatpush.msra.mxu0 %v757
    %945 = vmatpush.msra.mxu0 %v755
    %946 = vmatpush.msra.mxu0 %v753
    %947 = vmatpush.msra.mxu0 %v751
    %948 = vmatpush.msra.mxu0 %v749
    %949 = vmatpush.msra.mxu0 %v747
    %950 = vmatpush.msra.mxu0 %v745
    %951 = vmatpush.msra.mxu0 %v743
    %952 = vmatpush.msra.mxu0 %v741
    %953 = vmatpush.msra.mxu0 %v739
    %954 = vmatmul.f32.gmra.mxu0 %v706
    %v955 = vpop.f32.mrf.mxu0
    %v956 = vadd.f32 %v805, %v955
    %957 = vmatmul.f32.gmra.mxu0 %v708
    %v958 = vpop.f32.mrf.mxu0
    %v959 = vadd.f32 %v805, %v958
    %960 = vmatmul.f32.gmra.mxu0 %v710
    %v961 = vpop.f32.mrf.mxu0
    %v962 = vadd.f32 %v805, %v961
    %963 = vmatmul.f32.gmra.mxu0 %v712
    %v964 = vpop.f32.mrf.mxu0
    %v965 = vadd.f32 %v805, %v964
    %966 = vmatmul.f32.gmra.mxu0 %v714
    %v967 = vpop.f32.mrf.mxu0
    %v968 = vadd.f32 %v805, %v967
    %969 = vmatmul.f32.gmra.mxu0 %v716
    %v970 = vpop.f32.mrf.mxu0
    %v971 = vadd.f32 %v805, %v970
    %972 = vmatmul.f32.gmra.mxu0 %v718
    %v973 = vpop.f32.mrf.mxu0
    %v974 = vadd.f32 %v805, %v973
    %975 = vmatmul.f32.gmra.mxu0 %v720
    %v976 = vpop.f32.mrf.mxu0
    %v977 = vadd.f32 %v805, %v976
    %978 = vmatmul.f32.gmra.mxu0 %v722
    %v979 = vpop.f32.mrf.mxu0
    %v980 = vadd.f32 %v805, %v979
    %981 = vmatmul.f32.gmra.mxu0 %v724
    %v982 = vpop.f32.mrf.mxu0
    %v983 = vadd.f32 %v805, %v982
    %984 = vmatmul.f32.gmra.mxu0 %v726
    %v985 = vpop.f32.mrf.mxu0
    %v986 = vadd.f32 %v805, %v985
    %987 = vmatmul.f32.gmra.mxu0 %v728
    %v988 = vpop.f32.mrf.mxu0
    %v989 = vadd.f32 %v805, %v988
    %990 = vmatmul.f32.gmra.mxu0 %v730
    %v991 = vpop.f32.mrf.mxu0
    %v992 = vadd.f32 %v805, %v991
    %993 = vmatmul.f32.gmra.mxu0 %v732
    %v994 = vpop.f32.mrf.mxu0
    %v995 = vadd.f32 %v805, %v994
    %996 = vmatmul.f32.gmra.mxu0 %v734
    %v997 = vpop.f32.mrf.mxu0
    %v998 = vadd.f32 %v805, %v997
    %999 = vmatmul.f32.gmra.mxu0 %v736
    %v1000 = vpop.f32.mrf.mxu0
    %v1001 = vadd.f32 %v805, %v1000
    %1002 = vdwg.mxu0
    %1003 = vmatpush.msra.mxu0 %v801
    %1004 = vmatpush.msra.mxu0 %v799
    %1005 = vmatpush.msra.mxu0 %v797
    %1006 = vmatpush.msra.mxu0 %v795
    %1007 = vmatpush.msra.mxu0 %v793
    %1008 = vmatpush.msra.mxu0 %v791
    %1009 = vmatpush.msra.mxu0 %v789
    %1010 = vmatpush.msra.mxu0 %v787
    %1011 = vmatpush.msra.mxu0 %v785
    %1012 = vmatpush.msra.mxu0 %v783
    %1013 = vmatpush.msra.mxu0 %v781
    %1014 = vmatpush.msra.mxu0 %v779
    %1015 = vmatpush.msra.mxu0 %v777
    %1016 = vmatpush.msra.mxu0 %v775
    %1017 = vmatpush.msra.mxu0 %v773
    %1018 = vmatpush.msra.mxu0 %v771
    %1019 = vmatmul.f32.gmra.mxu0 %v707
    %v1020 = vpop.f32.mrf.mxu0
    %v1021 = vadd.f32 %v956, %v1020
    %1022 = vmatmul.f32.gmra.mxu0 %v709
    %v1023 = vpop.f32.mrf.mxu0
    %v1024 = vadd.f32 %v959, %v1023
    %1025 = vmatmul.f32.gmra.mxu0 %v711
    %v1026 = vpop.f32.mrf.mxu0
    %v1027 = vadd.f32 %v962, %v1026
    %1028 = vmatmul.f32.gmra.mxu0 %v713
    %v1029 = vpop.f32.mrf.mxu0
    %v1030 = vadd.f32 %v965, %v1029
    %1031 = vmatmul.f32.gmra.mxu0 %v715
    %v1032 = vpop.f32.mrf.mxu0
    %v1033 = vadd.f32 %v968, %v1032
    %1034 = vmatmul.f32.gmra.mxu0 %v717
    %v1035 = vpop.f32.mrf.mxu0
    %v1036 = vadd.f32 %v971, %v1035
    %1037 = vmatmul.f32.gmra.mxu0 %v719
    %v1038 = vpop.f32.mrf.mxu0
    %v1039 = vadd.f32 %v974, %v1038
    %1040 = vmatmul.f32.gmra.mxu0 %v721
    %v1041 = vpop.f32.mrf.mxu0
    %v1042 = vadd.f32 %v977, %v1041
    %1043 = vmatmul.f32.gmra.mxu0 %v723
    %v1044 = vpop.f32.mrf.mxu0
    %v1045 = vadd.f32 %v980, %v1044
    %1046 = vmatmul.f32.gmra.mxu0 %v725
    %v1047 = vpop.f32.mrf.mxu0
    %v1048 = vadd.f32 %v983, %v1047
    %1049 = vmatmul.f32.gmra.mxu0 %v727
    %v1050 = vpop.f32.mrf.mxu0
    %v1051 = vadd.f32 %v986, %v1050
    %1052 = vmatmul.f32.gmra.mxu0 %v729
    %v1053 = vpop.f32.mrf.mxu0
    %v1054 = vadd.f32 %v989, %v1053
    %1055 = vmatmul.f32.gmra.mxu0 %v731
    %v1056 = vpop.f32.mrf.mxu0
    %v1057 = vadd.f32 %v992, %v1056
    %1058 = vmatmul.f32.gmra.mxu0 %v733
    %v1059 = vpop.f32.mrf.mxu0
    %v1060 = vadd.f32 %v995, %v1059
    %1061 = vmatmul.f32.gmra.mxu0 %v735
    %v1062 = vpop.f32.mrf.mxu0
    %v1063 = vadd.f32 %v998, %v1062
    %1064 = vmatmul.f32.gmra.mxu0 %v737
    %v1065 = vpop.f32.mrf.mxu0
    %v1066 = vadd.f32 %v1001, %v1065
    %1067 = vdwg.mxu0
    %v1068 = vmul.f32 %v891, 0.01
    %v1069 = vmul.f32 %v1021, 0.01
    %v1070 = vmul.f32 %v894, 0.01
    %v1071 = vmul.f32 %v1024, 0.01
    %v1072 = vmul.f32 %v897, 0.01
    %v1073 = vmul.f32 %v1027, 0.01
    %v1074 = vmul.f32 %v900, 0.01
    %v1075 = vmul.f32 %v1030, 0.01
    %v1076 = vmul.f32 %v903, 0.01
    %v1077 = vmul.f32 %v1033, 0.01
    %v1078 = vmul.f32 %v906, 0.01
    %v1079 = vmul.f32 %v1036, 0.01
    %v1080 = vmul.f32 %v909, 0.01
    %v1081 = vmul.f32 %v1039, 0.01
    %v1082 = vmul.f32 %v912, 0.01
    %v1083 = vmul.f32 %v1042, 0.01
    %v1084 = vmul.f32 %v915, 0.01
    %v1085 = vmul.f32 %v1045, 0.01
    %v1086 = vmul.f32 %v918, 0.01
    %v1087 = vmul.f32 %v1048, 0.01
    %v1088 = vmul.f32 %v921, 0.01
    %v1089 = vmul.f32 %v1051, 0.01
    %v1090 = vmul.f32 %v924, 0.01
    %v1091 = vmul.f32 %v1054, 0.01
    %v1092 = vmul.f32 %v927, 0.01
    %v1093 = vmul.f32 %v1057, 0.01
    %v1094 = vmul.f32 %v930, 0.01
    %v1095 = vmul.f32 %v1060, 0.01
    %v1096 = vmul.f32 %v933, 0.01
    %v1097 = vmul.f32 %v1063, 0.01
    %v1098 = vmul.f32 %v936, 0.01
    %v1099 = vmul.f32 %v1066, 0.01
    %v1100 = vmax.f32 %v891, %v1068
    %v1101 = vmax.f32 %v1021, %v1069
    %v1102 = vmax.f32 %v894, %v1070
    %v1103 = vmax.f32 %v1024, %v1071
    %v1104 = vmax.f32 %v897, %v1072
    %v1105 = vmax.f32 %v1027, %v1073
    %v1106 = vmax.f32 %v900, %v1074
    %v1107 = vmax.f32 %v1030, %v1075
    %v1108 = vmax.f32 %v903, %v1076
    %v1109 = vmax.f32 %v1033, %v1077
    %v1110 = vmax.f32 %v906, %v1078
    %v1111 = vmax.f32 %v1036, %v1079
    %v1112 = vmax.f32 %v909, %v1080
    %v1113 = vmax.f32 %v1039, %v1081
    %v1114 = vmax.f32 %v912, %v1082
    %v1115 = vmax.f32 %v1042, %v1083
    %v1116 = vmax.f32 %v915, %v1084
    %v1117 = vmax.f32 %v1045, %v1085
    %v1118 = vmax.f32 %v918, %v1086
    %v1119 = vmax.f32 %v1048, %v1087
    %v1120 = vmax.f32 %v921, %v1088
    %v1121 = vmax.f32 %v1051, %v1089
    %v1122 = vmax.f32 %v924, %v1090
    %v1123 = vmax.f32 %v1054, %v1091
    %v1124 = vmax.f32 %v927, %v1092
    %v1125 = vmax.f32 %v1057, %v1093
    %v1126 = vmax.f32 %v930, %v1094
    %v1127 = vmax.f32 %v1060, %v1095
    %v1128 = vmax.f32 %v933, %v1096
    %v1129 = vmax.f32 %v1063, %v1097
    %v1130 = vmax.f32 %v936, %v1098
    %v1131 = vmax.f32 %v1066, %v1099
    %1132 = vst [vmem:[%s6] sm:$0xff] %v1100
    %1133 = vst [vmem:[%s6 + $0x8] sm:$0xff] %v1101
    %1134 = vst [vmem:[%s6 + $0x10] sm:$0xff] %v1102
    %1135 = vst [vmem:[%s6 + $0x18] sm:$0xff] %v1103
    %1136 = vst [vmem:[%s6 + $0x20] sm:$0xff] %v1104
    %1137 = vst [vmem:[%s6 + $0x28] sm:$0xff] %v1105
    %1138 = vst [vmem:[%s6 + $0x30] sm:$0xff] %v1106
    %1139 = vst [vmem:[%s6 + $0x38] sm:$0xff] %v1107
    %1140 = vst [vmem:[%s6 + $0x40] sm:$0xff] %v1108
    %1141 = vst [vmem:[%s6 + $0x48] sm:$0xff] %v1109
    %1142 = vst [vmem:[%s6 + $0x50] sm:$0xff] %v1110
    %1143 = vst [vmem:[%s6 + $0x58] sm:$0xff] %v1111
    %1144 = vst [vmem:[%s6 + $0x60] sm:$0xff] %v1112
    %1145 = vst [vmem:[%s6 + $0x68] sm:$0xff] %v1113
    %1146 = vst [vmem:[%s6 + $0x70] sm:$0xff] %v1114
    %1147 = vst [vmem:[%s6 + $0x78] sm:$0xff] %v1115
    %1148 = vst [vmem:[%s6 + $0x80] sm:$0xff] %v1116
    %1149 = vst [vmem:[%s6 + $0x88] sm:$0xff] %v1117
    %1150 = vst [vmem:[%s6 + $0x90] sm:$0xff] %v1118
    %1151 = vst [vmem:[%s6 + $0x98] sm:$0xff] %v1119
    %1152 = vst [vmem:[%s6 + $0xa0] sm:$0xff] %v1120
    %1153 = vst [vmem:[%s6 + $0xa8] sm:$0xff] %v1121
    %1154 = vst [vmem:[%s6 + $0xb0] sm:$0xff] %v1122
    %1155 = vst [vmem:[%s6 + $0xb8] sm:$0xff] %v1123
    %1156 = vst [vmem:[%s6 + $0xc0] sm:$0xff] %v1124
    %1157 = vst [vmem:[%s6 + $0xc8] sm:$0xff] %v1125
    %1158 = vst [vmem:[%s6 + $0xd0] sm:$0xff] %v1126
    %1159 = vst [vmem:[%s6 + $0xd8] sm:$0xff] %v1127
    %1160 = vst [vmem:[%s6 + $0xe0] sm:$0xff] %v1128
    %1161 = vst [vmem:[%s6 + $0xe8] sm:$0xff] %v1129
    %1162 = vst [vmem:[%s6 + $0xf0] sm:$0xff] %v1130
    %1163 = vst [vmem:[%s6 + $0xf8] sm:$0xff] %v1131
  $region33: #{graph_agent_forward.5} parent=0 // pred_fallthru
    _
  // Predicated region
  $region34: #{graph_agent_forward.5} parent=0 // pred_check
    _
  $region35: #{graph_agent_forward.5} parent=0 // pred_check_branch
    %1165 = sbr.rel (0) target = $region37
  $region36: #{graph_agent_forward.5} parent=0 // pred_region
    _
  $region37: #{graph_agent_forward.5} parent=0 // pred_fallthru
    _
  // Predicated region
  $region38: #{graph_agent_forward.5} parent=0 // pred_check
    _
  $region39: #{graph_agent_forward.5} parent=0 // pred_check_branch
    %1167 = sbr.rel (0) target = $region41
  $region40: #{graph_agent_forward.5} parent=0 // pred_region
    _
  $region41: #{graph_agent_forward.5} parent=0 // pred_fallthru
    _

// kernel: graph_agent_forward.7
$region0: #{graph_agent_forward.7}
  #allocation0 [shape = 'u32[]', space=smem, size = 0x4, offset = 0x4, fixed_abs, tag = 'smem constant byte address 0x4 - core index']
  #allocation1 [shape = 'u32[72,128]{1,0:T(1,128)}', space=vmem, size = 0x9000, scoped, tag = 'internal scratch']
  #allocation2 [shape = 'f32[16,256]{1,0:T(8,128)}', space=vmem, size = 0x4000, scoped, tag = 'scratch operand']
  %s0 = inlined_call_operand.vmem [shape: f32[16,128], index: 0, kind: input, shape index: {}]
  %s1 = inlined_call_operand.vmem [shape: f32[128,256], index: 1, kind: input, shape index: {}]
  %s2 = inlined_call_operand.vmem [shape: f32[16,1], index: 2, kind: input, shape index: {}]
  %s3 = inlined_call_operand.vmem [shape: f32[256,256], index: 3, kind: input, shape index: {}]
  %s4 = inlined_call_operand.vmem [shape: f32[1,256], index: 4, kind: input, shape index: {}]
  %s5 = inlined_call_operand.vmem [shape: f32[256,128], index: 5, kind: input, shape index: {}]
  %s6 = inlined_call_operand.vmem [shape: f32[1,128], index: 6, kind: input, shape index: {}]
  %s7 = inlined_call_operand.vmem [shape: f32[16,128], index: 7, kind: output, shape index: {}]
  %s8 = sld [smem:[#allocation0]]
  $region46: #{graph_agent_forward.7} parent=0
    _
  %s10 = ssub.s32 1, %s8
  %s11 = scalar_select 0, %s10, %s8
  // Predicated region
  $region2: #{graph_agent_forward.7} parent=0 // pred_check
    _
  $region3: #{graph_agent_forward.7} parent=0 // pred_check_branch
    %13 = sbr.rel (0) target = $region5
  $region4: #{graph_agent_forward.7} parent=0 // pred_region
    _
  $region5: #{graph_agent_forward.7} parent=0 // pred_fallthru
    _
  // Predicated region
  $region6: #{graph_agent_forward.7} parent=0 // pred_check
    _
  $region7: #{graph_agent_forward.7} parent=0 // pred_check_branch
    %15 = sbr.rel (0) target = $region9
  $region8: #{graph_agent_forward.7} parent=0 // pred_region
    _
  $region9: #{graph_agent_forward.7} parent=0 // pred_fallthru
    _
  // Predicated region
  $region10: #{graph_agent_forward.7} parent=0 // pred_check
    _
  $region11: #{graph_agent_forward.7} parent=0 // pred_check_branch
    %17 = sbr.rel (0) target = $region13
  $region12: #{graph_agent_forward.7} parent=0 // pred_region
    _
  $region13: #{graph_agent_forward.7} parent=0 // pred_fallthru
    _
  // Predicated region
  $region14: #{graph_agent_forward.7} parent=0 // pred_check
    _
  $region15: #{graph_agent_forward.7} parent=0 // pred_check_branch
    %19 = sbr.rel (0) target = $region17
  $region16: #{graph_agent_forward.7} parent=0 // pred_region
    _
  $region17: #{graph_agent_forward.7} parent=0 // pred_fallthru
    _
  // Predicated region
  $region18: #{graph_agent_forward.7} parent=0 // pred_check
    _
  $region19: #{graph_agent_forward.7} parent=0 // pred_check_branch
    %21 = sbr.rel (0) target = $region21
  $region20: #{graph_agent_forward.7} parent=0 // pred_region
    _
  $region21: #{graph_agent_forward.7} parent=0 // pred_fallthru
    _
  // Predicated region
  $region22: #{graph_agent_forward.7} parent=0 // pred_check
    _
  $region23: #{graph_agent_forward.7} parent=0 // pred_check_branch
    %23 = sbr.rel (0) target = $region25
  $region24: #{graph_agent_forward.7} parent=0 // pred_region
    _
  $region25: #{graph_agent_forward.7} parent=0 // pred_fallthru
    _
  // Predicated region
  $region26: #{graph_agent_forward.7} parent=0 // pred_check
    _
  $region27: #{graph_agent_forward.7} parent=0 // pred_check_branch
    %25 = sbr.rel (0) target = $region29
  $region28: #{graph_agent_forward.7} parent=0 // pred_region
    _
  $region29: #{graph_agent_forward.7} parent=0 // pred_fallthru
    _
  %p26 = scmp.eq.s32.totalorder 0, 0
  // Predicated region
  $region30: #{graph_agent_forward.7} parent=0 // pred_check
    %p27 = pneg %p26
  $region31: #{graph_agent_forward.7} parent=0 // pred_check_branch
    %29 = sbr.rel (%p27) target = $region33
  $region32: #{graph_agent_forward.7} parent=0 // pred_region
    %30 = vst [vmem:[#allocation2] sm:$0xff] 0.0
    %31 = vst [vmem:[#allocation2 + $0x8] sm:$0xff] 0.0
    %32 = vst [vmem:[#allocation2 + $0x10] sm:$0xff] 0.0
    %33 = vst [vmem:[#allocation2 + $0x18] sm:$0xff] 0.0
  $region33: #{graph_agent_forward.7} parent=0 // pred_fallthru
    _
  %v34 = vld [vmem:[#allocation2] sm:$0xff]
  %v35 = vld [vmem:[#allocation2 + $0x8] sm:$0xff]
  %v36 = vld [vmem:[#allocation2 + $0x10] sm:$0xff]
  %v37 = vld [vmem:[#allocation2 + $0x18] sm:$0xff]
  %v38 = vld [vmem:[%s0] sm:$0xff]
  %v39 = vld [vmem:[%s0 + $0x8] sm:$0xff]
  %v40 = vld [vmem:[%s1] sm:$0xff]
  %v41 = vld [vmem:[%s1 + $0x8] sm:$0xff]
  %v42 = vld [vmem:[%s1 + $0x10] sm:$0xff]
  %v43 = vld [vmem:[%s1 + $0x18] sm:$0xff]
  %v44 = vld [vmem:[%s1 + $0x20] sm:$0xff]
  %v45 = vld [vmem:[%s1 + $0x28] sm:$0xff]
  %v46 = vld [vmem:[%s1 + $0x30] sm:$0xff]
  %v47 = vld [vmem:[%s1 + $0x38] sm:$0xff]
  %v48 = vld [vmem:[%s1 + $0x40] sm:$0xff]
  %v49 = vld [vmem:[%s1 + $0x48] sm:$0xff]
  %v50 = vld [vmem:[%s1 + $0x50] sm:$0xff]
  %v51 = vld [vmem:[%s1 + $0x58] sm:$0xff]
  %v52 = vld [vmem:[%s1 + $0x60] sm:$0xff]
  %v53 = vld [vmem:[%s1 + $0x68] sm:$0xff]
  %v54 = vld [vmem:[%s1 + $0x70] sm:$0xff]
  %v55 = vld [vmem:[%s1 + $0x78] sm:$0xff]
  %v56 = vld [vmem:[%s1 + $0x80] sm:$0xff]
  %v57 = vld [vmem:[%s1 + $0x88] sm:$0xff]
  %v58 = vld [vmem:[%s1 + $0x90] sm:$0xff]
  %v59 = vld [vmem:[%s1 + $0x98] sm:$0xff]
  %v60 = vld [vmem:[%s1 + $0xa0] sm:$0xff]
  %v61 = vld [vmem:[%s1 + $0xa8] sm:$0xff]
  %v62 = vld [vmem:[%s1 + $0xb0] sm:$0xff]
  %v63 = vld [vmem:[%s1 + $0xb8] sm:$0xff]
  %v64 = vld [vmem:[%s1 + $0xc0] sm:$0xff]
  %v65 = vld [vmem:[%s1 + $0xc8] sm:$0xff]
  %v66 = vld [vmem:[%s1 + $0xd0] sm:$0xff]
  %v67 = vld [vmem:[%s1 + $0xd8] sm:$0xff]
  %v68 = vld [vmem:[%s1 + $0xe0] sm:$0xff]
  %v69 = vld [vmem:[%s1 + $0xe8] sm:$0xff]
  %v70 = vld [vmem:[%s1 + $0xf0] sm:$0xff]
  %v71 = vld [vmem:[%s1 + $0xf8] sm:$0xff]
  %72 = vmatpush.msra.mxu0 %v70
  %73 = vmatpush.msra.mxu0 %v68
  %74 = vmatpush.msra.mxu0 %v66
  %75 = vmatpush.msra.mxu0 %v64
  %76 = vmatpush.msra.mxu0 %v62
  %77 = vmatpush.msra.mxu0 %v60
  %78 = vmatpush.msra.mxu0 %v58
  %79 = vmatpush.msra.mxu0 %v56
  %80 = vmatpush.msra.mxu0 %v54
  %81 = vmatpush.msra.mxu0 %v52
  %82 = vmatpush.msra.mxu0 %v50
  %83 = vmatpush.msra.mxu0 %v48
  %84 = vmatpush.msra.mxu0 %v46
  %85 = vmatpush.msra.mxu0 %v44
  %86 = vmatpush.msra.mxu0 %v42
  %87 = vmatpush.msra.mxu0 %v40
  %88 = vmatmul.f32.gmra.mxu0 %v38
  %v89 = vpop.f32.mrf.mxu0
  %v90 = vadd.f32 0.0, %v89
  %91 = vmatmul.f32.gmra.mxu0 %v39
  %v92 = vpop.f32.mrf.mxu0
  %v93 = vadd.f32 0.0, %v92
  %94 = vdwg.mxu0
  %95 = vmatpush.msra.mxu0 %v71
  %96 = vmatpush.msra.mxu0 %v69
  %97 = vmatpush.msra.mxu0 %v67
  %98 = vmatpush.msra.mxu0 %v65
  %99 = vmatpush.msra.mxu0 %v63
  %100 = vmatpush.msra.mxu0 %v61
  %101 = vmatpush.msra.mxu0 %v59
  %102 = vmatpush.msra.mxu0 %v57
  %103 = vmatpush.msra.mxu0 %v55
  %104 = vmatpush.msra.mxu0 %v53
  %105 = vmatpush.msra.mxu0 %v51
  %106 = vmatpush.msra.mxu0 %v49
  %107 = vmatpush.msra.mxu0 %v47
  %108 = vmatpush.msra.mxu0 %v45
  %109 = vmatpush.msra.mxu0 %v43
  %110 = vmatpush.msra.mxu0 %v41
  %111 = vmatmul.f32.gmra.mxu0 %v38
  %v112 = vpop.f32.mrf.mxu0
  %v113 = vadd.f32 0.0, %v112
  %114 = vmatmul.f32.gmra.mxu0 %v39
  %v115 = vpop.f32.mrf.mxu0
  %v116 = vadd.f32 0.0, %v115
  %117 = vdwg.mxu0
  %v118 = vadd.f32 %v34, %v90
  %v119 = vadd.f32 %v35, %v113
  %v120 = vadd.f32 %v36, %v93
  %v121 = vadd.f32 %v37, %v116
  %122 = vst [vmem:[#allocation2] sm:$0xff] %v118
  %123 = vst [vmem:[#allocation2 + $0x8] sm:$0xff] %v119
  %124 = vst [vmem:[#allocation2 + $0x10] sm:$0xff] %v120
  %125 = vst [vmem:[#allocation2 + $0x18] sm:$0xff] %v121
  // Predicated region
  $region34: #{graph_agent_forward.7} parent=0 // pred_check
    %p126 = pneg %p26
  $region35: #{graph_agent_forward.7} parent=0 // pred_check_branch
    %128 = sbr.rel (%p126) target = $region37
  $region36: #{graph_agent_forward.7} parent=0 // pred_region
    %v129 = vld [vmem:[#allocation2] sm:$0xff]
    %v130 = vld [vmem:[#allocation2 + $0x8] sm:$0xff]
    %v131 = vld [vmem:[#allocation2 + $0x10] sm:$0xff]
    %v132 = vld [vmem:[#allocation2 + $0x18] sm:$0xff]
    %v133 = vld [vmem:[%s2] sm:$0xff]
    %v134 = vld [vmem:[%s2 + $0x8] sm:$0xff]
    %136 = vset.pattern.permute.xlu0 0
    %137 = vperm.xlu0 %136, %v133
    %v138 = vpop.permute.xlu0 %137
    %141 = vset.pattern.permute.xlu0 0
    %142 = vperm.xlu0 %141, %v134
    %v143 = vpop.permute.xlu0 %142
    %v145 = vmul.f32 %v129, %v138
    %v146 = vmul.f32 %v130, %v138
    %v147 = vmul.f32 %v131, %v143
    %v148 = vmul.f32 %v132, %v143
    %v149 = vld [vmem:[%s3] sm:$0xff]
    %v150 = vld [vmem:[%s3 + $0x8] sm:$0xff]
    %v151 = vld [vmem:[%s3 + $0x10] sm:$0xff]
    %v152 = vld [vmem:[%s3 + $0x18] sm:$0xff]
    %v153 = vld [vmem:[%s3 + $0x20] sm:$0xff]
    %v154 = vld [vmem:[%s3 + $0x28] sm:$0xff]
    %v155 = vld [vmem:[%s3 + $0x30] sm:$0xff]
    %v156 = vld [vmem:[%s3 + $0x38] sm:$0xff]
    %v157 = vld [vmem:[%s3 + $0x40] sm:$0xff]
    %v158 = vld [vmem:[%s3 + $0x48] sm:$0xff]
    %v159 = vld [vmem:[%s3 + $0x50] sm:$0xff]
    %v160 = vld [vmem:[%s3 + $0x58] sm:$0xff]
    %v161 = vld [vmem:[%s3 + $0x60] sm:$0xff]
    %v162 = vld [vmem:[%s3 + $0x68] sm:$0xff]
    %v163 = vld [vmem:[%s3 + $0x70] sm:$0xff]
    %v164 = vld [vmem:[%s3 + $0x78] sm:$0xff]
    %v165 = vld [vmem:[%s3 + $0x80] sm:$0xff]
    %v166 = vld [vmem:[%s3 + $0x88] sm:$0xff]
    %v167 = vld [vmem:[%s3 + $0x90] sm:$0xff]
    %v168 = vld [vmem:[%s3 + $0x98] sm:$0xff]
    %v169 = vld [vmem:[%s3 + $0xa0] sm:$0xff]
    %v170 = vld [vmem:[%s3 + $0xa8] sm:$0xff]
    %v171 = vld [vmem:[%s3 + $0xb0] sm:$0xff]
    %v172 = vld [vmem:[%s3 + $0xb8] sm:$0xff]
    %v173 = vld [vmem:[%s3 + $0xc0] sm:$0xff]
    %v174 = vld [vmem:[%s3 + $0xc8] sm:$0xff]
    %v175 = vld [vmem:[%s3 + $0xd0] sm:$0xff]
    %v176 = vld [vmem:[%s3 + $0xd8] sm:$0xff]
    %v177 = vld [vmem:[%s3 + $0xe0] sm:$0xff]
    %v178 = vld [vmem:[%s3 + $0xe8] sm:$0xff]
    %v179 = vld [vmem:[%s3 + $0xf0] sm:$0xff]
    %v180 = vld [vmem:[%s3 + $0xf8] sm:$0xff]
    %v181 = vld [vmem:[%s3 + $0x100] sm:$0xff]
    %v182 = vld [vmem:[%s3 + $0x108] sm:$0xff]
    %v183 = vld [vmem:[%s3 + $0x110] sm:$0xff]
    %v184 = vld [vmem:[%s3 + $0x118] sm:$0xff]
    %v185 = vld [vmem:[%s3 + $0x120] sm:$0xff]
    %v186 = vld [vmem:[%s3 + $0x128] sm:$0xff]
    %v187 = vld [vmem:[%s3 + $0x130] sm:$0xff]
    %v188 = vld [vmem:[%s3 + $0x138] sm:$0xff]
    %v189 = vld [vmem:[%s3 + $0x140] sm:$0xff]
    %v190 = vld [vmem:[%s3 + $0x148] sm:$0xff]
    %v191 = vld [vmem:[%s3 + $0x150] sm:$0xff]
    %v192 = vld [vmem:[%s3 + $0x158] sm:$0xff]
    %v193 = vld [vmem:[%s3 + $0x160] sm:$0xff]
    %v194 = vld [vmem:[%s3 + $0x168] sm:$0xff]
    %v195 = vld [vmem:[%s3 + $0x170] sm:$0xff]
    %v196 = vld [vmem:[%s3 + $0x178] sm:$0xff]
    %v197 = vld [vmem:[%s3 + $0x180] sm:$0xff]
    %v198 = vld [vmem:[%s3 + $0x188] sm:$0xff]
    %v199 = vld [vmem:[%s3 + $0x190] sm:$0xff]
    %v200 = vld [vmem:[%s3 + $0x198] sm:$0xff]
    %v201 = vld [vmem:[%s3 + $0x1a0] sm:$0xff]
    %v202 = vld [vmem:[%s3 + $0x1a8] sm:$0xff]
    %v203 = vld [vmem:[%s3 + $0x1b0] sm:$0xff]
    %v204 = vld [vmem:[%s3 + $0x1b8] sm:$0xff]
    %v205 = vld [vmem:[%s3 + $0x1c0] sm:$0xff]
    %v206 = vld [vmem:[%s3 + $0x1c8] sm:$0xff]
    %v207 = vld [vmem:[%s3 + $0x1d0] sm:$0xff]
    %v208 = vld [vmem:[%s3 + $0x1d8] sm:$0xff]
    %v209 = vld [vmem:[%s3 + $0x1e0] sm:$0xff]
    %v210 = vld [vmem:[%s3 + $0x1e8] sm:$0xff]
    %v211 = vld [vmem:[%s3 + $0x1f0] sm:$0xff]
    %v212 = vld [vmem:[%s3 + $0x1f8] sm:$0xff]
    %v213 = vld [vmem:[%s4] sm:$0x3]
    %v215 = vperm.slane %v213, 0
    %v216 = vperm.slane %v213, 1
    %219 = vmatpush.msra.mxu0 %v179
    %220 = vmatpush.msra.mxu0 %v177
    %221 = vmatpush.msra.mxu0 %v175
    %222 = vmatpush.msra.mxu0 %v173
    %223 = vmatpush.msra.mxu0 %v171
    %224 = vmatpush.msra.mxu0 %v169
    %225 = vmatpush.msra.mxu0 %v167
    %226 = vmatpush.msra.mxu0 %v165
    %227 = vmatpush.msra.mxu0 %v163
    %228 = vmatpush.msra.mxu0 %v161
    %229 = vmatpush.msra.mxu0 %v159
    %230 = vmatpush.msra.mxu0 %v157
    %231 = vmatpush.msra.mxu0 %v155
    %232 = vmatpush.msra.mxu0 %v153
    %233 = vmatpush.msra.mxu0 %v151
    %234 = vmatpush.msra.mxu0 %v149
    %235 = vmatmul.f32.gmra.mxu0 %v145
    %v236 = vpop.f32.mrf.mxu0
    %v237 = vadd.f32 %v215, %v236
    %238 = vmatmul.f32.gmra.mxu0 %v147
    %v239 = vpop.f32.mrf.mxu0
    %v240 = vadd.f32 %v215, %v239
    %241 = vdwg.mxu0
    %242 = vmatpush.msra.mxu0 %v211
    %243 = vmatpush.msra.mxu0 %v209
    %244 = vmatpush.msra.mxu0 %v207
    %245 = vmatpush.msra.mxu0 %v205
    %246 = vmatpush.msra.mxu0 %v203
    %247 = vmatpush.msra.mxu0 %v201
    %248 = vmatpush.msra.mxu0 %v199
    %249 = vmatpush.msra.mxu0 %v197
    %250 = vmatpush.msra.mxu0 %v195
    %251 = vmatpush.msra.mxu0 %v193
    %252 = vmatpush.msra.mxu0 %v191
    %253 = vmatpush.msra.mxu0 %v189
    %254 = vmatpush.msra.mxu0 %v187
    %255 = vmatpush.msra.mxu0 %v185
    %256 = vmatpush.msra.mxu0 %v183
    %257 = vmatpush.msra.mxu0 %v181
    %258 = vmatmul.f32.gmra.mxu0 %v146
    %v259 = vpop.f32.mrf.mxu0
    %v260 = vadd.f32 %v237, %v259
    %261 = vmatmul.f32.gmra.mxu0 %v148
    %v262 = vpop.f32.mrf.mxu0
    %v263 = vadd.f32 %v240, %v262
    %264 = vdwg.mxu0
    %265 = vmatpush.msra.mxu0 %v180
    %266 = vmatpush.msra.mxu0 %v178
    %267 = vmatpush.msra.mxu0 %v176
    %268 = vmatpush.msra.mxu0 %v174
    %269 = vmatpush.msra.mxu0 %v172
    %270 = vmatpush.msra.mxu0 %v170
    %271 = vmatpush.msra.mxu0 %v168
    %272 = vmatpush.msra.mxu0 %v166
    %273 = vmatpush.msra.mxu0 %v164
    %274 = vmatpush.msra.mxu0 %v162
    %275 = vmatpush.msra.mxu0 %v160
    %276 = vmatpush.msra.mxu0 %v158
    %277 = vmatpush.msra.mxu0 %v156
    %278 = vmatpush.msra.mxu0 %v154
    %279 = vmatpush.msra.mxu0 %v152
    %280 = vmatpush.msra.mxu0 %v150
    %281 = vmatmul.f32.gmra.mxu0 %v145
    %v282 = vpop.f32.mrf.mxu0
    %v283 = vadd.f32 %v216, %v282
    %284 = vmatmul.f32.gmra.mxu0 %v147
    %v285 = vpop.f32.mrf.mxu0
    %v286 = vadd.f32 %v216, %v285
    %287 = vdwg.mxu0
    %288 = vmatpush.msra.mxu0 %v212
    %289 = vmatpush.msra.mxu0 %v210
    %290 = vmatpush.msra.mxu0 %v208
    %291 = vmatpush.msra.mxu0 %v206
    %292 = vmatpush.msra.mxu0 %v204
    %293 = vmatpush.msra.mxu0 %v202
    %294 = vmatpush.msra.mxu0 %v200
    %295 = vmatpush.msra.mxu0 %v198
    %296 = vmatpush.msra.mxu0 %v196
    %297 = vmatpush.msra.mxu0 %v194
    %298 = vmatpush.msra.mxu0 %v192
    %299 = vmatpush.msra.mxu0 %v190
    %300 = vmatpush.msra.mxu0 %v188
    %301 = vmatpush.msra.mxu0 %v186
    %302 = vmatpush.msra.mxu0 %v184
    %303 = vmatpush.msra.mxu0 %v182
    %304 = vmatmul.f32.gmra.mxu0 %v146
    %v305 = vpop.f32.mrf.mxu0
    %v306 = vadd.f32 %v283, %v305
    %307 = vmatmul.f32.gmra.mxu0 %v148
    %v308 = vpop.f32.mrf.mxu0
    %v309 = vadd.f32 %v286, %v308
    %310 = vdwg.mxu0
    %v311 = vmul.f32 %v260, 0.01
    %v312 = vmul.f32 %v306, 0.01
    %v313 = vmul.f32 %v263, 0.01
    %v314 = vmul.f32 %v309, 0.01
    %v315 = vmax.f32 %v260, %v311
    %v316 = vmax.f32 %v306, %v312
    %v317 = vmax.f32 %v263, %v313
    %v318 = vmax.f32 %v309, %v314
    %v319 = vld [vmem:[%s5] sm:$0xff]
    %v320 = vld [vmem:[%s5 + $0x8] sm:$0xff]
    %v321 = vld [vmem:[%s5 + $0x10] sm:$0xff]
    %v322 = vld [vmem:[%s5 + $0x18] sm:$0xff]
    %v323 = vld [vmem:[%s5 + $0x20] sm:$0xff]
    %v324 = vld [vmem:[%s5 + $0x28] sm:$0xff]
    %v325 = vld [vmem:[%s5 + $0x30] sm:$0xff]
    %v326 = vld [vmem:[%s5 + $0x38] sm:$0xff]
    %v327 = vld [vmem:[%s5 + $0x40] sm:$0xff]
    %v328 = vld [vmem:[%s5 + $0x48] sm:$0xff]
    %v329 = vld [vmem:[%s5 + $0x50] sm:$0xff]
    %v330 = vld [vmem:[%s5 + $0x58] sm:$0xff]
    %v331 = vld [vmem:[%s5 + $0x60] sm:$0xff]
    %v332 = vld [vmem:[%s5 + $0x68] sm:$0xff]
    %v333 = vld [vmem:[%s5 + $0x70] sm:$0xff]
    %v334 = vld [vmem:[%s5 + $0x78] sm:$0xff]
    %v335 = vld [vmem:[%s5 + $0x80] sm:$0xff]
    %v336 = vld [vmem:[%s5 + $0x88] sm:$0xff]
    %v337 = vld [vmem:[%s5 + $0x90] sm:$0xff]
    %v338 = vld [vmem:[%s5 + $0x98] sm:$0xff]
    %v339 = vld [vmem:[%s5 + $0xa0] sm:$0xff]
    %v340 = vld [vmem:[%s5 + $0xa8] sm:$0xff]
    %v341 = vld [vmem:[%s5 + $0xb0] sm:$0xff]
    %v342 = vld [vmem:[%s5 + $0xb8] sm:$0xff]
    %v343 = vld [vmem:[%s5 + $0xc0] sm:$0xff]
    %v344 = vld [vmem:[%s5 + $0xc8] sm:$0xff]
    %v345 = vld [vmem:[%s5 + $0xd0] sm:$0xff]
    %v346 = vld [vmem:[%s5 + $0xd8] sm:$0xff]
    %v347 = vld [vmem:[%s5 + $0xe0] sm:$0xff]
    %v348 = vld [vmem:[%s5 + $0xe8] sm:$0xff]
    %v349 = vld [vmem:[%s5 + $0xf0] sm:$0xff]
    %v350 = vld [vmem:[%s5 + $0xf8] sm:$0xff]
    %v351 = vld [vmem:[%s6] sm:$0x1]
    %v353 = vperm.slane %v351, 0
    %355 = vmatpush.msra.mxu0 %v334
    %356 = vmatpush.msra.mxu0 %v333
    %357 = vmatpush.msra.mxu0 %v332
    %358 = vmatpush.msra.mxu0 %v331
    %359 = vmatpush.msra.mxu0 %v330
    %360 = vmatpush.msra.mxu0 %v329
    %361 = vmatpush.msra.mxu0 %v328
    %362 = vmatpush.msra.mxu0 %v327
    %363 = vmatpush.msra.mxu0 %v326
    %364 = vmatpush.msra.mxu0 %v325
    %365 = vmatpush.msra.mxu0 %v324
    %366 = vmatpush.msra.mxu0 %v323
    %367 = vmatpush.msra.mxu0 %v322
    %368 = vmatpush.msra.mxu0 %v321
    %369 = vmatpush.msra.mxu0 %v320
    %370 = vmatpush.msra.mxu0 %v319
    %371 = vmatmul.f32.gmra.mxu0 %v315
    %v372 = vpop.f32.mrf.mxu0
    %v373 = vadd.f32 %v353, %v372
    %374 = vmatmul.f32.gmra.mxu0 %v317
    %v375 = vpop.f32.mrf.mxu0
    %v376 = vadd.f32 %v353, %v375
    %377 = vdwg.mxu0
    %378 = vmatpush.msra.mxu0 %v350
    %379 = vmatpush.msra.mxu0 %v349
    %380 = vmatpush.msra.mxu0 %v348
    %381 = vmatpush.msra.mxu0 %v347
    %382 = vmatpush.msra.mxu0 %v346
    %383 = vmatpush.msra.mxu0 %v345
    %384 = vmatpush.msra.mxu0 %v344
    %385 = vmatpush.msra.mxu0 %v343
    %386 = vmatpush.msra.mxu0 %v342
    %387 = vmatpush.msra.mxu0 %v341
    %388 = vmatpush.msra.mxu0 %v340
    %389 = vmatpush.msra.mxu0 %v339
    %390 = vmatpush.msra.mxu0 %v338
    %391 = vmatpush.msra.mxu0 %v337
    %392 = vmatpush.msra.mxu0 %v336
    %393 = vmatpush.msra.mxu0 %v335
    %394 = vmatmul.f32.gmra.mxu0 %v316
    %v395 = vpop.f32.mrf.mxu0
    %v396 = vadd.f32 %v373, %v395
    %397 = vmatmul.f32.gmra.mxu0 %v318
    %v398 = vpop.f32.mrf.mxu0
    %v399 = vadd.f32 %v376, %v398
    %400 = vdwg.mxu0
    %401 = vst [vmem:[%s7] sm:$0xff] %v396
    %402 = vst [vmem:[%s7 + $0x8] sm:$0xff] %v399
  $region37: #{graph_agent_forward.7} parent=0 // pred_fallthru
    _
  // Predicated region
  $region38: #{graph_agent_forward.7} parent=0 // pred_check
    _
  $region39: #{graph_agent_forward.7} parent=0 // pred_check_branch
    %404 = sbr.rel (0) target = $region41
  $region40: #{graph_agent_forward.7} parent=0 // pred_region
    _
  $region41: #{graph_agent_forward.7} parent=0 // pred_fallthru
    _
  // Predicated region
  $region42: #{graph_agent_forward.7} parent=0 // pred_check
    _
  $region43: #{graph_agent_forward.7} parent=0 // pred_check_branch
    %406 = sbr.rel (0) target = $region45
  $region44: #{graph_agent_forward.7} parent=0 // pred_region
    _
  $region45: #{graph_agent_forward.7} parent=0 // pred_fallthru
    _

</llo_original>
